<compile_context>
chip_gen: v7x
topology: tpu7x:2x2x1
jax: 0.10.0
libtpu: 0.0.40
codegen_flags: <defaults>
</compile_context>

<pallas_src>
import jax
import jax.numpy as jnp
from jax.experimental import pallas as pl
from jax.experimental.pallas import tpu as pltpu

T_EMBED = 300                 # nn.Embedding(..., 300) hardwires t_embed = 300
D_FEAT = 3 * T_EMBED          # 900 (feature width of the Linear, in == out)


def _round_up(x, m):
    return ((x + m - 1) // m) * m


def triple_mlp_kernel(h_ref, r_ref, t_ref, w1_ref, w2_ref, w3_ref, b_ref, o_ref):
    # h/r/t: (tm, 300) bf16   w1/w2/w3: (300, 900) bf16   b: (1, 900) f32
    # o: (tm, 900) f32
    acc = jnp.dot(h_ref[...], w1_ref[...], preferred_element_type=jnp.float32)
    acc = acc + jnp.dot(r_ref[...], w2_ref[...], preferred_element_type=jnp.float32)
    acc = acc + jnp.dot(t_ref[...], w3_ref[...], preferred_element_type=jnp.float32)
    o_ref[...] = (acc + b_ref[...]).astype(o_ref.dtype)


def prepare_attention_params(entity_emb, rel_emb, mlp_weight, mlp_bias):
    """One-time parameter preprocessing. Hoist this out of the per-step call.

    - casts embedding tables to bf16 (gather emits bf16 rows -> half the HBM traffic)
    - transposes the PyTorch [out, in] Linear weight once and splits it into three
      (300, 900) slabs (head / rel / tail chunks of the concat), cast to bf16
    - reshapes the bias to [1, 900] (kept f32; it is added post-accumulation)
    """
    w_t = jnp.asarray(mlp_weight, jnp.float32).T.astype(jnp.bfloat16)  # [in=900, out=900]
    w1 = w_t[0 * T_EMBED:1 * T_EMBED]                                  # [300, 900]
    w2 = w_t[1 * T_EMBED:2 * T_EMBED]
    w3 = w_t[2 * T_EMBED:3 * T_EMBED]
    b = jnp.asarray(mlp_bias, jnp.float32).reshape(1, D_FEAT)          # [1, 900] f32
    ent_bf16 = jnp.asarray(entity_emb, jnp.float32).astype(jnp.bfloat16)
    rel_bf16 = jnp.asarray(rel_emb, jnp.float32).astype(jnp.bfloat16)
    return ent_bf16, rel_bf16, w1, w2, w3, b


def attention_forward_prepared(kg_enc_input, params, *, tm=512):
    """Forward pass using preprocessed params.

    kg_enc_input: [B, N1, N2, 3] int32 (head, rel, tail indices)
    returns:      [B, N1, N2, 900] f32
    """
    ent_bf16, rel_bf16, w1, w2, w3, b = params
    B, N1, N2, _ = kg_enc_input.shape
    M = B * N1 * N2

    idx = kg_enc_input.reshape(M, 3)
    # Embedding gathers stay in plain-JAX glue (data-dependent row gather); they feed
    # the kernel directly -- no [M, 900] concat intermediate is materialized.
    h = jnp.take(ent_bf16, idx[:, 0], axis=0)        # [M, 300] bf16
    r = jnp.take(rel_bf16, idx[:, 1], axis=0)        # [M, 300] bf16
    t = jnp.take(ent_bf16, idx[:, 2], axis=0)        # [M, 300] bf16

    # Large row tile for MXU efficiency; clamp for tiny inputs (tm stays a multiple of 8).
    tm = max(8, min(tm, _round_up(M, 8)))
    grid = (pl.cdiv(M, tm),)

    cost = pl.CostEstimate(
        flops=2 * M * D_FEAT * D_FEAT,
        bytes_accessed=3 * M * T_EMBED * 2            # bf16 h/r/t
        + 3 * T_EMBED * D_FEAT * 2                    # bf16 weight slabs
        + D_FEAT * 4                                  # bias
        + M * D_FEAT * 4,                             # f32 output
        transcendentals=0,
    )

    out = pl.pallas_call(
        triple_mlp_kernel,
        out_shape=jax.ShapeDtypeStruct((M, D_FEAT), jnp.float32),
        grid_spec=pltpu.PrefetchScalarGridSpec(
            num_scalar_prefetch=0,
            grid=grid,
            in_specs=[
                pl.BlockSpec((tm, T_EMBED), lambda i: (i, 0)),      # head emb tile
                pl.BlockSpec((tm, T_EMBED), lambda i: (i, 0)),      # rel  emb tile
                pl.BlockSpec((tm, T_EMBED), lambda i: (i, 0)),      # tail emb tile
                pl.BlockSpec((T_EMBED, D_FEAT), lambda i: (0, 0)),  # W1 (resident)
                pl.BlockSpec((T_EMBED, D_FEAT), lambda i: (0, 0)),  # W2 (resident)
                pl.BlockSpec((T_EMBED, D_FEAT), lambda i: (0, 0)),  # W3 (resident)
                pl.BlockSpec((1, D_FEAT), lambda i: (0, 0)),        # bias (resident)
            ],
            out_specs=pl.BlockSpec((tm, D_FEAT), lambda i: (i, 0)),
        ),
        compiler_params=pltpu.CompilerParams(
            dimension_semantics=("parallel",),
            vmem_limit_bytes=48 * 1024 * 1024,
        ),
        cost_estimate=cost,
    )(h, r, t, w1, w2, w3, b)

    # Pure metadata reshape back to the module's [B, N1, N2, 900] output layout.
    return out.reshape(B, N1, N2, D_FEAT)


def attention_forward(kg_enc_input, entity_emb, rel_emb, mlp_weight, mlp_bias, *, tm=512):
    """Convenience wrapper matching the original signature (prep + forward).

    In a real model, call prepare_attention_params() once and reuse the result.
    """
    params = prepare_attention_params(entity_emb, rel_emb, mlp_weight, mlp_bias)
    return attention_forward_prepared(kg_enc_input, params, tm=tm)


if __name__ == "__main__":
    # Small, deterministic synthetic setup consistent with the module.
    B, N1, N2 = 2, 3, 4
    entity_vocab, relation_vocab = 50, 20
    hidden_size = 32  # unused in forward (the `lii` Linear is never called)
    # TODO(synk): `lii` (Linear(2*t_embed -> 2*hidden), bias=False) is dead code in
    # forward() and is intentionally not implemented.

    key = jax.random.PRNGKey(0)
    k_ent, k_rel, k_w, k_b, k_idx = jax.random.split(key, 5)

    entity_emb = jax.random.normal(k_ent, (entity_vocab, T_EMBED), dtype=jnp.float32)
    rel_emb = jax.random.normal(k_rel, (relation_vocab, T_EMBED), dtype=jnp.float32)
    mlp_weight = (jax.random.normal(k_w, (D_FEAT, D_FEAT), dtype=jnp.float32)
                  * (1.0 / jnp.sqrt(D_FEAT)))
    mlp_bias = jax.random.normal(k_b, (D_FEAT,), dtype=jnp.float32) * 0.01

    # kg_enc_input: [B, N1, N2, 3] = (head, rel, tail) index triples
    heads = jax.random.randint(k_idx, (B, N1, N2, 1), 0, entity_vocab)
    rels = jax.random.randint(jax.random.fold_in(k_idx, 1), (B, N1, N2, 1), 0, relation_vocab)
    tails = jax.random.randint(jax.random.fold_in(k_idx, 2), (B, N1, N2, 1), 0, entity_vocab)
    kg_enc_input = jnp.concatenate([heads, rels, tails], axis=-1).astype(jnp.int32)

    # One-time prep, then the hot-path forward.
    params = prepare_attention_params(entity_emb, rel_emb, mlp_weight, mlp_bias)
    out = attention_forward_prepared(kg_enc_input, params)
    out = jax.block_until_ready(out)

    # Pure-JAX f32 reference (same semantics as the PyTorch forward).
    h = jnp.take(entity_emb, kg_enc_input[..., 0], axis=0)
    r = jnp.take(rel_emb, kg_enc_input[..., 1], axis=0)
    t = jnp.take(entity_emb, kg_enc_input[..., 2], axis=0)
    ref = jnp.concatenate([h, r, t], axis=-1) @ mlp_weight.T + mlp_bias

    assert out.shape == (B, N1, N2, D_FEAT), out.shape
    max_err = float(jnp.max(jnp.abs(out - ref)))
    # bf16 operands with f32 accumulation over K=900 -> loosened tolerance vs. f32 ref.
    assert jnp.allclose(out, ref, atol=6e-2, rtol=6e-2), max_err

    print("KERNEL_OK")
</pallas_src>

<mosaic_0001>
module attributes {stable_mosaic.version = 11 : i64} {
  func.func @triple_mlp_kernel(%arg0: i32, %arg1: memref<24x300xbf16, #tpu.memory_space<vmem>>, %arg2: memref<24x300xbf16, #tpu.memory_space<vmem>>, %arg3: memref<24x300xbf16, #tpu.memory_space<vmem>>, %arg4: memref<300x900xbf16, #tpu.memory_space<vmem>>, %arg5: memref<300x900xbf16, #tpu.memory_space<vmem>>, %arg6: memref<300x900xbf16, #tpu.memory_space<vmem>>, %arg7: memref<1x900xf32, #tpu.memory_space<vmem>>, %arg8: memref<24x900xf32, #tpu.memory_space<vmem>>) attributes {dimension_semantics = [#tpu.dimension_semantics<parallel>], iteration_bounds = array<i64: 1>, scalar_prefetch = 0 : i64, scratch_operands = 0 : i64, tpu.core_type = #tpu.core_type<tc>, window_params = [{transform_indices = @transform_0, window_bounds = array<i64: 24, 300>}, {transform_indices = @transform_1, window_bounds = array<i64: 24, 300>}, {transform_indices = @transform_2, window_bounds = array<i64: 24, 300>}, {pipeline_mode = #tpu.pipeline_mode<synchronous>, transform_indices = @transform_3, window_bounds = array<i64: 300, 900>}, {pipeline_mode = #tpu.pipeline_mode<synchronous>, transform_indices = @transform_4, window_bounds = array<i64: 300, 900>}, {pipeline_mode = #tpu.pipeline_mode<synchronous>, transform_indices = @transform_5, window_bounds = array<i64: 300, 900>}, {pipeline_mode = #tpu.pipeline_mode<synchronous>, transform_indices = @transform_6, window_bounds = array<i64: 1, 900>}, {transform_indices = @transform_7, window_bounds = array<i64: 24, 900>}]} {
    %c0 = arith.constant 0 : index
    %c0_0 = arith.constant 0 : index
    %0 = vector.load %arg1[%c0, %c0_0] : memref<24x300xbf16, #tpu.memory_space<vmem>>, vector<24x300xbf16>
    %c0_1 = arith.constant 0 : index
    %c0_2 = arith.constant 0 : index
    %1 = vector.load %arg4[%c0_1, %c0_2] : memref<300x900xbf16, #tpu.memory_space<vmem>>, vector<300x900xbf16>
    %cst = arith.constant dense<0.000000e+00> : vector<24x900xf32>
    %2 = tpu.matmul %0, %1, %cst {dimension_numbers = #tpu.dot_dimension_numbers<[1], [0], [0], [1], [0, 0, 1, 1], [], []>} : vector<24x300xbf16>, vector<300x900xbf16>, vector<24x900xf32> -> vector<24x900xf32>
    %c0_3 = arith.constant 0 : index
    %c0_4 = arith.constant 0 : index
    %3 = vector.load %arg2[%c0_3, %c0_4] : memref<24x300xbf16, #tpu.memory_space<vmem>>, vector<24x300xbf16>
    %c0_5 = arith.constant 0 : index
    %c0_6 = arith.constant 0 : index
    %4 = vector.load %arg5[%c0_5, %c0_6] : memref<300x900xbf16, #tpu.memory_space<vmem>>, vector<300x900xbf16>
    %cst_7 = arith.constant dense<0.000000e+00> : vector<24x900xf32>
    %5 = tpu.matmul %3, %4, %cst_7 {dimension_numbers = #tpu.dot_dimension_numbers<[1], [0], [0], [1], [0, 0, 1, 1], [], []>} : vector<24x300xbf16>, vector<300x900xbf16>, vector<24x900xf32> -> vector<24x900xf32>
    %6 = arith.addf %2, %5 : vector<24x900xf32>
    %c0_8 = arith.constant 0 : index
    %c0_9 = arith.constant 0 : index
    %7 = vector.load %arg3[%c0_8, %c0_9] : memref<24x300xbf16, #tpu.memory_space<vmem>>, vector<24x300xbf16>
    %c0_10 = arith.constant 0 : index
    %c0_11 = arith.constant 0 : index
    %8 = vector.load %arg6[%c0_10, %c0_11] : memref<300x900xbf16, #tpu.memory_space<vmem>>, vector<300x900xbf16>
    %cst_12 = arith.constant dense<0.000000e+00> : vector<24x900xf32>
    %9 = tpu.matmul %7, %8, %cst_12 {dimension_numbers = #tpu.dot_dimension_numbers<[1], [0], [0], [1], [0, 0, 1, 1], [], []>} : vector<24x300xbf16>, vector<300x900xbf16>, vector<24x900xf32> -> vector<24x900xf32>
    %10 = arith.addf %6, %9 : vector<24x900xf32>
    %c0_13 = arith.constant 0 : index
    %c0_14 = arith.constant 0 : index
    %11 = vector.load %arg7[%c0_13, %c0_14] : memref<1x900xf32, #tpu.memory_space<vmem>>, vector<1x900xf32>
    %12 = vector.broadcast %11 : vector<1x900xf32> to vector<24x900xf32>
    %13 = arith.addf %10, %12 : vector<24x900xf32>
    %c0_15 = arith.constant 0 : index
    %c0_16 = arith.constant 0 : index
    %14 = vector.load %arg8[%c0_15, %c0_16] : memref<24x900xf32, #tpu.memory_space<vmem>>, vector<24x900xf32>
    tpu.vector_store %arg8[%c0_15, %c0_16], %13 {strides = array<i32>} : memref<24x900xf32, #tpu.memory_space<vmem>>, vector<24x900xf32>,
    return
  }
  func.func @transform_0(%arg0: i32) -> (i32, i32) {
    %c0_i32 = arith.constant 0 : i32
    %c0_i32_0 = arith.constant 0 : i32
    return %arg0, %c0_i32 : i32, i32
  }
  func.func @transform_1(%arg0: i32) -> (i32, i32) {
    %c0_i32 = arith.constant 0 : i32
    %c0_i32_0 = arith.constant 0 : i32
    return %arg0, %c0_i32 : i32, i32
  }
  func.func @transform_2(%arg0: i32) -> (i32, i32) {
    %c0_i32 = arith.constant 0 : i32
    %c0_i32_0 = arith.constant 0 : i32
    return %arg0, %c0_i32 : i32, i32
  }
  func.func @transform_3(%arg0: i32) -> (i32, i32) {
    %c0_i32 = arith.constant 0 : i32
    %c0_i32_0 = arith.constant 0 : i32
    %c0_i32_1 = arith.constant 0 : i32
    return %c0_i32, %c0_i32_0 : i32, i32
  }
  func.func @transform_4(%arg0: i32) -> (i32, i32) {
    %c0_i32 = arith.constant 0 : i32
    %c0_i32_0 = arith.constant 0 : i32
    %c0_i32_1 = arith.constant 0 : i32
    return %c0_i32, %c0_i32_0 : i32, i32
  }
  func.func @transform_5(%arg0: i32) -> (i32, i32) {
    %c0_i32 = arith.constant 0 : i32
    %c0_i32_0 = arith.constant 0 : i32
    %c0_i32_1 = arith.constant 0 : i32
    return %c0_i32, %c0_i32_0 : i32, i32
  }
  func.func @transform_6(%arg0: i32) -> (i32, i32) {
    %c0_i32 = arith.constant 0 : i32
    %c0_i32_0 = arith.constant 0 : i32
    %c0_i32_1 = arith.constant 0 : i32
    return %c0_i32, %c0_i32_0 : i32, i32
  }
  func.func @transform_7(%arg0: i32) -> (i32, i32) {
    %c0_i32 = arith.constant 0 : i32
    %c0_i32_0 = arith.constant 0 : i32
    return %arg0, %c0_i32 : i32, i32
  }
}

</mosaic_0001>

<llo_original>
// kernel: tpu_custom_call.1
$region0: #{tpu_custom_call.1}
  #allocation0 [shape = 'u32[]', space=smem, size = 0x4, offset = 0x4, fixed_abs, tag = 'smem constant byte address 0x4 - core index']
  #allocation1 [shape = 'u32[144,128]{1,0:T(1,128)}', space=vmem, size = 0x12000, scoped, tag = 'internal scratch']
  %s0 = inlined_call_operand.hbm [shape: bf16[24,300], index: 0, kind: input, shape index: {}]
  %s1 = inlined_call_operand.hbm [shape: bf16[24,300], index: 1, kind: input, shape index: {}]
  %s2 = inlined_call_operand.hbm [shape: bf16[24,300], index: 2, kind: input, shape index: {}]
  %s3 = inlined_call_operand.hbm [shape: bf16[300,900], index: 3, kind: input, shape index: {}]
  %s4 = inlined_call_operand.hbm [shape: bf16[300,900], index: 4, kind: input, shape index: {}]
  %s5 = inlined_call_operand.hbm [shape: bf16[300,900], index: 5, kind: input, shape index: {}]
  %s6 = inlined_call_operand.vmem [shape: f32[1,900], index: 6, kind: input, shape index: {}]
  %s7 = inlined_call_operand.hbm [shape: f32[24,900], index: 7, kind: output, shape index: {}]
  %s8 = sld [smem:[#allocation0]]
  $region62: #{tpu_custom_call.1} parent=0
    _
  %s10 = ssub.s32 1, %s8
  %s11 = scalar_select 0, %s10, %s8
  $region1: #{tpu_custom_call.1} parent=0
    #allocation2 [shape = 'u8[18432]{0}', space=vmem, size = 0x4800, scoped, tag = 'input window, operand 0, single buffered']
    #allocation3 [shape = 's32[1]{0}', space=sflag, size = 0x4, scoped, tag = 'scoped memory for tpu_custom_call.1']
    #allocation4 [shape = 's32[1]{0}', space=sflag, size = 0x4, scoped, tag = 'scoped memory for tpu_custom_call.1']
    #allocation5 [shape = 'u8[18432]{0}', space=vmem, size = 0x4800, scoped, tag = 'input window, operand 1, single buffered']
    #allocation6 [shape = 's32[1]{0}', space=sflag, size = 0x4, scoped, tag = 'scoped memory for tpu_custom_call.1']
    #allocation7 [shape = 'u8[18432]{0}', space=vmem, size = 0x4800, scoped, tag = 'input window, operand 2, single buffered']
    #allocation8 [shape = 'u8[622592]{0}', space=vmem, size = 0x98000, scoped, tag = 'input window, operand 3, single buffered']
    #allocation9 [shape = 's32[1]{0}', space=sflag, size = 0x4, scoped, tag = 'scoped memory for tpu_custom_call.1']
    #allocation10 [shape = 'u8[622592]{0}', space=vmem, size = 0x98000, scoped, tag = 'input window, operand 4, single buffered']
    #allocation11 [shape = 'u8[622592]{0}', space=vmem, size = 0x98000, scoped, tag = 'input window, operand 5, single buffered']
    #allocation12 [shape = 's32[1]{0}', space=sflag, size = 0x4, scoped, tag = 'scoped memory for tpu_custom_call.1']
    #allocation13 [shape = 'u8[98304]{0}', space=vmem, size = 0x18000, scoped, tag = 'output window, operand 0, single buffered']
    %12 = vsyncpa [#allocation3], 0
    %13 = vsyncpa [#allocation6], 0
    %14 = vsyncpa [#allocation9], 0
    %15 = vsyncpa [#allocation12], 0
    %16 = vsyncpa [#allocation4], 0
    // Predicated region
    $region2: #{tpu_custom_call.1} parent=1 // pred_check
      _
    $region3: #{tpu_custom_call.1} parent=1 // pred_check_branch
      %18 = sbr.rel (0) target = $region5
    $region4: #{tpu_custom_call.1} parent=1 // pred_region
      %s20 = ssub.s32 576, 576
      %21 = vsyncadd [#allocation3], %s20
      %s22 = sshll.u32 [#allocation2], 4
      %s23 = int_to_ptr.vmem [resolvable:$true] %s22
      %28 = dma.hbm_to_vmem [thread:$0]  %s0, 576, %s23, [#allocation3], 192, 192, 12
    $region5: #{tpu_custom_call.1} parent=1 // pred_fallthru
      _
    // Predicated region
    $region6: #{tpu_custom_call.1} parent=1 // pred_check
      _
    $region7: #{tpu_custom_call.1} parent=1 // pred_check_branch
      %30 = sbr.rel (0) target = $region9
    $region8: #{tpu_custom_call.1} parent=1 // pred_region
      %s32 = ssub.s32 576, 576
      %33 = vsyncadd [#allocation6], %s32
      %s34 = sshll.u32 [#allocation5], 4
      %s35 = int_to_ptr.vmem [resolvable:$true] %s34
      %40 = dma.hbm_to_vmem [thread:$0]  %s1, 576, %s35, [#allocation6], 192, 192, 12
    $region9: #{tpu_custom_call.1} parent=1 // pred_fallthru
      _
    // Predicated region
    $region10: #{tpu_custom_call.1} parent=1 // pred_check
      _
    $region11: #{tpu_custom_call.1} parent=1 // pred_check_branch
      %42 = sbr.rel (0) target = $region13
    $region12: #{tpu_custom_call.1} parent=1 // pred_region
      %s44 = ssub.s32 576, 576
      %45 = vsyncadd [#allocation6], %s44
      %s46 = sshll.u32 [#allocation7], 4
      %s47 = int_to_ptr.vmem [resolvable:$true] %s46
      %52 = dma.hbm_to_vmem [thread:$0]  %s2, 576, %s47, [#allocation6], 192, 192, 12
    $region13: #{tpu_custom_call.1} parent=1 // pred_fallthru
      _
    // Predicated region
    $region14: #{tpu_custom_call.1} parent=1 // pred_check
      _
    $region15: #{tpu_custom_call.1} parent=1 // pred_check_branch
      %54 = sbr.rel (0) target = $region17
    $region16: #{tpu_custom_call.1} parent=1 // pred_region
      %s56 = ssub.s32 19456, 19456
      %57 = vsyncadd [#allocation9], %s56
      %s58 = sshll.u32 [#allocation8], 4
      %s59 = int_to_ptr.vmem [resolvable:$true] %s58
      %64 = dma.hbm_to_vmem [thread:$0]  %s3, 19456, %s59, [#allocation9], 512, 512, 32
    $region17: #{tpu_custom_call.1} parent=1 // pred_fallthru
      _
    // Predicated region
    $region18: #{tpu_custom_call.1} parent=1 // pred_check
      _
    $region19: #{tpu_custom_call.1} parent=1 // pred_check_branch
      %66 = sbr.rel (0) target = $region21
    $region20: #{tpu_custom_call.1} parent=1 // pred_region
      %s68 = ssub.s32 19456, 19456
      %69 = vsyncadd [#allocation9], %s68
      %s70 = sshll.u32 [#allocation10], 4
      %s71 = int_to_ptr.vmem [resolvable:$true] %s70
      %76 = dma.hbm_to_vmem [thread:$0]  %s4, 19456, %s71, [#allocation9], 512, 512, 32
    $region21: #{tpu_custom_call.1} parent=1 // pred_fallthru
      _
    // Predicated region
    $region22: #{tpu_custom_call.1} parent=1 // pred_check
      _
    $region23: #{tpu_custom_call.1} parent=1 // pred_check_branch
      %78 = sbr.rel (0) target = $region25
    $region24: #{tpu_custom_call.1} parent=1 // pred_region
      %s80 = ssub.s32 19456, 19456
      %81 = vsyncadd [#allocation12], %s80
      %s82 = sshll.u32 [#allocation11], 4
      %s83 = int_to_ptr.vmem [resolvable:$true] %s82
      %88 = dma.hbm_to_vmem [thread:$0]  %s5, 19456, %s83, [#allocation12], 512, 512, 32
    $region25: #{tpu_custom_call.1} parent=1 // pred_fallthru
      _
    // Predicated region
    $region26: #{tpu_custom_call.1} parent=1 // pred_check
      _
    $region27: #{tpu_custom_call.1} parent=1 // pred_check_branch
      %90 = sbr.rel (0) target = $region29
    $region28: #{tpu_custom_call.1} parent=1 // pred_region
      _
    $region29: #{tpu_custom_call.1} parent=1 // pred_fallthru
      _
    // Predicated region
    $region30: #{tpu_custom_call.1} parent=1 // pred_check
      _
    $region31: #{tpu_custom_call.1} parent=1 // pred_check_branch
      %92 = sbr.rel (0) target = $region33
    $region32: #{tpu_custom_call.1} parent=1 // pred_region
      %93 = dma.done [#allocation3], 576
    $region33: #{tpu_custom_call.1} parent=1 // pred_fallthru
      _
    // Predicated region
    $region34: #{tpu_custom_call.1} parent=1 // pred_check
      _
    $region35: #{tpu_custom_call.1} parent=1 // pred_check_branch
      %95 = sbr.rel (0) target = $region37
    $region36: #{tpu_custom_call.1} parent=1 // pred_region
      %96 = dma.done [#allocation6], 576
    $region37: #{tpu_custom_call.1} parent=1 // pred_fallthru
      _
    // Predicated region
    $region38: #{tpu_custom_call.1} parent=1 // pred_check
      _
    $region39: #{tpu_custom_call.1} parent=1 // pred_check_branch
      %98 = sbr.rel (0) target = $region41
    $region40: #{tpu_custom_call.1} parent=1 // pred_region
      %99 = dma.done [#allocation6], 576
    $region41: #{tpu_custom_call.1} parent=1 // pred_fallthru
      _
    // Predicated region
    $region42: #{tpu_custom_call.1} parent=1 // pred_check
      _
    $region43: #{tpu_custom_call.1} parent=1 // pred_check_branch
      %101 = sbr.rel (0) target = $region45
    $region44: #{tpu_custom_call.1} parent=1 // pred_region
      %102 = dma.done [#allocation9], 19456
    $region45: #{tpu_custom_call.1} parent=1 // pred_fallthru
      _
    // Predicated region
    $region46: #{tpu_custom_call.1} parent=1 // pred_check
      _
    $region47: #{tpu_custom_call.1} parent=1 // pred_check_branch
      %104 = sbr.rel (0) target = $region49
    $region48: #{tpu_custom_call.1} parent=1 // pred_region
      %105 = dma.done [#allocation9], 19456
    $region49: #{tpu_custom_call.1} parent=1 // pred_fallthru
      _
    // Predicated region
    $region50: #{tpu_custom_call.1} parent=1 // pred_check
      _
    $region51: #{tpu_custom_call.1} parent=1 // pred_check_branch
      %107 = sbr.rel (0) target = $region53
    $region52: #{tpu_custom_call.1} parent=1 // pred_region
      %108 = dma.done [#allocation12], 19456
    $region53: #{tpu_custom_call.1} parent=1 // pred_fallthru
      _
    %v110 = vld [vmem:[#allocation2] sm:$0xff]
    %v111 = vld [vmem:[#allocation2 + $0x8] sm:$0xf]
    %v112 = vld [vmem:[#allocation2 + $0xc] sm:$0xff]
    %v113 = vld [vmem:[#allocation2 + $0x14] sm:$0xf]
    %v114 = vld [vmem:[#allocation2 + $0x18] sm:$0xff]
    %v115 = vld [vmem:[#allocation2 + $0x20] sm:$0xf]
    %v116 = vld [vmem:[#allocation8] sm:$0xff]
    %v117 = vld [vmem:[#allocation8 + $0x8] sm:$0xff]
    %v118 = vld [vmem:[#allocation8 + $0x10] sm:$0xff]
    %v119 = vld [vmem:[#allocation8 + $0x18] sm:$0xff]
    %v120 = vld [vmem:[#allocation8 + $0x20] sm:$0xff]
    %v121 = vld [vmem:[#allocation8 + $0x28] sm:$0xff]
    %v122 = vld [vmem:[#allocation8 + $0x30] sm:$0xff]
    %v123 = vld [vmem:[#allocation8 + $0x38] sm:$0xff]
    %v124 = vld [vmem:[#allocation8 + $0x40] sm:$0xff]
    %v125 = vld [vmem:[#allocation8 + $0x48] sm:$0xff]
    %v126 = vld [vmem:[#allocation8 + $0x50] sm:$0xff]
    %v127 = vld [vmem:[#allocation8 + $0x58] sm:$0xff]
    %v128 = vld [vmem:[#allocation8 + $0x60] sm:$0xff]
    %v129 = vld [vmem:[#allocation8 + $0x68] sm:$0xff]
    %v130 = vld [vmem:[#allocation8 + $0x70] sm:$0xff]
    %v131 = vld [vmem:[#allocation8 + $0x78] sm:$0xff]
    %v132 = vld [vmem:[#allocation8 + $0x80] sm:$0xff]
    %v133 = vld [vmem:[#allocation8 + $0x88] sm:$0xff]
    %v134 = vld [vmem:[#allocation8 + $0x90] sm:$0xff]
    %v135 = vld [vmem:[#allocation8 + $0x98] sm:$0xff]
    %v136 = vld [vmem:[#allocation8 + $0xa0] sm:$0xff]
    %v137 = vld [vmem:[#allocation8 + $0xa8] sm:$0xff]
    %v138 = vld [vmem:[#allocation8 + $0xb0] sm:$0xff]
    %v139 = vld [vmem:[#allocation8 + $0xb8] sm:$0xff]
    %v140 = vld [vmem:[#allocation8 + $0xc0] sm:$0xff]
    %v141 = vld [vmem:[#allocation8 + $0xc8] sm:$0xff]
    %v142 = vld [vmem:[#allocation8 + $0xd0] sm:$0xff]
    %v143 = vld [vmem:[#allocation8 + $0xd8] sm:$0xff]
    %v144 = vld [vmem:[#allocation8 + $0xe0] sm:$0xff]
    %v145 = vld [vmem:[#allocation8 + $0xe8] sm:$0xff]
    %v146 = vld [vmem:[#allocation8 + $0xf0] sm:$0xff]
    %v147 = vld [vmem:[#allocation8 + $0xf8] sm:$0xff]
    %v148 = vld [vmem:[#allocation8 + $0x100] sm:$0xff]
    %v149 = vld [vmem:[#allocation8 + $0x108] sm:$0xff]
    %v150 = vld [vmem:[#allocation8 + $0x110] sm:$0xff]
    %v151 = vld [vmem:[#allocation8 + $0x118] sm:$0xff]
    %v152 = vld [vmem:[#allocation8 + $0x120] sm:$0xff]
    %v153 = vld [vmem:[#allocation8 + $0x128] sm:$0xff]
    %v154 = vld [vmem:[#allocation8 + $0x130] sm:$0xff]
    %v155 = vld [vmem:[#allocation8 + $0x138] sm:$0xff]
    %v156 = vld [vmem:[#allocation8 + $0x140] sm:$0xff]
    %v157 = vld [vmem:[#allocation8 + $0x148] sm:$0xff]
    %v158 = vld [vmem:[#allocation8 + $0x150] sm:$0xff]
    %v159 = vld [vmem:[#allocation8 + $0x158] sm:$0xff]
    %v160 = vld [vmem:[#allocation8 + $0x160] sm:$0xff]
    %v161 = vld [vmem:[#allocation8 + $0x168] sm:$0xff]
    %v162 = vld [vmem:[#allocation8 + $0x170] sm:$0xff]
    %v163 = vld [vmem:[#allocation8 + $0x178] sm:$0xff]
    %v164 = vld [vmem:[#allocation8 + $0x180] sm:$0xff]
    %v165 = vld [vmem:[#allocation8 + $0x188] sm:$0xff]
    %v166 = vld [vmem:[#allocation8 + $0x190] sm:$0xff]
    %v167 = vld [vmem:[#allocation8 + $0x198] sm:$0xff]
    %v168 = vld [vmem:[#allocation8 + $0x1a0] sm:$0xff]
    %v169 = vld [vmem:[#allocation8 + $0x1a8] sm:$0xff]
    %v170 = vld [vmem:[#allocation8 + $0x1b0] sm:$0xff]
    %v171 = vld [vmem:[#allocation8 + $0x1b8] sm:$0xff]
    %v172 = vld [vmem:[#allocation8 + $0x1c0] sm:$0xff]
    %v173 = vld [vmem:[#allocation8 + $0x1c8] sm:$0xff]
    %v174 = vld [vmem:[#allocation8 + $0x1d0] sm:$0xff]
    %v175 = vld [vmem:[#allocation8 + $0x1d8] sm:$0xff]
    %v176 = vld [vmem:[#allocation8 + $0x1e0] sm:$0xff]
    %v177 = vld [vmem:[#allocation8 + $0x1e8] sm:$0xff]
    %v178 = vld [vmem:[#allocation8 + $0x1f0] sm:$0xff]
    %v179 = vld [vmem:[#allocation8 + $0x1f8] sm:$0xff]
    %v180 = vld [vmem:[#allocation8 + $0x200] sm:$0xff]
    %v181 = vld [vmem:[#allocation8 + $0x208] sm:$0xff]
    %v182 = vld [vmem:[#allocation8 + $0x210] sm:$0xff]
    %v183 = vld [vmem:[#allocation8 + $0x218] sm:$0xff]
    %v184 = vld [vmem:[#allocation8 + $0x220] sm:$0xff]
    %v185 = vld [vmem:[#allocation8 + $0x228] sm:$0xff]
    %v186 = vld [vmem:[#allocation8 + $0x230] sm:$0xff]
    %v187 = vld [vmem:[#allocation8 + $0x238] sm:$0xff]
    %v188 = vld [vmem:[#allocation8 + $0x240] sm:$0xff]
    %v189 = vld [vmem:[#allocation8 + $0x248] sm:$0xff]
    %v190 = vld [vmem:[#allocation8 + $0x250] sm:$0xff]
    %v191 = vld [vmem:[#allocation8 + $0x258] sm:$0xff]
    %v192 = vld [vmem:[#allocation8 + $0x260] sm:$0xff]
    %v193 = vld [vmem:[#allocation8 + $0x268] sm:$0xff]
    %v194 = vld [vmem:[#allocation8 + $0x270] sm:$0xff]
    %v195 = vld [vmem:[#allocation8 + $0x278] sm:$0xff]
    %v196 = vld [vmem:[#allocation8 + $0x280] sm:$0xff]
    %v197 = vld [vmem:[#allocation8 + $0x288] sm:$0xff]
    %v198 = vld [vmem:[#allocation8 + $0x290] sm:$0xff]
    %v199 = vld [vmem:[#allocation8 + $0x298] sm:$0xff]
    %v200 = vld [vmem:[#allocation8 + $0x2a0] sm:$0xff]
    %v201 = vld [vmem:[#allocation8 + $0x2a8] sm:$0xff]
    %v202 = vld [vmem:[#allocation8 + $0x2b0] sm:$0xff]
    %v203 = vld [vmem:[#allocation8 + $0x2b8] sm:$0xff]
    %v204 = vld [vmem:[#allocation8 + $0x2c0] sm:$0xff]
    %v205 = vld [vmem:[#allocation8 + $0x2c8] sm:$0xff]
    %v206 = vld [vmem:[#allocation8 + $0x2d0] sm:$0xff]
    %v207 = vld [vmem:[#allocation8 + $0x2d8] sm:$0xff]
    %v208 = vld [vmem:[#allocation8 + $0x2e0] sm:$0xff]
    %v209 = vld [vmem:[#allocation8 + $0x2e8] sm:$0xff]
    %v210 = vld [vmem:[#allocation8 + $0x2f0] sm:$0xff]
    %v211 = vld [vmem:[#allocation8 + $0x2f8] sm:$0xff]
    %v212 = vld [vmem:[#allocation8 + $0x300] sm:$0xff]
    %v213 = vld [vmem:[#allocation8 + $0x308] sm:$0xff]
    %v214 = vld [vmem:[#allocation8 + $0x310] sm:$0xff]
    %v215 = vld [vmem:[#allocation8 + $0x318] sm:$0xff]
    %v216 = vld [vmem:[#allocation8 + $0x320] sm:$0xff]
    %v217 = vld [vmem:[#allocation8 + $0x328] sm:$0xff]
    %v218 = vld [vmem:[#allocation8 + $0x330] sm:$0xff]
    %v219 = vld [vmem:[#allocation8 + $0x338] sm:$0xff]
    %v220 = vld [vmem:[#allocation8 + $0x340] sm:$0xff]
    %v221 = vld [vmem:[#allocation8 + $0x348] sm:$0xff]
    %v222 = vld [vmem:[#allocation8 + $0x350] sm:$0xff]
    %v223 = vld [vmem:[#allocation8 + $0x358] sm:$0xff]
    %v224 = vld [vmem:[#allocation8 + $0x360] sm:$0xff]
    %v225 = vld [vmem:[#allocation8 + $0x368] sm:$0xff]
    %v226 = vld [vmem:[#allocation8 + $0x370] sm:$0xff]
    %v227 = vld [vmem:[#allocation8 + $0x378] sm:$0xff]
    %v228 = vld [vmem:[#allocation8 + $0x380] sm:$0xff]
    %v229 = vld [vmem:[#allocation8 + $0x388] sm:$0xff]
    %v230 = vld [vmem:[#allocation8 + $0x390] sm:$0xff]
    %v231 = vld [vmem:[#allocation8 + $0x398] sm:$0xff]
    %v232 = vld [vmem:[#allocation8 + $0x3a0] sm:$0xff]
    %v233 = vld [vmem:[#allocation8 + $0x3a8] sm:$0xff]
    %v234 = vld [vmem:[#allocation8 + $0x3b0] sm:$0xff]
    %v235 = vld [vmem:[#allocation8 + $0x3b8] sm:$0xff]
    %v236 = vld [vmem:[#allocation8 + $0x3c0] sm:$0xff]
    %v237 = vld [vmem:[#allocation8 + $0x3c8] sm:$0xff]
    %v238 = vld [vmem:[#allocation8 + $0x3d0] sm:$0xff]
    %v239 = vld [vmem:[#allocation8 + $0x3d8] sm:$0xff]
    %v240 = vld [vmem:[#allocation8 + $0x3e0] sm:$0xff]
    %v241 = vld [vmem:[#allocation8 + $0x3e8] sm:$0xff]
    %v242 = vld [vmem:[#allocation8 + $0x3f0] sm:$0xff]
    %v243 = vld [vmem:[#allocation8 + $0x3f8] sm:$0xff]
    %v244 = vld [vmem:[#allocation8 + $0x400] sm:$0xff]
    %v245 = vld [vmem:[#allocation8 + $0x408] sm:$0xff]
    %v246 = vld [vmem:[#allocation8 + $0x410] sm:$0xff]
    %v247 = vld [vmem:[#allocation8 + $0x418] sm:$0xff]
    %v248 = vld [vmem:[#allocation8 + $0x420] sm:$0xff]
    %v249 = vld [vmem:[#allocation8 + $0x428] sm:$0xff]
    %v250 = vld [vmem:[#allocation8 + $0x430] sm:$0xff]
    %v251 = vld [vmem:[#allocation8 + $0x438] sm:$0xff]
    %v252 = vld [vmem:[#allocation8 + $0x440] sm:$0xff]
    %v253 = vld [vmem:[#allocation8 + $0x448] sm:$0xff]
    %v254 = vld [vmem:[#allocation8 + $0x450] sm:$0xff]
    %v255 = vld [vmem:[#allocation8 + $0x458] sm:$0xff]
    %v256 = vld [vmem:[#allocation8 + $0x460] sm:$0xff]
    %v257 = vld [vmem:[#allocation8 + $0x468] sm:$0xff]
    %v258 = vld [vmem:[#allocation8 + $0x470] sm:$0xff]
    %v259 = vld [vmem:[#allocation8 + $0x478] sm:$0xff]
    %v260 = vld [vmem:[#allocation8 + $0x480] sm:$0xff]
    %v261 = vld [vmem:[#allocation8 + $0x488] sm:$0xff]
    %v262 = vld [vmem:[#allocation8 + $0x490] sm:$0xff]
    %v263 = vld [vmem:[#allocation8 + $0x498] sm:$0xff]
    %v264 = vld [vmem:[#allocation8 + $0x4a0] sm:$0x33]
    %v265 = vld [vmem:[#allocation8 + $0x4a8] sm:$0x33]
    %v266 = vld [vmem:[#allocation8 + $0x4b0] sm:$0x33]
    %v267 = vld [vmem:[#allocation8 + $0x4b8] sm:$0x33]
    %v268 = vld [vmem:[#allocation5] sm:$0xff]
    %v269 = vld [vmem:[#allocation5 + $0x8] sm:$0xf]
    %v270 = vld [vmem:[#allocation5 + $0xc] sm:$0xff]
    %v271 = vld [vmem:[#allocation5 + $0x14] sm:$0xf]
    %v272 = vld [vmem:[#allocation5 + $0x18] sm:$0xff]
    %v273 = vld [vmem:[#allocation5 + $0x20] sm:$0xf]
    %v274 = vld [vmem:[#allocation10] sm:$0xff]
    %v275 = vld [vmem:[#allocation10 + $0x8] sm:$0xff]
    %v276 = vld [vmem:[#allocation10 + $0x10] sm:$0xff]
    %v277 = vld [vmem:[#allocation10 + $0x18] sm:$0xff]
    %v278 = vld [vmem:[#allocation10 + $0x20] sm:$0xff]
    %v279 = vld [vmem:[#allocation10 + $0x28] sm:$0xff]
    %v280 = vld [vmem:[#allocation10 + $0x30] sm:$0xff]
    %v281 = vld [vmem:[#allocation10 + $0x38] sm:$0xff]
    %v282 = vld [vmem:[#allocation10 + $0x40] sm:$0xff]
    %v283 = vld [vmem:[#allocation10 + $0x48] sm:$0xff]
    %v284 = vld [vmem:[#allocation10 + $0x50] sm:$0xff]
    %v285 = vld [vmem:[#allocation10 + $0x58] sm:$0xff]
    %v286 = vld [vmem:[#allocation10 + $0x60] sm:$0xff]
    %v287 = vld [vmem:[#allocation10 + $0x68] sm:$0xff]
    %v288 = vld [vmem:[#allocation10 + $0x70] sm:$0xff]
    %v289 = vld [vmem:[#allocation10 + $0x78] sm:$0xff]
    %v290 = vld [vmem:[#allocation10 + $0x80] sm:$0xff]
    %v291 = vld [vmem:[#allocation10 + $0x88] sm:$0xff]
    %v292 = vld [vmem:[#allocation10 + $0x90] sm:$0xff]
    %v293 = vld [vmem:[#allocation10 + $0x98] sm:$0xff]
    %v294 = vld [vmem:[#allocation10 + $0xa0] sm:$0xff]
    %v295 = vld [vmem:[#allocation10 + $0xa8] sm:$0xff]
    %v296 = vld [vmem:[#allocation10 + $0xb0] sm:$0xff]
    %v297 = vld [vmem:[#allocation10 + $0xb8] sm:$0xff]
    %v298 = vld [vmem:[#allocation10 + $0xc0] sm:$0xff]
    %v299 = vld [vmem:[#allocation10 + $0xc8] sm:$0xff]
    %v300 = vld [vmem:[#allocation10 + $0xd0] sm:$0xff]
    %v301 = vld [vmem:[#allocation10 + $0xd8] sm:$0xff]
    %v302 = vld [vmem:[#allocation10 + $0xe0] sm:$0xff]
    %v303 = vld [vmem:[#allocation10 + $0xe8] sm:$0xff]
    %v304 = vld [vmem:[#allocation10 + $0xf0] sm:$0xff]
    %v305 = vld [vmem:[#allocation10 + $0xf8] sm:$0xff]
    %v306 = vld [vmem:[#allocation10 + $0x100] sm:$0xff]
    %v307 = vld [vmem:[#allocation10 + $0x108] sm:$0xff]
    %v308 = vld [vmem:[#allocation10 + $0x110] sm:$0xff]
    %v309 = vld [vmem:[#allocation10 + $0x118] sm:$0xff]
    %v310 = vld [vmem:[#allocation10 + $0x120] sm:$0xff]
    %v311 = vld [vmem:[#allocation10 + $0x128] sm:$0xff]
    %v312 = vld [vmem:[#allocation10 + $0x130] sm:$0xff]
    %v313 = vld [vmem:[#allocation10 + $0x138] sm:$0xff]
    %v314 = vld [vmem:[#allocation10 + $0x140] sm:$0xff]
    %v315 = vld [vmem:[#allocation10 + $0x148] sm:$0xff]
    %v316 = vld [vmem:[#allocation10 + $0x150] sm:$0xff]
    %v317 = vld [vmem:[#allocation10 + $0x158] sm:$0xff]
    %v318 = vld [vmem:[#allocation10 + $0x160] sm:$0xff]
    %v319 = vld [vmem:[#allocation10 + $0x168] sm:$0xff]
    %v320 = vld [vmem:[#allocation10 + $0x170] sm:$0xff]
    %v321 = vld [vmem:[#allocation10 + $0x178] sm:$0xff]
    %v322 = vld [vmem:[#allocation10 + $0x180] sm:$0xff]
    %v323 = vld [vmem:[#allocation10 + $0x188] sm:$0xff]
    %v324 = vld [vmem:[#allocation10 + $0x190] sm:$0xff]
    %v325 = vld [vmem:[#allocation10 + $0x198] sm:$0xff]
    %v326 = vld [vmem:[#allocation10 + $0x1a0] sm:$0xff]
    %v327 = vld [vmem:[#allocation10 + $0x1a8] sm:$0xff]
    %v328 = vld [vmem:[#allocation10 + $0x1b0] sm:$0xff]
    %v329 = vld [vmem:[#allocation10 + $0x1b8] sm:$0xff]
    %v330 = vld [vmem:[#allocation10 + $0x1c0] sm:$0xff]
    %v331 = vld [vmem:[#allocation10 + $0x1c8] sm:$0xff]
    %v332 = vld [vmem:[#allocation10 + $0x1d0] sm:$0xff]
    %v333 = vld [vmem:[#allocation10 + $0x1d8] sm:$0xff]
    %v334 = vld [vmem:[#allocation10 + $0x1e0] sm:$0xff]
    %v335 = vld [vmem:[#allocation10 + $0x1e8] sm:$0xff]
    %v336 = vld [vmem:[#allocation10 + $0x1f0] sm:$0xff]
    %v337 = vld [vmem:[#allocation10 + $0x1f8] sm:$0xff]
    %v338 = vld [vmem:[#allocation10 + $0x200] sm:$0xff]
    %v339 = vld [vmem:[#allocation10 + $0x208] sm:$0xff]
    %v340 = vld [vmem:[#allocation10 + $0x210] sm:$0xff]
    %v341 = vld [vmem:[#allocation10 + $0x218] sm:$0xff]
    %v342 = vld [vmem:[#allocation10 + $0x220] sm:$0xff]
    %v343 = vld [vmem:[#allocation10 + $0x228] sm:$0xff]
    %v344 = vld [vmem:[#allocation10 + $0x230] sm:$0xff]
    %v345 = vld [vmem:[#allocation10 + $0x238] sm:$0xff]
    %v346 = vld [vmem:[#allocation10 + $0x240] sm:$0xff]
    %v347 = vld [vmem:[#allocation10 + $0x248] sm:$0xff]
    %v348 = vld [vmem:[#allocation10 + $0x250] sm:$0xff]
    %v349 = vld [vmem:[#allocation10 + $0x258] sm:$0xff]
    %v350 = vld [vmem:[#allocation10 + $0x260] sm:$0xff]
    %v351 = vld [vmem:[#allocation10 + $0x268] sm:$0xff]
    %v352 = vld [vmem:[#allocation10 + $0x270] sm:$0xff]
    %v353 = vld [vmem:[#allocation10 + $0x278] sm:$0xff]
    %v354 = vld [vmem:[#allocation10 + $0x280] sm:$0xff]
    %v355 = vld [vmem:[#allocation10 + $0x288] sm:$0xff]
    %v356 = vld [vmem:[#allocation10 + $0x290] sm:$0xff]
    %v357 = vld [vmem:[#allocation10 + $0x298] sm:$0xff]
    %v358 = vld [vmem:[#allocation10 + $0x2a0] sm:$0xff]
    %v359 = vld [vmem:[#allocation10 + $0x2a8] sm:$0xff]
    %v360 = vld [vmem:[#allocation10 + $0x2b0] sm:$0xff]
    %v361 = vld [vmem:[#allocation10 + $0x2b8] sm:$0xff]
    %v362 = vld [vmem:[#allocation10 + $0x2c0] sm:$0xff]
    %v363 = vld [vmem:[#allocation10 + $0x2c8] sm:$0xff]
    %v364 = vld [vmem:[#allocation10 + $0x2d0] sm:$0xff]
    %v365 = vld [vmem:[#allocation10 + $0x2d8] sm:$0xff]
    %v366 = vld [vmem:[#allocation10 + $0x2e0] sm:$0xff]
    %v367 = vld [vmem:[#allocation10 + $0x2e8] sm:$0xff]
    %v368 = vld [vmem:[#allocation10 + $0x2f0] sm:$0xff]
    %v369 = vld [vmem:[#allocation10 + $0x2f8] sm:$0xff]
    %v370 = vld [vmem:[#allocation10 + $0x300] sm:$0xff]
    %v371 = vld [vmem:[#allocation10 + $0x308] sm:$0xff]
    %v372 = vld [vmem:[#allocation10 + $0x310] sm:$0xff]
    %v373 = vld [vmem:[#allocation10 + $0x318] sm:$0xff]
    %v374 = vld [vmem:[#allocation10 + $0x320] sm:$0xff]
    %v375 = vld [vmem:[#allocation10 + $0x328] sm:$0xff]
    %v376 = vld [vmem:[#allocation10 + $0x330] sm:$0xff]
    %v377 = vld [vmem:[#allocation10 + $0x338] sm:$0xff]
    %v378 = vld [vmem:[#allocation10 + $0x340] sm:$0xff]
    %v379 = vld [vmem:[#allocation10 + $0x348] sm:$0xff]
    %v380 = vld [vmem:[#allocation10 + $0x350] sm:$0xff]
    %v381 = vld [vmem:[#allocation10 + $0x358] sm:$0xff]
    %v382 = vld [vmem:[#allocation10 + $0x360] sm:$0xff]
    %v383 = vld [vmem:[#allocation10 + $0x368] sm:$0xff]
    %v384 = vld [vmem:[#allocation10 + $0x370] sm:$0xff]
    %v385 = vld [vmem:[#allocation10 + $0x378] sm:$0xff]
    %v386 = vld [vmem:[#allocation10 + $0x380] sm:$0xff]
    %v387 = vld [vmem:[#allocation10 + $0x388] sm:$0xff]
    %v388 = vld [vmem:[#allocation10 + $0x390] sm:$0xff]
    %v389 = vld [vmem:[#allocation10 + $0x398] sm:$0xff]
    %v390 = vld [vmem:[#allocation10 + $0x3a0] sm:$0xff]
    %v391 = vld [vmem:[#allocation10 + $0x3a8] sm:$0xff]
    %v392 = vld [vmem:[#allocation10 + $0x3b0] sm:$0xff]
    %v393 = vld [vmem:[#allocation10 + $0x3b8] sm:$0xff]
    %v394 = vld [vmem:[#allocation10 + $0x3c0] sm:$0xff]
    %v395 = vld [vmem:[#allocation10 + $0x3c8] sm:$0xff]
    %v396 = vld [vmem:[#allocation10 + $0x3d0] sm:$0xff]
    %v397 = vld [vmem:[#allocation10 + $0x3d8] sm:$0xff]
    %v398 = vld [vmem:[#allocation10 + $0x3e0] sm:$0xff]
    %v399 = vld [vmem:[#allocation10 + $0x3e8] sm:$0xff]
    %v400 = vld [vmem:[#allocation10 + $0x3f0] sm:$0xff]
    %v401 = vld [vmem:[#allocation10 + $0x3f8] sm:$0xff]
    %v402 = vld [vmem:[#allocation10 + $0x400] sm:$0xff]
    %v403 = vld [vmem:[#allocation10 + $0x408] sm:$0xff]
    %v404 = vld [vmem:[#allocation10 + $0x410] sm:$0xff]
    %v405 = vld [vmem:[#allocation10 + $0x418] sm:$0xff]
    %v406 = vld [vmem:[#allocation10 + $0x420] sm:$0xff]
    %v407 = vld [vmem:[#allocation10 + $0x428] sm:$0xff]
    %v408 = vld [vmem:[#allocation10 + $0x430] sm:$0xff]
    %v409 = vld [vmem:[#allocation10 + $0x438] sm:$0xff]
    %v410 = vld [vmem:[#allocation10 + $0x440] sm:$0xff]
    %v411 = vld [vmem:[#allocation10 + $0x448] sm:$0xff]
    %v412 = vld [vmem:[#allocation10 + $0x450] sm:$0xff]
    %v413 = vld [vmem:[#allocation10 + $0x458] sm:$0xff]
    %v414 = vld [vmem:[#allocation10 + $0x460] sm:$0xff]
    %v415 = vld [vmem:[#allocation10 + $0x468] sm:$0xff]
    %v416 = vld [vmem:[#allocation10 + $0x470] sm:$0xff]
    %v417 = vld [vmem:[#allocation10 + $0x478] sm:$0xff]
    %v418 = vld [vmem:[#allocation10 + $0x480] sm:$0xff]
    %v419 = vld [vmem:[#allocation10 + $0x488] sm:$0xff]
    %v420 = vld [vmem:[#allocation10 + $0x490] sm:$0xff]
    %v421 = vld [vmem:[#allocation10 + $0x498] sm:$0xff]
    %v422 = vld [vmem:[#allocation10 + $0x4a0] sm:$0x33]
    %v423 = vld [vmem:[#allocation10 + $0x4a8] sm:$0x33]
    %v424 = vld [vmem:[#allocation10 + $0x4b0] sm:$0x33]
    %v425 = vld [vmem:[#allocation10 + $0x4b8] sm:$0x33]
    %v432 = vunpack.c.l.b16 %v268
    %v433 = vunpack.c.h.b16 %v268
    %v434 = vunpack.c.l.b16 %v269
    %v435 = vunpack.c.l.b16 %v270
    %v436 = vunpack.c.h.b16 %v270
    %v437 = vunpack.c.l.b16 %v271
    %v438 = vunpack.c.l.b16 %v272
    %v439 = vunpack.c.h.b16 %v272
    %v440 = vunpack.c.l.b16 %v273
    %v441 = vpack.c.b16 %v435, %v432
    %v442 = vpack.c.b16 %v436, %v433
    %v443 = vpack.c.b16 %v437, %v434
    %v444 = vpack.c.b16 %v438, %v438
    %v445 = vpack.c.b16 %v439, %v439
    %v446 = vpack.c.b16 %v440, %v440
    %v603 = vunpack.c.l.b16 %v274
    %v604 = vunpack.c.h.b16 %v274
    %v605 = vunpack.c.l.b16 %v275
    %v606 = vunpack.c.h.b16 %v275
    %v607 = vunpack.c.l.b16 %v276
    %v608 = vunpack.c.h.b16 %v276
    %v609 = vunpack.c.l.b16 %v277
    %v610 = vunpack.c.h.b16 %v277
    %v611 = vunpack.c.l.b16 %v278
    %v612 = vunpack.c.h.b16 %v278
    %v613 = vunpack.c.l.b16 %v279
    %v614 = vunpack.c.h.b16 %v279
    %v615 = vunpack.c.l.b16 %v280
    %v616 = vunpack.c.h.b16 %v280
    %v617 = vunpack.c.l.b16 %v281
    %v618 = vunpack.c.h.b16 %v281
    %v619 = vunpack.c.l.b16 %v282
    %v620 = vunpack.c.h.b16 %v282
    %v621 = vunpack.c.l.b16 %v283
    %v622 = vunpack.c.h.b16 %v283
    %v623 = vunpack.c.l.b16 %v284
    %v624 = vunpack.c.h.b16 %v284
    %v625 = vunpack.c.l.b16 %v285
    %v626 = vunpack.c.h.b16 %v285
    %v627 = vunpack.c.l.b16 %v286
    %v628 = vunpack.c.h.b16 %v286
    %v629 = vunpack.c.l.b16 %v287
    %v630 = vunpack.c.h.b16 %v287
    %v631 = vunpack.c.l.b16 %v288
    %v632 = vunpack.c.h.b16 %v288
    %v633 = vunpack.c.l.b16 %v289
    %v634 = vunpack.c.h.b16 %v289
    %v635 = vunpack.c.l.b16 %v290
    %v636 = vunpack.c.h.b16 %v290
    %v637 = vunpack.c.l.b16 %v291
    %v638 = vunpack.c.h.b16 %v291
    %v639 = vunpack.c.l.b16 %v292
    %v640 = vunpack.c.h.b16 %v292
    %v641 = vunpack.c.l.b16 %v293
    %v642 = vunpack.c.h.b16 %v293
    %v643 = vunpack.c.l.b16 %v294
    %v644 = vunpack.c.h.b16 %v294
    %v645 = vunpack.c.l.b16 %v295
    %v646 = vunpack.c.h.b16 %v295
    %v647 = vunpack.c.l.b16 %v296
    %v648 = vunpack.c.h.b16 %v296
    %v649 = vunpack.c.l.b16 %v297
    %v650 = vunpack.c.h.b16 %v297
    %v651 = vunpack.c.l.b16 %v298
    %v652 = vunpack.c.h.b16 %v298
    %v653 = vunpack.c.l.b16 %v299
    %v654 = vunpack.c.h.b16 %v299
    %v655 = vunpack.c.l.b16 %v300
    %v656 = vunpack.c.h.b16 %v300
    %v657 = vunpack.c.l.b16 %v301
    %v658 = vunpack.c.h.b16 %v301
    %v659 = vunpack.c.l.b16 %v302
    %v660 = vunpack.c.h.b16 %v302
    %v661 = vunpack.c.l.b16 %v303
    %v662 = vunpack.c.h.b16 %v303
    %v663 = vunpack.c.l.b16 %v304
    %v664 = vunpack.c.h.b16 %v304
    %v665 = vunpack.c.l.b16 %v305
    %v666 = vunpack.c.h.b16 %v305
    %v667 = vunpack.c.l.b16 %v306
    %v668 = vunpack.c.h.b16 %v306
    %v669 = vunpack.c.l.b16 %v307
    %v670 = vunpack.c.h.b16 %v307
    %v671 = vunpack.c.l.b16 %v308
    %v672 = vunpack.c.h.b16 %v308
    %v673 = vunpack.c.l.b16 %v309
    %v674 = vunpack.c.h.b16 %v309
    %v675 = vunpack.c.l.b16 %v310
    %v676 = vunpack.c.h.b16 %v310
    %v677 = vunpack.c.l.b16 %v311
    %v678 = vunpack.c.h.b16 %v311
    %v679 = vunpack.c.l.b16 %v312
    %v680 = vunpack.c.h.b16 %v312
    %v681 = vunpack.c.l.b16 %v313
    %v682 = vunpack.c.h.b16 %v313
    %v683 = vunpack.c.l.b16 %v314
    %v684 = vunpack.c.h.b16 %v314
    %v685 = vunpack.c.l.b16 %v315
    %v686 = vunpack.c.h.b16 %v315
    %v687 = vunpack.c.l.b16 %v316
    %v688 = vunpack.c.h.b16 %v316
    %v689 = vunpack.c.l.b16 %v317
    %v690 = vunpack.c.h.b16 %v317
    %v691 = vunpack.c.l.b16 %v318
    %v692 = vunpack.c.h.b16 %v318
    %v693 = vunpack.c.l.b16 %v319
    %v694 = vunpack.c.h.b16 %v319
    %v695 = vunpack.c.l.b16 %v320
    %v696 = vunpack.c.h.b16 %v320
    %v697 = vunpack.c.l.b16 %v321
    %v698 = vunpack.c.h.b16 %v321
    %v699 = vunpack.c.l.b16 %v322
    %v700 = vunpack.c.h.b16 %v322
    %v701 = vunpack.c.l.b16 %v323
    %v702 = vunpack.c.h.b16 %v323
    %v703 = vunpack.c.l.b16 %v324
    %v704 = vunpack.c.h.b16 %v324
    %v705 = vunpack.c.l.b16 %v325
    %v706 = vunpack.c.h.b16 %v325
    %v707 = vunpack.c.l.b16 %v326
    %v708 = vunpack.c.h.b16 %v326
    %v709 = vunpack.c.l.b16 %v327
    %v710 = vunpack.c.h.b16 %v327
    %v711 = vunpack.c.l.b16 %v328
    %v712 = vunpack.c.h.b16 %v328
    %v713 = vunpack.c.l.b16 %v329
    %v714 = vunpack.c.h.b16 %v329
    %v715 = vunpack.c.l.b16 %v330
    %v716 = vunpack.c.h.b16 %v330
    %v717 = vunpack.c.l.b16 %v331
    %v718 = vunpack.c.h.b16 %v331
    %v719 = vunpack.c.l.b16 %v332
    %v720 = vunpack.c.h.b16 %v332
    %v721 = vunpack.c.l.b16 %v333
    %v722 = vunpack.c.h.b16 %v333
    %v723 = vunpack.c.l.b16 %v334
    %v724 = vunpack.c.h.b16 %v334
    %v725 = vunpack.c.l.b16 %v335
    %v726 = vunpack.c.h.b16 %v335
    %v727 = vunpack.c.l.b16 %v336
    %v728 = vunpack.c.h.b16 %v336
    %v729 = vunpack.c.l.b16 %v337
    %v730 = vunpack.c.h.b16 %v337
    %v731 = vunpack.c.l.b16 %v338
    %v732 = vunpack.c.h.b16 %v338
    %v733 = vunpack.c.l.b16 %v339
    %v734 = vunpack.c.h.b16 %v339
    %v735 = vunpack.c.l.b16 %v340
    %v736 = vunpack.c.h.b16 %v340
    %v737 = vunpack.c.l.b16 %v341
    %v738 = vunpack.c.h.b16 %v341
    %v739 = vunpack.c.l.b16 %v342
    %v740 = vunpack.c.h.b16 %v342
    %v741 = vunpack.c.l.b16 %v343
    %v742 = vunpack.c.h.b16 %v343
    %v743 = vunpack.c.l.b16 %v344
    %v744 = vunpack.c.h.b16 %v344
    %v745 = vunpack.c.l.b16 %v345
    %v746 = vunpack.c.h.b16 %v345
    %v747 = vunpack.c.l.b16 %v346
    %v748 = vunpack.c.h.b16 %v346
    %v749 = vunpack.c.l.b16 %v347
    %v750 = vunpack.c.h.b16 %v347
    %v751 = vunpack.c.l.b16 %v348
    %v752 = vunpack.c.h.b16 %v348
    %v753 = vunpack.c.l.b16 %v349
    %v754 = vunpack.c.h.b16 %v349
    %v755 = vunpack.c.l.b16 %v350
    %v756 = vunpack.c.h.b16 %v350
    %v757 = vunpack.c.l.b16 %v351
    %v758 = vunpack.c.h.b16 %v351
    %v759 = vunpack.c.l.b16 %v352
    %v760 = vunpack.c.h.b16 %v352
    %v761 = vunpack.c.l.b16 %v353
    %v762 = vunpack.c.h.b16 %v353
    %v763 = vunpack.c.l.b16 %v354
    %v764 = vunpack.c.h.b16 %v354
    %v765 = vunpack.c.l.b16 %v355
    %v766 = vunpack.c.h.b16 %v355
    %v767 = vunpack.c.l.b16 %v356
    %v768 = vunpack.c.h.b16 %v356
    %v769 = vunpack.c.l.b16 %v357
    %v770 = vunpack.c.h.b16 %v357
    %v771 = vunpack.c.l.b16 %v358
    %v772 = vunpack.c.h.b16 %v358
    %v773 = vunpack.c.l.b16 %v359
    %v774 = vunpack.c.h.b16 %v359
    %v775 = vunpack.c.l.b16 %v360
    %v776 = vunpack.c.h.b16 %v360
    %v777 = vunpack.c.l.b16 %v361
    %v778 = vunpack.c.h.b16 %v361
    %v779 = vunpack.c.l.b16 %v362
    %v780 = vunpack.c.h.b16 %v362
    %v781 = vunpack.c.l.b16 %v363
    %v782 = vunpack.c.h.b16 %v363
    %v783 = vunpack.c.l.b16 %v364
    %v784 = vunpack.c.h.b16 %v364
    %v785 = vunpack.c.l.b16 %v365
    %v786 = vunpack.c.h.b16 %v365
    %v787 = vunpack.c.l.b16 %v366
    %v788 = vunpack.c.h.b16 %v366
    %v789 = vunpack.c.l.b16 %v367
    %v790 = vunpack.c.h.b16 %v367
    %v791 = vunpack.c.l.b16 %v368
    %v792 = vunpack.c.h.b16 %v368
    %v793 = vunpack.c.l.b16 %v369
    %v794 = vunpack.c.h.b16 %v369
    %v795 = vunpack.c.l.b16 %v370
    %v796 = vunpack.c.h.b16 %v370
    %v797 = vunpack.c.l.b16 %v371
    %v798 = vunpack.c.h.b16 %v371
    %v799 = vunpack.c.l.b16 %v372
    %v800 = vunpack.c.h.b16 %v372
    %v801 = vunpack.c.l.b16 %v373
    %v802 = vunpack.c.h.b16 %v373
    %v803 = vunpack.c.l.b16 %v374
    %v804 = vunpack.c.h.b16 %v374
    %v805 = vunpack.c.l.b16 %v375
    %v806 = vunpack.c.h.b16 %v375
    %v807 = vunpack.c.l.b16 %v376
    %v808 = vunpack.c.h.b16 %v376
    %v809 = vunpack.c.l.b16 %v377
    %v810 = vunpack.c.h.b16 %v377
    %v811 = vunpack.c.l.b16 %v378
    %v812 = vunpack.c.h.b16 %v378
    %v813 = vunpack.c.l.b16 %v379
    %v814 = vunpack.c.h.b16 %v379
    %v815 = vunpack.c.l.b16 %v380
    %v816 = vunpack.c.h.b16 %v380
    %v817 = vunpack.c.l.b16 %v381
    %v818 = vunpack.c.h.b16 %v381
    %v819 = vunpack.c.l.b16 %v382
    %v820 = vunpack.c.h.b16 %v382
    %v821 = vunpack.c.l.b16 %v383
    %v822 = vunpack.c.h.b16 %v383
    %v823 = vunpack.c.l.b16 %v384
    %v824 = vunpack.c.h.b16 %v384
    %v825 = vunpack.c.l.b16 %v385
    %v826 = vunpack.c.h.b16 %v385
    %v827 = vunpack.c.l.b16 %v386
    %v828 = vunpack.c.h.b16 %v386
    %v829 = vunpack.c.l.b16 %v387
    %v830 = vunpack.c.h.b16 %v387
    %v831 = vunpack.c.l.b16 %v388
    %v832 = vunpack.c.h.b16 %v388
    %v833 = vunpack.c.l.b16 %v389
    %v834 = vunpack.c.h.b16 %v389
    %v835 = vunpack.c.l.b16 %v390
    %v836 = vunpack.c.h.b16 %v390
    %v837 = vunpack.c.l.b16 %v391
    %v838 = vunpack.c.h.b16 %v391
    %v839 = vunpack.c.l.b16 %v392
    %v840 = vunpack.c.h.b16 %v392
    %v841 = vunpack.c.l.b16 %v393
    %v842 = vunpack.c.h.b16 %v393
    %v843 = vunpack.c.l.b16 %v394
    %v844 = vunpack.c.h.b16 %v394
    %v845 = vunpack.c.l.b16 %v395
    %v846 = vunpack.c.h.b16 %v395
    %v847 = vunpack.c.l.b16 %v396
    %v848 = vunpack.c.h.b16 %v396
    %v849 = vunpack.c.l.b16 %v397
    %v850 = vunpack.c.h.b16 %v397
    %v851 = vunpack.c.l.b16 %v398
    %v852 = vunpack.c.h.b16 %v398
    %v853 = vunpack.c.l.b16 %v399
    %v854 = vunpack.c.h.b16 %v399
    %v855 = vunpack.c.l.b16 %v400
    %v856 = vunpack.c.h.b16 %v400
    %v857 = vunpack.c.l.b16 %v401
    %v858 = vunpack.c.h.b16 %v401
    %v859 = vunpack.c.l.b16 %v402
    %v860 = vunpack.c.h.b16 %v402
    %v861 = vunpack.c.l.b16 %v403
    %v862 = vunpack.c.h.b16 %v403
    %v863 = vunpack.c.l.b16 %v404
    %v864 = vunpack.c.h.b16 %v404
    %v865 = vunpack.c.l.b16 %v405
    %v866 = vunpack.c.h.b16 %v405
    %v867 = vunpack.c.l.b16 %v406
    %v868 = vunpack.c.h.b16 %v406
    %v869 = vunpack.c.l.b16 %v407
    %v870 = vunpack.c.h.b16 %v407
    %v871 = vunpack.c.l.b16 %v408
    %v872 = vunpack.c.h.b16 %v408
    %v873 = vunpack.c.l.b16 %v409
    %v874 = vunpack.c.h.b16 %v409
    %v875 = vunpack.c.l.b16 %v410
    %v876 = vunpack.c.h.b16 %v410
    %v877 = vunpack.c.l.b16 %v411
    %v878 = vunpack.c.h.b16 %v411
    %v879 = vunpack.c.l.b16 %v412
    %v880 = vunpack.c.h.b16 %v412
    %v881 = vunpack.c.l.b16 %v413
    %v882 = vunpack.c.h.b16 %v413
    %v883 = vunpack.c.l.b16 %v414
    %v884 = vunpack.c.h.b16 %v414
    %v885 = vunpack.c.l.b16 %v415
    %v886 = vunpack.c.h.b16 %v415
    %v887 = vunpack.c.l.b16 %v416
    %v888 = vunpack.c.h.b16 %v416
    %v889 = vunpack.c.l.b16 %v417
    %v890 = vunpack.c.h.b16 %v417
    %v891 = vunpack.c.l.b16 %v418
    %v892 = vunpack.c.h.b16 %v418
    %v893 = vunpack.c.l.b16 %v419
    %v894 = vunpack.c.h.b16 %v419
    %v895 = vunpack.c.l.b16 %v420
    %v896 = vunpack.c.h.b16 %v420
    %v897 = vunpack.c.l.b16 %v421
    %v898 = vunpack.c.h.b16 %v421
    %v899 = vunpack.c.l.b16 %v422
    %v900 = vunpack.c.h.b16 %v422
    %v901 = vunpack.c.l.b16 %v423
    %v902 = vunpack.c.h.b16 %v423
    %v903 = vunpack.c.l.b16 %v424
    %v904 = vunpack.c.h.b16 %v424
    %v905 = vunpack.c.l.b16 %v425
    %v906 = vunpack.c.h.b16 %v425
    %v907 = vpack.c.b16 %v611, %v603
    %v908 = vpack.c.b16 %v612, %v604
    %v909 = vpack.c.b16 %v613, %v605
    %v910 = vpack.c.b16 %v614, %v606
    %v911 = vpack.c.b16 %v615, %v607
    %v912 = vpack.c.b16 %v616, %v608
    %v913 = vpack.c.b16 %v617, %v609
    %v914 = vpack.c.b16 %v618, %v610
    %v915 = vpack.c.b16 %v627, %v619
    %v916 = vpack.c.b16 %v628, %v620
    %v917 = vpack.c.b16 %v629, %v621
    %v918 = vpack.c.b16 %v630, %v622
    %v919 = vpack.c.b16 %v631, %v623
    %v920 = vpack.c.b16 %v632, %v624
    %v921 = vpack.c.b16 %v633, %v625
    %v922 = vpack.c.b16 %v634, %v626
    %v923 = vpack.c.b16 %v643, %v635
    %v924 = vpack.c.b16 %v644, %v636
    %v925 = vpack.c.b16 %v645, %v637
    %v926 = vpack.c.b16 %v646, %v638
    %v927 = vpack.c.b16 %v647, %v639
    %v928 = vpack.c.b16 %v648, %v640
    %v929 = vpack.c.b16 %v649, %v641
    %v930 = vpack.c.b16 %v650, %v642
    %v931 = vpack.c.b16 %v659, %v651
    %v932 = vpack.c.b16 %v660, %v652
    %v933 = vpack.c.b16 %v661, %v653
    %v934 = vpack.c.b16 %v662, %v654
    %v935 = vpack.c.b16 %v663, %v655
    %v936 = vpack.c.b16 %v664, %v656
    %v937 = vpack.c.b16 %v665, %v657
    %v938 = vpack.c.b16 %v666, %v658
    %v939 = vpack.c.b16 %v675, %v667
    %v940 = vpack.c.b16 %v676, %v668
    %v941 = vpack.c.b16 %v677, %v669
    %v942 = vpack.c.b16 %v678, %v670
    %v943 = vpack.c.b16 %v679, %v671
    %v944 = vpack.c.b16 %v680, %v672
    %v945 = vpack.c.b16 %v681, %v673
    %v946 = vpack.c.b16 %v682, %v674
    %v947 = vpack.c.b16 %v691, %v683
    %v948 = vpack.c.b16 %v692, %v684
    %v949 = vpack.c.b16 %v693, %v685
    %v950 = vpack.c.b16 %v694, %v686
    %v951 = vpack.c.b16 %v695, %v687
    %v952 = vpack.c.b16 %v696, %v688
    %v953 = vpack.c.b16 %v697, %v689
    %v954 = vpack.c.b16 %v698, %v690
    %v955 = vpack.c.b16 %v707, %v699
    %v956 = vpack.c.b16 %v708, %v700
    %v957 = vpack.c.b16 %v709, %v701
    %v958 = vpack.c.b16 %v710, %v702
    %v959 = vpack.c.b16 %v711, %v703
    %v960 = vpack.c.b16 %v712, %v704
    %v961 = vpack.c.b16 %v713, %v705
    %v962 = vpack.c.b16 %v714, %v706
    %v963 = vpack.c.b16 %v723, %v715
    %v964 = vpack.c.b16 %v724, %v716
    %v965 = vpack.c.b16 %v725, %v717
    %v966 = vpack.c.b16 %v726, %v718
    %v967 = vpack.c.b16 %v727, %v719
    %v968 = vpack.c.b16 %v728, %v720
    %v969 = vpack.c.b16 %v729, %v721
    %v970 = vpack.c.b16 %v730, %v722
    %v971 = vpack.c.b16 %v739, %v731
    %v972 = vpack.c.b16 %v740, %v732
    %v973 = vpack.c.b16 %v741, %v733
    %v974 = vpack.c.b16 %v742, %v734
    %v975 = vpack.c.b16 %v743, %v735
    %v976 = vpack.c.b16 %v744, %v736
    %v977 = vpack.c.b16 %v745, %v737
    %v978 = vpack.c.b16 %v746, %v738
    %v979 = vpack.c.b16 %v755, %v747
    %v980 = vpack.c.b16 %v756, %v748
    %v981 = vpack.c.b16 %v757, %v749
    %v982 = vpack.c.b16 %v758, %v750
    %v983 = vpack.c.b16 %v759, %v751
    %v984 = vpack.c.b16 %v760, %v752
    %v985 = vpack.c.b16 %v761, %v753
    %v986 = vpack.c.b16 %v762, %v754
    %v987 = vpack.c.b16 %v771, %v763
    %v988 = vpack.c.b16 %v772, %v764
    %v989 = vpack.c.b16 %v773, %v765
    %v990 = vpack.c.b16 %v774, %v766
    %v991 = vpack.c.b16 %v775, %v767
    %v992 = vpack.c.b16 %v776, %v768
    %v993 = vpack.c.b16 %v777, %v769
    %v994 = vpack.c.b16 %v778, %v770
    %v995 = vpack.c.b16 %v787, %v779
    %v996 = vpack.c.b16 %v788, %v780
    %v997 = vpack.c.b16 %v789, %v781
    %v998 = vpack.c.b16 %v790, %v782
    %v999 = vpack.c.b16 %v791, %v783
    %v1000 = vpack.c.b16 %v792, %v784
    %v1001 = vpack.c.b16 %v793, %v785
    %v1002 = vpack.c.b16 %v794, %v786
    %v1003 = vpack.c.b16 %v803, %v795
    %v1004 = vpack.c.b16 %v804, %v796
    %v1005 = vpack.c.b16 %v805, %v797
    %v1006 = vpack.c.b16 %v806, %v798
    %v1007 = vpack.c.b16 %v807, %v799
    %v1008 = vpack.c.b16 %v808, %v800
    %v1009 = vpack.c.b16 %v809, %v801
    %v1010 = vpack.c.b16 %v810, %v802
    %v1011 = vpack.c.b16 %v819, %v811
    %v1012 = vpack.c.b16 %v820, %v812
    %v1013 = vpack.c.b16 %v821, %v813
    %v1014 = vpack.c.b16 %v822, %v814
    %v1015 = vpack.c.b16 %v823, %v815
    %v1016 = vpack.c.b16 %v824, %v816
    %v1017 = vpack.c.b16 %v825, %v817
    %v1018 = vpack.c.b16 %v826, %v818
    %v1019 = vpack.c.b16 %v835, %v827
    %v1020 = vpack.c.b16 %v836, %v828
    %v1021 = vpack.c.b16 %v837, %v829
    %v1022 = vpack.c.b16 %v838, %v830
    %v1023 = vpack.c.b16 %v839, %v831
    %v1024 = vpack.c.b16 %v840, %v832
    %v1025 = vpack.c.b16 %v841, %v833
    %v1026 = vpack.c.b16 %v842, %v834
    %v1027 = vpack.c.b16 %v851, %v843
    %v1028 = vpack.c.b16 %v852, %v844
    %v1029 = vpack.c.b16 %v853, %v845
    %v1030 = vpack.c.b16 %v854, %v846
    %v1031 = vpack.c.b16 %v855, %v847
    %v1032 = vpack.c.b16 %v856, %v848
    %v1033 = vpack.c.b16 %v857, %v849
    %v1034 = vpack.c.b16 %v858, %v850
    %v1035 = vpack.c.b16 %v867, %v859
    %v1036 = vpack.c.b16 %v868, %v860
    %v1037 = vpack.c.b16 %v869, %v861
    %v1038 = vpack.c.b16 %v870, %v862
    %v1039 = vpack.c.b16 %v871, %v863
    %v1040 = vpack.c.b16 %v872, %v864
    %v1041 = vpack.c.b16 %v873, %v865
    %v1042 = vpack.c.b16 %v874, %v866
    %v1043 = vpack.c.b16 %v883, %v875
    %v1044 = vpack.c.b16 %v884, %v876
    %v1045 = vpack.c.b16 %v885, %v877
    %v1046 = vpack.c.b16 %v886, %v878
    %v1047 = vpack.c.b16 %v887, %v879
    %v1048 = vpack.c.b16 %v888, %v880
    %v1049 = vpack.c.b16 %v889, %v881
    %v1050 = vpack.c.b16 %v890, %v882
    %v1051 = vpack.c.b16 %v899, %v891
    %v1052 = vpack.c.b16 %v900, %v892
    %v1053 = vpack.c.b16 %v901, %v893
    %v1054 = vpack.c.b16 %v902, %v894
    %v1055 = vpack.c.b16 %v903, %v895
    %v1056 = vpack.c.b16 %v904, %v896
    %v1057 = vpack.c.b16 %v905, %v897
    %v1058 = vpack.c.b16 %v906, %v898
    %vm1203 = vcmask 359424
    %v1205 = vsel %vm1203, %v443, 0
    %v1208 = vsel %vm1203, %v446, 0
    %vm1210 = vcmask 1045504
    %v1212 = vsel %vm1210, %v1051, 0
    %v1215 = vsel %vm1210, %v1052, 0
    %v1218 = vsel %vm1210, %v1053, 0
    %v1221 = vsel %vm1210, %v1054, 0
    %v1224 = vsel %vm1210, %v1055, 0
    %v1227 = vsel %vm1210, %v1056, 0
    %v1230 = vsel %vm1210, %v1057, 0
    %v1233 = vsel %vm1210, %v1058, 0
    %1235 = vmatprep.subr.bf16.mxu0 %v908
    %1236 = vmatpush1.bf16.msra.mxu0 %v907
    %1237 = vmatprep.subr.bf16.mxu0 %v916
    %1238 = vmatpush1.bf16.msra.mxu0 %v915
    %1239 = vmatprep.subr.bf16.mxu0 %v924
    %1240 = vmatpush1.bf16.msra.mxu0 %v923
    %1241 = vmatprep.subr.bf16.mxu0 %v932
    %1242 = vmatpush1.bf16.msra.mxu0 %v931
    %1243 = vmatprep.subr.bf16.mxu0 %v940
    %1244 = vmatpush1.bf16.msra.mxu0 %v939
    %1245 = vmatprep.subr.bf16.mxu0 %v948
    %1246 = vmatpush1.bf16.msra.mxu0 %v947
    %1247 = vmatprep.subr.bf16.mxu0 %v956
    %1248 = vmatpush1.bf16.msra.mxu0 %v955
    %1249 = vmatprep.subr.bf16.mxu0 %v964
    %1250 = vmatpush1.bf16.msra.mxu0 %v963
    %1251 = vmatprep.subr.bf16.mxu0 %v972
    %1252 = vmatpush1.bf16.msra.mxu0 %v971
    %1253 = vmatprep.subr.bf16.mxu0 %v980
    %1254 = vmatpush1.bf16.msra.mxu0 %v979
    %1255 = vmatprep.subr.bf16.mxu0 %v988
    %1256 = vmatpush1.bf16.msra.mxu0 %v987
    %1257 = vmatprep.subr.bf16.mxu0 %v996
    %1258 = vmatpush1.bf16.msra.mxu0 %v995
    %1259 = vmatprep.subr.bf16.mxu0 %v1004
    %1260 = vmatpush1.bf16.msra.mxu0 %v1003
    %1261 = vmatprep.subr.bf16.mxu0 %v1012
    %1262 = vmatpush1.bf16.msra.mxu0 %v1011
    %1263 = vmatprep.subr.bf16.mxu0 %v1020
    %1264 = vmatpush1.bf16.msra.mxu0 %v1019
    %1265 = vmatprep.subr.bf16.mxu0 %v1028
    %1266 = vmatpush1.bf16.msra.mxu0 %v1027
    %1267 = vmatprep.mubr.bf16.mxu0 %v442
    %1268 = vmatmul.mubr.bf16.gmra.mrb[0].mxu0 %v441
    %v1269 = vpop.f32.mrb[0].mxu0
    %v1270 = vadd.f32 0.0, %v1269
    %v1271 = vpop.f32.mrb[0].mxu0
    %v1272 = vadd.f32 0.0, %v1271
    %v1273 = vpop.f32.mrb[0].mxu0
    %v1274 = vadd.f32 0.0, %v1273
    %v1275 = vpop.f32.mrb[0].mxu0
    %v1276 = vadd.f32 0.0, %v1275
    %1277 = vmatprep.mubr.bf16.mxu0 %v445
    %1278 = vmatmul.mubr.bf16.gmra.mrb[0].mxu0 %v444
    %v1279 = vpop.f32.mrb[0].mxu0
    %v1280 = vadd.f32 0.0, %v1279
    %v1281 = vpop.f32.mrb[0].mxu0
    %v1282 = vadd.f32 0.0, %v1281
    %v1283 = vpop.f32.mrb[0].mxu0
    %v1284 = vpop.f32.mrb[0].mxu0
    %1285 = vdwg.mxu0
    %1286 = vmatprep.subr.bf16.mxu0 %v1036
    %1287 = vmatpush1.bf16.msra.mxu0 %v1035
    %1288 = vmatprep.subr.bf16.mxu0 %v1044
    %1289 = vmatpush1.bf16.msra.mxu0 %v1043
    %1290 = vmatprep.subr.bf16.mxu0 %v1215
    %1291 = vmatpush1.bf16.msra.mxu0 %v1212
    %1292 = vmatprep.subr.bf16.mxu0 0
    %1293 = vmatpush1.bf16.msra.mxu0 0
    %1294 = vmatprep.subr.bf16.mxu0 0
    %1295 = vmatpush1.bf16.msra.mxu0 0
    %1296 = vmatprep.subr.bf16.mxu0 0
    %1297 = vmatpush1.bf16.msra.mxu0 0
    %1298 = vmatprep.subr.bf16.mxu0 0
    %1299 = vmatpush1.bf16.msra.mxu0 0
    %1300 = vmatprep.subr.bf16.mxu0 0
    %1301 = vmatpush1.bf16.msra.mxu0 0
    %1302 = vmatprep.subr.bf16.mxu0 0
    %1303 = vmatpush1.bf16.msra.mxu0 0
    %1304 = vmatprep.subr.bf16.mxu0 0
    %1305 = vmatpush1.bf16.msra.mxu0 0
    %1306 = vmatprep.subr.bf16.mxu0 0
    %1307 = vmatpush1.bf16.msra.mxu0 0
    %1308 = vmatprep.subr.bf16.mxu0 0
    %1309 = vmatpush1.bf16.msra.mxu0 0
    %1310 = vmatprep.subr.bf16.mxu0 0
    %1311 = vmatpush1.bf16.msra.mxu0 0
    %1312 = vmatprep.subr.bf16.mxu0 0
    %1313 = vmatpush1.bf16.msra.mxu0 0
    %1314 = vmatprep.subr.bf16.mxu0 0
    %1315 = vmatpush1.bf16.msra.mxu0 0
    %1316 = vmatprep.subr.bf16.mxu0 0
    %1317 = vmatpush1.bf16.msra.mxu0 0
    %1318 = vmatprep.mubr.bf16.mxu0 0
    %1319 = vmatmul.mubr.bf16.gmra.mrb[0].mxu0 %v1205
    %v1320 = vpop.f32.mrb[0].mxu0
    %v1321 = vadd.f32 %v1270, %v1320
    %v1322 = vpop.f32.mrb[0].mxu0
    %v1323 = vadd.f32 %v1272, %v1322
    %v1324 = vpop.f32.mrb[0].mxu0
    %v1325 = vadd.f32 %v1274, %v1324
    %v1326 = vpop.f32.mrb[0].mxu0
    %v1327 = vadd.f32 %v1276, %v1326
    %1328 = vmatprep.mubr.bf16.mxu0 0
    %1329 = vmatmul.mubr.bf16.gmra.mrb[0].mxu0 %v1208
    %v1330 = vpop.f32.mrb[0].mxu0
    %v1331 = vadd.f32 %v1280, %v1330
    %v1332 = vpop.f32.mrb[0].mxu0
    %v1333 = vadd.f32 %v1282, %v1332
    %v1334 = vpop.f32.mrb[0].mxu0
    %v1335 = vpop.f32.mrb[0].mxu0
    %1336 = vdwg.mxu0
    %1337 = vmatprep.subr.bf16.mxu0 %v910
    %1338 = vmatpush1.bf16.msra.mxu0 %v909
    %1339 = vmatprep.subr.bf16.mxu0 %v918
    %1340 = vmatpush1.bf16.msra.mxu0 %v917
    %1341 = vmatprep.subr.bf16.mxu0 %v926
    %1342 = vmatpush1.bf16.msra.mxu0 %v925
    %1343 = vmatprep.subr.bf16.mxu0 %v934
    %1344 = vmatpush1.bf16.msra.mxu0 %v933
    %1345 = vmatprep.subr.bf16.mxu0 %v942
    %1346 = vmatpush1.bf16.msra.mxu0 %v941
    %1347 = vmatprep.subr.bf16.mxu0 %v950
    %1348 = vmatpush1.bf16.msra.mxu0 %v949
    %1349 = vmatprep.subr.bf16.mxu0 %v958
    %1350 = vmatpush1.bf16.msra.mxu0 %v957
    %1351 = vmatprep.subr.bf16.mxu0 %v966
    %1352 = vmatpush1.bf16.msra.mxu0 %v965
    %1353 = vmatprep.subr.bf16.mxu0 %v974
    %1354 = vmatpush1.bf16.msra.mxu0 %v973
    %1355 = vmatprep.subr.bf16.mxu0 %v982
    %1356 = vmatpush1.bf16.msra.mxu0 %v981
    %1357 = vmatprep.subr.bf16.mxu0 %v990
    %1358 = vmatpush1.bf16.msra.mxu0 %v989
    %1359 = vmatprep.subr.bf16.mxu0 %v998
    %1360 = vmatpush1.bf16.msra.mxu0 %v997
    %1361 = vmatprep.subr.bf16.mxu0 %v1006
    %1362 = vmatpush1.bf16.msra.mxu0 %v1005
    %1363 = vmatprep.subr.bf16.mxu0 %v1014
    %1364 = vmatpush1.bf16.msra.mxu0 %v1013
    %1365 = vmatprep.subr.bf16.mxu0 %v1022
    %1366 = vmatpush1.bf16.msra.mxu0 %v1021
    %1367 = vmatprep.subr.bf16.mxu0 %v1030
    %1368 = vmatpush1.bf16.msra.mxu0 %v1029
    %1369 = vmatprep.mubr.bf16.mxu0 %v442
    %1370 = vmatmul.mubr.bf16.gmra.mrb[0].mxu0 %v441
    %v1371 = vpop.f32.mrb[0].mxu0
    %v1372 = vadd.f32 0.0, %v1371
    %v1373 = vpop.f32.mrb[0].mxu0
    %v1374 = vadd.f32 0.0, %v1373
    %v1375 = vpop.f32.mrb[0].mxu0
    %v1376 = vadd.f32 0.0, %v1375
    %v1377 = vpop.f32.mrb[0].mxu0
    %v1378 = vadd.f32 0.0, %v1377
    %1379 = vmatprep.mubr.bf16.mxu0 %v445
    %1380 = vmatmul.mubr.bf16.gmra.mrb[0].mxu0 %v444
    %v1381 = vpop.f32.mrb[0].mxu0
    %v1382 = vadd.f32 0.0, %v1381
    %v1383 = vpop.f32.mrb[0].mxu0
    %v1384 = vadd.f32 0.0, %v1383
    %v1385 = vpop.f32.mrb[0].mxu0
    %v1386 = vpop.f32.mrb[0].mxu0
    %1387 = vdwg.mxu0
    %1388 = vmatprep.subr.bf16.mxu0 %v1038
    %1389 = vmatpush1.bf16.msra.mxu0 %v1037
    %1390 = vmatprep.subr.bf16.mxu0 %v1046
    %1391 = vmatpush1.bf16.msra.mxu0 %v1045
    %1392 = vmatprep.subr.bf16.mxu0 %v1221
    %1393 = vmatpush1.bf16.msra.mxu0 %v1218
    %1394 = vmatprep.subr.bf16.mxu0 0
    %1395 = vmatpush1.bf16.msra.mxu0 0
    %1396 = vmatprep.subr.bf16.mxu0 0
    %1397 = vmatpush1.bf16.msra.mxu0 0
    %1398 = vmatprep.subr.bf16.mxu0 0
    %1399 = vmatpush1.bf16.msra.mxu0 0
    %1400 = vmatprep.subr.bf16.mxu0 0
    %1401 = vmatpush1.bf16.msra.mxu0 0
    %1402 = vmatprep.subr.bf16.mxu0 0
    %1403 = vmatpush1.bf16.msra.mxu0 0
    %1404 = vmatprep.subr.bf16.mxu0 0
    %1405 = vmatpush1.bf16.msra.mxu0 0
    %1406 = vmatprep.subr.bf16.mxu0 0
    %1407 = vmatpush1.bf16.msra.mxu0 0
    %1408 = vmatprep.subr.bf16.mxu0 0
    %1409 = vmatpush1.bf16.msra.mxu0 0
    %1410 = vmatprep.subr.bf16.mxu0 0
    %1411 = vmatpush1.bf16.msra.mxu0 0
    %1412 = vmatprep.subr.bf16.mxu0 0
    %1413 = vmatpush1.bf16.msra.mxu0 0
    %1414 = vmatprep.subr.bf16.mxu0 0
    %1415 = vmatpush1.bf16.msra.mxu0 0
    %1416 = vmatprep.subr.bf16.mxu0 0
    %1417 = vmatpush1.bf16.msra.mxu0 0
    %1418 = vmatprep.subr.bf16.mxu0 0
    %1419 = vmatpush1.bf16.msra.mxu0 0
    %1420 = vmatprep.mubr.bf16.mxu0 0
    %1421 = vmatmul.mubr.bf16.gmra.mrb[0].mxu0 %v1205
    %v1422 = vpop.f32.mrb[0].mxu0
    %v1423 = vadd.f32 %v1372, %v1422
    %v1424 = vpop.f32.mrb[0].mxu0
    %v1425 = vadd.f32 %v1374, %v1424
    %v1426 = vpop.f32.mrb[0].mxu0
    %v1427 = vadd.f32 %v1376, %v1426
    %v1428 = vpop.f32.mrb[0].mxu0
    %v1429 = vadd.f32 %v1378, %v1428
    %1430 = vmatprep.mubr.bf16.mxu0 0
    %1431 = vmatmul.mubr.bf16.gmra.mrb[0].mxu0 %v1208
    %v1432 = vpop.f32.mrb[0].mxu0
    %v1433 = vadd.f32 %v1382, %v1432
    %v1434 = vpop.f32.mrb[0].mxu0
    %v1435 = vadd.f32 %v1384, %v1434
    %v1436 = vpop.f32.mrb[0].mxu0
    %v1437 = vpop.f32.mrb[0].mxu0
    %1438 = vdwg.mxu0
    %1439 = vmatprep.subr.bf16.mxu0 %v912
    %1440 = vmatpush1.bf16.msra.mxu0 %v911
    %1441 = vmatprep.subr.bf16.mxu0 %v920
    %1442 = vmatpush1.bf16.msra.mxu0 %v919
    %1443 = vmatprep.subr.bf16.mxu0 %v928
    %1444 = vmatpush1.bf16.msra.mxu0 %v927
    %1445 = vmatprep.subr.bf16.mxu0 %v936
    %1446 = vmatpush1.bf16.msra.mxu0 %v935
    %1447 = vmatprep.subr.bf16.mxu0 %v944
    %1448 = vmatpush1.bf16.msra.mxu0 %v943
    %1449 = vmatprep.subr.bf16.mxu0 %v952
    %1450 = vmatpush1.bf16.msra.mxu0 %v951
    %1451 = vmatprep.subr.bf16.mxu0 %v960
    %1452 = vmatpush1.bf16.msra.mxu0 %v959
    %1453 = vmatprep.subr.bf16.mxu0 %v968
    %1454 = vmatpush1.bf16.msra.mxu0 %v967
    %1455 = vmatprep.subr.bf16.mxu0 %v976
    %1456 = vmatpush1.bf16.msra.mxu0 %v975
    %1457 = vmatprep.subr.bf16.mxu0 %v984
    %1458 = vmatpush1.bf16.msra.mxu0 %v983
    %1459 = vmatprep.subr.bf16.mxu0 %v992
    %1460 = vmatpush1.bf16.msra.mxu0 %v991
    %1461 = vmatprep.subr.bf16.mxu0 %v1000
    %1462 = vmatpush1.bf16.msra.mxu0 %v999
    %1463 = vmatprep.subr.bf16.mxu0 %v1008
    %1464 = vmatpush1.bf16.msra.mxu0 %v1007
    %1465 = vmatprep.subr.bf16.mxu0 %v1016
    %1466 = vmatpush1.bf16.msra.mxu0 %v1015
    %1467 = vmatprep.subr.bf16.mxu0 %v1024
    %1468 = vmatpush1.bf16.msra.mxu0 %v1023
    %1469 = vmatprep.subr.bf16.mxu0 %v1032
    %1470 = vmatpush1.bf16.msra.mxu0 %v1031
    %1471 = vmatprep.mubr.bf16.mxu0 %v442
    %1472 = vmatmul.mubr.bf16.gmra.mrb[0].mxu0 %v441
    %v1473 = vpop.f32.mrb[0].mxu0
    %v1474 = vadd.f32 0.0, %v1473
    %v1475 = vpop.f32.mrb[0].mxu0
    %v1476 = vadd.f32 0.0, %v1475
    %v1477 = vpop.f32.mrb[0].mxu0
    %v1478 = vadd.f32 0.0, %v1477
    %v1479 = vpop.f32.mrb[0].mxu0
    %v1480 = vadd.f32 0.0, %v1479
    %1481 = vmatprep.mubr.bf16.mxu0 %v445
    %1482 = vmatmul.mubr.bf16.gmra.mrb[0].mxu0 %v444
    %v1483 = vpop.f32.mrb[0].mxu0
    %v1484 = vadd.f32 0.0, %v1483
    %v1485 = vpop.f32.mrb[0].mxu0
    %v1486 = vadd.f32 0.0, %v1485
    %v1487 = vpop.f32.mrb[0].mxu0
    %v1488 = vpop.f32.mrb[0].mxu0
    %1489 = vdwg.mxu0
    %1490 = vmatprep.subr.bf16.mxu0 %v1040
    %1491 = vmatpush1.bf16.msra.mxu0 %v1039
    %1492 = vmatprep.subr.bf16.mxu0 %v1048
    %1493 = vmatpush1.bf16.msra.mxu0 %v1047
    %1494 = vmatprep.subr.bf16.mxu0 %v1227
    %1495 = vmatpush1.bf16.msra.mxu0 %v1224
    %1496 = vmatprep.subr.bf16.mxu0 0
    %1497 = vmatpush1.bf16.msra.mxu0 0
    %1498 = vmatprep.subr.bf16.mxu0 0
    %1499 = vmatpush1.bf16.msra.mxu0 0
    %1500 = vmatprep.subr.bf16.mxu0 0
    %1501 = vmatpush1.bf16.msra.mxu0 0
    %1502 = vmatprep.subr.bf16.mxu0 0
    %1503 = vmatpush1.bf16.msra.mxu0 0
    %1504 = vmatprep.subr.bf16.mxu0 0
    %1505 = vmatpush1.bf16.msra.mxu0 0
    %1506 = vmatprep.subr.bf16.mxu0 0
    %1507 = vmatpush1.bf16.msra.mxu0 0
    %1508 = vmatprep.subr.bf16.mxu0 0
    %1509 = vmatpush1.bf16.msra.mxu0 0
    %1510 = vmatprep.subr.bf16.mxu0 0
    %1511 = vmatpush1.bf16.msra.mxu0 0
    %1512 = vmatprep.subr.bf16.mxu0 0
    %1513 = vmatpush1.bf16.msra.mxu0 0
    %1514 = vmatprep.subr.bf16.mxu0 0
    %1515 = vmatpush1.bf16.msra.mxu0 0
    %1516 = vmatprep.subr.bf16.mxu0 0
    %1517 = vmatpush1.bf16.msra.mxu0 0
    %1518 = vmatprep.subr.bf16.mxu0 0
    %1519 = vmatpush1.bf16.msra.mxu0 0
    %1520 = vmatprep.subr.bf16.mxu0 0
    %1521 = vmatpush1.bf16.msra.mxu0 0
    %1522 = vmatprep.mubr.bf16.mxu0 0
    %1523 = vmatmul.mubr.bf16.gmra.mrb[0].mxu0 %v1205
    %v1524 = vpop.f32.mrb[0].mxu0
    %v1525 = vadd.f32 %v1474, %v1524
    %v1526 = vpop.f32.mrb[0].mxu0
    %v1527 = vadd.f32 %v1476, %v1526
    %v1528 = vpop.f32.mrb[0].mxu0
    %v1529 = vadd.f32 %v1478, %v1528
    %v1530 = vpop.f32.mrb[0].mxu0
    %v1531 = vadd.f32 %v1480, %v1530
    %1532 = vmatprep.mubr.bf16.mxu0 0
    %1533 = vmatmul.mubr.bf16.gmra.mrb[0].mxu0 %v1208
    %v1534 = vpop.f32.mrb[0].mxu0
    %v1535 = vadd.f32 %v1484, %v1534
    %v1536 = vpop.f32.mrb[0].mxu0
    %v1537 = vadd.f32 %v1486, %v1536
    %v1538 = vpop.f32.mrb[0].mxu0
    %v1539 = vpop.f32.mrb[0].mxu0
    %1540 = vdwg.mxu0
    %1541 = vmatprep.subr.bf16.mxu0 %v914
    %1542 = vmatpush1.bf16.msra.mxu0 %v913
    %1543 = vmatprep.subr.bf16.mxu0 %v922
    %1544 = vmatpush1.bf16.msra.mxu0 %v921
    %1545 = vmatprep.subr.bf16.mxu0 %v930
    %1546 = vmatpush1.bf16.msra.mxu0 %v929
    %1547 = vmatprep.subr.bf16.mxu0 %v938
    %1548 = vmatpush1.bf16.msra.mxu0 %v937
    %1549 = vmatprep.subr.bf16.mxu0 %v946
    %1550 = vmatpush1.bf16.msra.mxu0 %v945
    %1551 = vmatprep.subr.bf16.mxu0 %v954
    %1552 = vmatpush1.bf16.msra.mxu0 %v953
    %1553 = vmatprep.subr.bf16.mxu0 %v962
    %1554 = vmatpush1.bf16.msra.mxu0 %v961
    %1555 = vmatprep.subr.bf16.mxu0 %v970
    %1556 = vmatpush1.bf16.msra.mxu0 %v969
    %1557 = vmatprep.subr.bf16.mxu0 %v978
    %1558 = vmatpush1.bf16.msra.mxu0 %v977
    %1559 = vmatprep.subr.bf16.mxu0 %v986
    %1560 = vmatpush1.bf16.msra.mxu0 %v985
    %1561 = vmatprep.subr.bf16.mxu0 %v994
    %1562 = vmatpush1.bf16.msra.mxu0 %v993
    %1563 = vmatprep.subr.bf16.mxu0 %v1002
    %1564 = vmatpush1.bf16.msra.mxu0 %v1001
    %1565 = vmatprep.subr.bf16.mxu0 %v1010
    %1566 = vmatpush1.bf16.msra.mxu0 %v1009
    %1567 = vmatprep.subr.bf16.mxu0 %v1018
    %1568 = vmatpush1.bf16.msra.mxu0 %v1017
    %1569 = vmatprep.subr.bf16.mxu0 %v1026
    %1570 = vmatpush1.bf16.msra.mxu0 %v1025
    %1571 = vmatprep.subr.bf16.mxu0 %v1034
    %1572 = vmatpush1.bf16.msra.mxu0 %v1033
    %1573 = vmatprep.mubr.bf16.mxu0 %v442
    %1574 = vmatmul.mubr.bf16.gmra.mrb[0].mxu0 %v441
    %v1575 = vpop.f32.mrb[0].mxu0
    %v1576 = vadd.f32 0.0, %v1575
    %v1577 = vpop.f32.mrb[0].mxu0
    %v1578 = vadd.f32 0.0, %v1577
    %v1579 = vpop.f32.mrb[0].mxu0
    %v1580 = vadd.f32 0.0, %v1579
    %v1581 = vpop.f32.mrb[0].mxu0
    %v1582 = vadd.f32 0.0, %v1581
    %1583 = vmatprep.mubr.bf16.mxu0 %v445
    %1584 = vmatmul.mubr.bf16.gmra.mrb[0].mxu0 %v444
    %v1585 = vpop.f32.mrb[0].mxu0
    %v1586 = vadd.f32 0.0, %v1585
    %v1587 = vpop.f32.mrb[0].mxu0
    %v1588 = vadd.f32 0.0, %v1587
    %v1589 = vpop.f32.mrb[0].mxu0
    %v1590 = vpop.f32.mrb[0].mxu0
    %1591 = vdwg.mxu0
    %1592 = vmatprep.subr.bf16.mxu0 %v1042
    %1593 = vmatpush1.bf16.msra.mxu0 %v1041
    %1594 = vmatprep.subr.bf16.mxu0 %v1050
    %1595 = vmatpush1.bf16.msra.mxu0 %v1049
    %1596 = vmatprep.subr.bf16.mxu0 %v1233
    %1597 = vmatpush1.bf16.msra.mxu0 %v1230
    %1598 = vmatprep.subr.bf16.mxu0 0
    %1599 = vmatpush1.bf16.msra.mxu0 0
    %1600 = vmatprep.subr.bf16.mxu0 0
    %1601 = vmatpush1.bf16.msra.mxu0 0
    %1602 = vmatprep.subr.bf16.mxu0 0
    %1603 = vmatpush1.bf16.msra.mxu0 0
    %1604 = vmatprep.subr.bf16.mxu0 0
    %1605 = vmatpush1.bf16.msra.mxu0 0
    %1606 = vmatprep.subr.bf16.mxu0 0
    %1607 = vmatpush1.bf16.msra.mxu0 0
    %1608 = vmatprep.subr.bf16.mxu0 0
    %1609 = vmatpush1.bf16.msra.mxu0 0
    %1610 = vmatprep.subr.bf16.mxu0 0
    %1611 = vmatpush1.bf16.msra.mxu0 0
    %1612 = vmatprep.subr.bf16.mxu0 0
    %1613 = vmatpush1.bf16.msra.mxu0 0
    %1614 = vmatprep.subr.bf16.mxu0 0
    %1615 = vmatpush1.bf16.msra.mxu0 0
    %1616 = vmatprep.subr.bf16.mxu0 0
    %1617 = vmatpush1.bf16.msra.mxu0 0
    %1618 = vmatprep.subr.bf16.mxu0 0
    %1619 = vmatpush1.bf16.msra.mxu0 0
    %1620 = vmatprep.subr.bf16.mxu0 0
    %1621 = vmatpush1.bf16.msra.mxu0 0
    %1622 = vmatprep.subr.bf16.mxu0 0
    %1623 = vmatpush1.bf16.msra.mxu0 0
    %1624 = vmatprep.mubr.bf16.mxu0 0
    %1625 = vmatmul.mubr.bf16.gmra.mrb[0].mxu0 %v1205
    %v1626 = vpop.f32.mrb[0].mxu0
    %v1627 = vadd.f32 %v1576, %v1626
    %v1628 = vpop.f32.mrb[0].mxu0
    %v1629 = vadd.f32 %v1578, %v1628
    %v1630 = vpop.f32.mrb[0].mxu0
    %v1631 = vadd.f32 %v1580, %v1630
    %v1632 = vpop.f32.mrb[0].mxu0
    %v1633 = vadd.f32 %v1582, %v1632
    %1634 = vmatprep.mubr.bf16.mxu0 0
    %1635 = vmatmul.mubr.bf16.gmra.mrb[0].mxu0 %v1208
    %v1636 = vpop.f32.mrb[0].mxu0
    %v1637 = vadd.f32 %v1586, %v1636
    %v1638 = vpop.f32.mrb[0].mxu0
    %v1639 = vadd.f32 %v1588, %v1638
    %v1640 = vpop.f32.mrb[0].mxu0
    %v1641 = vpop.f32.mrb[0].mxu0
    %1642 = vdwg.mxu0
    %v1649 = vunpack.c.l.b16 %v110
    %v1650 = vunpack.c.h.b16 %v110
    %v1651 = vunpack.c.l.b16 %v111
    %v1652 = vunpack.c.l.b16 %v112
    %v1653 = vunpack.c.h.b16 %v112
    %v1654 = vunpack.c.l.b16 %v113
    %v1655 = vunpack.c.l.b16 %v114
    %v1656 = vunpack.c.h.b16 %v114
    %v1657 = vunpack.c.l.b16 %v115
    %v1658 = vpack.c.b16 %v1652, %v1649
    %v1659 = vpack.c.b16 %v1653, %v1650
    %v1660 = vpack.c.b16 %v1654, %v1651
    %v1661 = vpack.c.b16 %v1655, %v1655
    %v1662 = vpack.c.b16 %v1656, %v1656
    %v1663 = vpack.c.b16 %v1657, %v1657
    %v1820 = vunpack.c.l.b16 %v116
    %v1821 = vunpack.c.h.b16 %v116
    %v1822 = vunpack.c.l.b16 %v117
    %v1823 = vunpack.c.h.b16 %v117
    %v1824 = vunpack.c.l.b16 %v118
    %v1825 = vunpack.c.h.b16 %v118
    %v1826 = vunpack.c.l.b16 %v119
    %v1827 = vunpack.c.h.b16 %v119
    %v1828 = vunpack.c.l.b16 %v120
    %v1829 = vunpack.c.h.b16 %v120
    %v1830 = vunpack.c.l.b16 %v121
    %v1831 = vunpack.c.h.b16 %v121
    %v1832 = vunpack.c.l.b16 %v122
    %v1833 = vunpack.c.h.b16 %v122
    %v1834 = vunpack.c.l.b16 %v123
    %v1835 = vunpack.c.h.b16 %v123
    %v1836 = vunpack.c.l.b16 %v124
    %v1837 = vunpack.c.h.b16 %v124
    %v1838 = vunpack.c.l.b16 %v125
    %v1839 = vunpack.c.h.b16 %v125
    %v1840 = vunpack.c.l.b16 %v126
    %v1841 = vunpack.c.h.b16 %v126
    %v1842 = vunpack.c.l.b16 %v127
    %v1843 = vunpack.c.h.b16 %v127
    %v1844 = vunpack.c.l.b16 %v128
    %v1845 = vunpack.c.h.b16 %v128
    %v1846 = vunpack.c.l.b16 %v129
    %v1847 = vunpack.c.h.b16 %v129
    %v1848 = vunpack.c.l.b16 %v130
    %v1849 = vunpack.c.h.b16 %v130
    %v1850 = vunpack.c.l.b16 %v131
    %v1851 = vunpack.c.h.b16 %v131
    %v1852 = vunpack.c.l.b16 %v132
    %v1853 = vunpack.c.h.b16 %v132
    %v1854 = vunpack.c.l.b16 %v133
    %v1855 = vunpack.c.h.b16 %v133
    %v1856 = vunpack.c.l.b16 %v134
    %v1857 = vunpack.c.h.b16 %v134
    %v1858 = vunpack.c.l.b16 %v135
    %v1859 = vunpack.c.h.b16 %v135
    %v1860 = vunpack.c.l.b16 %v136
    %v1861 = vunpack.c.h.b16 %v136
    %v1862 = vunpack.c.l.b16 %v137
    %v1863 = vunpack.c.h.b16 %v137
    %v1864 = vunpack.c.l.b16 %v138
    %v1865 = vunpack.c.h.b16 %v138
    %v1866 = vunpack.c.l.b16 %v139
    %v1867 = vunpack.c.h.b16 %v139
    %v1868 = vunpack.c.l.b16 %v140
    %v1869 = vunpack.c.h.b16 %v140
    %v1870 = vunpack.c.l.b16 %v141
    %v1871 = vunpack.c.h.b16 %v141
    %v1872 = vunpack.c.l.b16 %v142
    %v1873 = vunpack.c.h.b16 %v142
    %v1874 = vunpack.c.l.b16 %v143
    %v1875 = vunpack.c.h.b16 %v143
    %v1876 = vunpack.c.l.b16 %v144
    %v1877 = vunpack.c.h.b16 %v144
    %v1878 = vunpack.c.l.b16 %v145
    %v1879 = vunpack.c.h.b16 %v145
    %v1880 = vunpack.c.l.b16 %v146
    %v1881 = vunpack.c.h.b16 %v146
    %v1882 = vunpack.c.l.b16 %v147
    %v1883 = vunpack.c.h.b16 %v147
    %v1884 = vunpack.c.l.b16 %v148
    %v1885 = vunpack.c.h.b16 %v148
    %v1886 = vunpack.c.l.b16 %v149
    %v1887 = vunpack.c.h.b16 %v149
    %v1888 = vunpack.c.l.b16 %v150
    %v1889 = vunpack.c.h.b16 %v150
    %v1890 = vunpack.c.l.b16 %v151
    %v1891 = vunpack.c.h.b16 %v151
    %v1892 = vunpack.c.l.b16 %v152
    %v1893 = vunpack.c.h.b16 %v152
    %v1894 = vunpack.c.l.b16 %v153
    %v1895 = vunpack.c.h.b16 %v153
    %v1896 = vunpack.c.l.b16 %v154
    %v1897 = vunpack.c.h.b16 %v154
    %v1898 = vunpack.c.l.b16 %v155
    %v1899 = vunpack.c.h.b16 %v155
    %v1900 = vunpack.c.l.b16 %v156
    %v1901 = vunpack.c.h.b16 %v156
    %v1902 = vunpack.c.l.b16 %v157
    %v1903 = vunpack.c.h.b16 %v157
    %v1904 = vunpack.c.l.b16 %v158
    %v1905 = vunpack.c.h.b16 %v158
    %v1906 = vunpack.c.l.b16 %v159
    %v1907 = vunpack.c.h.b16 %v159
    %v1908 = vunpack.c.l.b16 %v160
    %v1909 = vunpack.c.h.b16 %v160
    %v1910 = vunpack.c.l.b16 %v161
    %v1911 = vunpack.c.h.b16 %v161
    %v1912 = vunpack.c.l.b16 %v162
    %v1913 = vunpack.c.h.b16 %v162
    %v1914 = vunpack.c.l.b16 %v163
    %v1915 = vunpack.c.h.b16 %v163
    %v1916 = vunpack.c.l.b16 %v164
    %v1917 = vunpack.c.h.b16 %v164
    %v1918 = vunpack.c.l.b16 %v165
    %v1919 = vunpack.c.h.b16 %v165
    %v1920 = vunpack.c.l.b16 %v166
    %v1921 = vunpack.c.h.b16 %v166
    %v1922 = vunpack.c.l.b16 %v167
    %v1923 = vunpack.c.h.b16 %v167
    %v1924 = vunpack.c.l.b16 %v168
    %v1925 = vunpack.c.h.b16 %v168
    %v1926 = vunpack.c.l.b16 %v169
    %v1927 = vunpack.c.h.b16 %v169
    %v1928 = vunpack.c.l.b16 %v170
    %v1929 = vunpack.c.h.b16 %v170
    %v1930 = vunpack.c.l.b16 %v171
    %v1931 = vunpack.c.h.b16 %v171
    %v1932 = vunpack.c.l.b16 %v172
    %v1933 = vunpack.c.h.b16 %v172
    %v1934 = vunpack.c.l.b16 %v173
    %v1935 = vunpack.c.h.b16 %v173
    %v1936 = vunpack.c.l.b16 %v174
    %v1937 = vunpack.c.h.b16 %v174
    %v1938 = vunpack.c.l.b16 %v175
    %v1939 = vunpack.c.h.b16 %v175
    %v1940 = vunpack.c.l.b16 %v176
    %v1941 = vunpack.c.h.b16 %v176
    %v1942 = vunpack.c.l.b16 %v177
    %v1943 = vunpack.c.h.b16 %v177
    %v1944 = vunpack.c.l.b16 %v178
    %v1945 = vunpack.c.h.b16 %v178
    %v1946 = vunpack.c.l.b16 %v179
    %v1947 = vunpack.c.h.b16 %v179
    %v1948 = vunpack.c.l.b16 %v180
    %v1949 = vunpack.c.h.b16 %v180
    %v1950 = vunpack.c.l.b16 %v181
    %v1951 = vunpack.c.h.b16 %v181
    %v1952 = vunpack.c.l.b16 %v182
    %v1953 = vunpack.c.h.b16 %v182
    %v1954 = vunpack.c.l.b16 %v183
    %v1955 = vunpack.c.h.b16 %v183
    %v1956 = vunpack.c.l.b16 %v184
    %v1957 = vunpack.c.h.b16 %v184
    %v1958 = vunpack.c.l.b16 %v185
    %v1959 = vunpack.c.h.b16 %v185
    %v1960 = vunpack.c.l.b16 %v186
    %v1961 = vunpack.c.h.b16 %v186
    %v1962 = vunpack.c.l.b16 %v187
    %v1963 = vunpack.c.h.b16 %v187
    %v1964 = vunpack.c.l.b16 %v188
    %v1965 = vunpack.c.h.b16 %v188
    %v1966 = vunpack.c.l.b16 %v189
    %v1967 = vunpack.c.h.b16 %v189
    %v1968 = vunpack.c.l.b16 %v190
    %v1969 = vunpack.c.h.b16 %v190
    %v1970 = vunpack.c.l.b16 %v191
    %v1971 = vunpack.c.h.b16 %v191
    %v1972 = vunpack.c.l.b16 %v192
    %v1973 = vunpack.c.h.b16 %v192
    %v1974 = vunpack.c.l.b16 %v193
    %v1975 = vunpack.c.h.b16 %v193
    %v1976 = vunpack.c.l.b16 %v194
    %v1977 = vunpack.c.h.b16 %v194
    %v1978 = vunpack.c.l.b16 %v195
    %v1979 = vunpack.c.h.b16 %v195
    %v1980 = vunpack.c.l.b16 %v196
    %v1981 = vunpack.c.h.b16 %v196
    %v1982 = vunpack.c.l.b16 %v197
    %v1983 = vunpack.c.h.b16 %v197
    %v1984 = vunpack.c.l.b16 %v198
    %v1985 = vunpack.c.h.b16 %v198
    %v1986 = vunpack.c.l.b16 %v199
    %v1987 = vunpack.c.h.b16 %v199
    %v1988 = vunpack.c.l.b16 %v200
    %v1989 = vunpack.c.h.b16 %v200
    %v1990 = vunpack.c.l.b16 %v201
    %v1991 = vunpack.c.h.b16 %v201
    %v1992 = vunpack.c.l.b16 %v202
    %v1993 = vunpack.c.h.b16 %v202
    %v1994 = vunpack.c.l.b16 %v203
    %v1995 = vunpack.c.h.b16 %v203
    %v1996 = vunpack.c.l.b16 %v204
    %v1997 = vunpack.c.h.b16 %v204
    %v1998 = vunpack.c.l.b16 %v205
    %v1999 = vunpack.c.h.b16 %v205
    %v2000 = vunpack.c.l.b16 %v206
    %v2001 = vunpack.c.h.b16 %v206
    %v2002 = vunpack.c.l.b16 %v207
    %v2003 = vunpack.c.h.b16 %v207
    %v2004 = vunpack.c.l.b16 %v208
    %v2005 = vunpack.c.h.b16 %v208
    %v2006 = vunpack.c.l.b16 %v209
    %v2007 = vunpack.c.h.b16 %v209
    %v2008 = vunpack.c.l.b16 %v210
    %v2009 = vunpack.c.h.b16 %v210
    %v2010 = vunpack.c.l.b16 %v211
    %v2011 = vunpack.c.h.b16 %v211
    %v2012 = vunpack.c.l.b16 %v212
    %v2013 = vunpack.c.h.b16 %v212
    %v2014 = vunpack.c.l.b16 %v213
    %v2015 = vunpack.c.h.b16 %v213
    %v2016 = vunpack.c.l.b16 %v214
    %v2017 = vunpack.c.h.b16 %v214
    %v2018 = vunpack.c.l.b16 %v215
    %v2019 = vunpack.c.h.b16 %v215
    %v2020 = vunpack.c.l.b16 %v216
    %v2021 = vunpack.c.h.b16 %v216
    %v2022 = vunpack.c.l.b16 %v217
    %v2023 = vunpack.c.h.b16 %v217
    %v2024 = vunpack.c.l.b16 %v218
    %v2025 = vunpack.c.h.b16 %v218
    %v2026 = vunpack.c.l.b16 %v219
    %v2027 = vunpack.c.h.b16 %v219
    %v2028 = vunpack.c.l.b16 %v220
    %v2029 = vunpack.c.h.b16 %v220
    %v2030 = vunpack.c.l.b16 %v221
    %v2031 = vunpack.c.h.b16 %v221
    %v2032 = vunpack.c.l.b16 %v222
    %v2033 = vunpack.c.h.b16 %v222
    %v2034 = vunpack.c.l.b16 %v223
    %v2035 = vunpack.c.h.b16 %v223
    %v2036 = vunpack.c.l.b16 %v224
    %v2037 = vunpack.c.h.b16 %v224
    %v2038 = vunpack.c.l.b16 %v225
    %v2039 = vunpack.c.h.b16 %v225
    %v2040 = vunpack.c.l.b16 %v226
    %v2041 = vunpack.c.h.b16 %v226
    %v2042 = vunpack.c.l.b16 %v227
    %v2043 = vunpack.c.h.b16 %v227
    %v2044 = vunpack.c.l.b16 %v228
    %v2045 = vunpack.c.h.b16 %v228
    %v2046 = vunpack.c.l.b16 %v229
    %v2047 = vunpack.c.h.b16 %v229
    %v2048 = vunpack.c.l.b16 %v230
    %v2049 = vunpack.c.h.b16 %v230
    %v2050 = vunpack.c.l.b16 %v231
    %v2051 = vunpack.c.h.b16 %v231
    %v2052 = vunpack.c.l.b16 %v232
    %v2053 = vunpack.c.h.b16 %v232
    %v2054 = vunpack.c.l.b16 %v233
    %v2055 = vunpack.c.h.b16 %v233
    %v2056 = vunpack.c.l.b16 %v234
    %v2057 = vunpack.c.h.b16 %v234
    %v2058 = vunpack.c.l.b16 %v235
    %v2059 = vunpack.c.h.b16 %v235
    %v2060 = vunpack.c.l.b16 %v236
    %v2061 = vunpack.c.h.b16 %v236
    %v2062 = vunpack.c.l.b16 %v237
    %v2063 = vunpack.c.h.b16 %v237
    %v2064 = vunpack.c.l.b16 %v238
    %v2065 = vunpack.c.h.b16 %v238
    %v2066 = vunpack.c.l.b16 %v239
    %v2067 = vunpack.c.h.b16 %v239
    %v2068 = vunpack.c.l.b16 %v240
    %v2069 = vunpack.c.h.b16 %v240
    %v2070 = vunpack.c.l.b16 %v241
    %v2071 = vunpack.c.h.b16 %v241
    %v2072 = vunpack.c.l.b16 %v242
    %v2073 = vunpack.c.h.b16 %v242
    %v2074 = vunpack.c.l.b16 %v243
    %v2075 = vunpack.c.h.b16 %v243
    %v2076 = vunpack.c.l.b16 %v244
    %v2077 = vunpack.c.h.b16 %v244
    %v2078 = vunpack.c.l.b16 %v245
    %v2079 = vunpack.c.h.b16 %v245
    %v2080 = vunpack.c.l.b16 %v246
    %v2081 = vunpack.c.h.b16 %v246
    %v2082 = vunpack.c.l.b16 %v247
    %v2083 = vunpack.c.h.b16 %v247
    %v2084 = vunpack.c.l.b16 %v248
    %v2085 = vunpack.c.h.b16 %v248
    %v2086 = vunpack.c.l.b16 %v249
    %v2087 = vunpack.c.h.b16 %v249
    %v2088 = vunpack.c.l.b16 %v250
    %v2089 = vunpack.c.h.b16 %v250
    %v2090 = vunpack.c.l.b16 %v251
    %v2091 = vunpack.c.h.b16 %v251
    %v2092 = vunpack.c.l.b16 %v252
    %v2093 = vunpack.c.h.b16 %v252
    %v2094 = vunpack.c.l.b16 %v253
    %v2095 = vunpack.c.h.b16 %v253
    %v2096 = vunpack.c.l.b16 %v254
    %v2097 = vunpack.c.h.b16 %v254
    %v2098 = vunpack.c.l.b16 %v255
    %v2099 = vunpack.c.h.b16 %v255
    %v2100 = vunpack.c.l.b16 %v256
    %v2101 = vunpack.c.h.b16 %v256
    %v2102 = vunpack.c.l.b16 %v257
    %v2103 = vunpack.c.h.b16 %v257
    %v2104 = vunpack.c.l.b16 %v258
    %v2105 = vunpack.c.h.b16 %v258
    %v2106 = vunpack.c.l.b16 %v259
    %v2107 = vunpack.c.h.b16 %v259
    %v2108 = vunpack.c.l.b16 %v260
    %v2109 = vunpack.c.h.b16 %v260
    %v2110 = vunpack.c.l.b16 %v261
    %v2111 = vunpack.c.h.b16 %v261
    %v2112 = vunpack.c.l.b16 %v262
    %v2113 = vunpack.c.h.b16 %v262
    %v2114 = vunpack.c.l.b16 %v263
    %v2115 = vunpack.c.h.b16 %v263
    %v2116 = vunpack.c.l.b16 %v264
    %v2117 = vunpack.c.h.b16 %v264
    %v2118 = vunpack.c.l.b16 %v265
    %v2119 = vunpack.c.h.b16 %v265
    %v2120 = vunpack.c.l.b16 %v266
    %v2121 = vunpack.c.h.b16 %v266
    %v2122 = vunpack.c.l.b16 %v267
    %v2123 = vunpack.c.h.b16 %v267
    %v2124 = vpack.c.b16 %v1828, %v1820
    %v2125 = vpack.c.b16 %v1829, %v1821
    %v2126 = vpack.c.b16 %v1830, %v1822
    %v2127 = vpack.c.b16 %v1831, %v1823
    %v2128 = vpack.c.b16 %v1832, %v1824
    %v2129 = vpack.c.b16 %v1833, %v1825
    %v2130 = vpack.c.b16 %v1834, %v1826
    %v2131 = vpack.c.b16 %v1835, %v1827
    %v2132 = vpack.c.b16 %v1844, %v1836
    %v2133 = vpack.c.b16 %v1845, %v1837
    %v2134 = vpack.c.b16 %v1846, %v1838
    %v2135 = vpack.c.b16 %v1847, %v1839
    %v2136 = vpack.c.b16 %v1848, %v1840
    %v2137 = vpack.c.b16 %v1849, %v1841
    %v2138 = vpack.c.b16 %v1850, %v1842
    %v2139 = vpack.c.b16 %v1851, %v1843
    %v2140 = vpack.c.b16 %v1860, %v1852
    %v2141 = vpack.c.b16 %v1861, %v1853
    %v2142 = vpack.c.b16 %v1862, %v1854
    %v2143 = vpack.c.b16 %v1863, %v1855
    %v2144 = vpack.c.b16 %v1864, %v1856
    %v2145 = vpack.c.b16 %v1865, %v1857
    %v2146 = vpack.c.b16 %v1866, %v1858
    %v2147 = vpack.c.b16 %v1867, %v1859
    %v2148 = vpack.c.b16 %v1876, %v1868
    %v2149 = vpack.c.b16 %v1877, %v1869
    %v2150 = vpack.c.b16 %v1878, %v1870
    %v2151 = vpack.c.b16 %v1879, %v1871
    %v2152 = vpack.c.b16 %v1880, %v1872
    %v2153 = vpack.c.b16 %v1881, %v1873
    %v2154 = vpack.c.b16 %v1882, %v1874
    %v2155 = vpack.c.b16 %v1883, %v1875
    %v2156 = vpack.c.b16 %v1892, %v1884
    %v2157 = vpack.c.b16 %v1893, %v1885
    %v2158 = vpack.c.b16 %v1894, %v1886
    %v2159 = vpack.c.b16 %v1895, %v1887
    %v2160 = vpack.c.b16 %v1896, %v1888
    %v2161 = vpack.c.b16 %v1897, %v1889
    %v2162 = vpack.c.b16 %v1898, %v1890
    %v2163 = vpack.c.b16 %v1899, %v1891
    %v2164 = vpack.c.b16 %v1908, %v1900
    %v2165 = vpack.c.b16 %v1909, %v1901
    %v2166 = vpack.c.b16 %v1910, %v1902
    %v2167 = vpack.c.b16 %v1911, %v1903
    %v2168 = vpack.c.b16 %v1912, %v1904
    %v2169 = vpack.c.b16 %v1913, %v1905
    %v2170 = vpack.c.b16 %v1914, %v1906
    %v2171 = vpack.c.b16 %v1915, %v1907
    %v2172 = vpack.c.b16 %v1924, %v1916
    %v2173 = vpack.c.b16 %v1925, %v1917
    %v2174 = vpack.c.b16 %v1926, %v1918
    %v2175 = vpack.c.b16 %v1927, %v1919
    %v2176 = vpack.c.b16 %v1928, %v1920
    %v2177 = vpack.c.b16 %v1929, %v1921
    %v2178 = vpack.c.b16 %v1930, %v1922
    %v2179 = vpack.c.b16 %v1931, %v1923
    %v2180 = vpack.c.b16 %v1940, %v1932
    %v2181 = vpack.c.b16 %v1941, %v1933
    %v2182 = vpack.c.b16 %v1942, %v1934
    %v2183 = vpack.c.b16 %v1943, %v1935
    %v2184 = vpack.c.b16 %v1944, %v1936
    %v2185 = vpack.c.b16 %v1945, %v1937
    %v2186 = vpack.c.b16 %v1946, %v1938
    %v2187 = vpack.c.b16 %v1947, %v1939
    %v2188 = vpack.c.b16 %v1956, %v1948
    %v2189 = vpack.c.b16 %v1957, %v1949
    %v2190 = vpack.c.b16 %v1958, %v1950
    %v2191 = vpack.c.b16 %v1959, %v1951
    %v2192 = vpack.c.b16 %v1960, %v1952
    %v2193 = vpack.c.b16 %v1961, %v1953
    %v2194 = vpack.c.b16 %v1962, %v1954
    %v2195 = vpack.c.b16 %v1963, %v1955
    %v2196 = vpack.c.b16 %v1972, %v1964
    %v2197 = vpack.c.b16 %v1973, %v1965
    %v2198 = vpack.c.b16 %v1974, %v1966
    %v2199 = vpack.c.b16 %v1975, %v1967
    %v2200 = vpack.c.b16 %v1976, %v1968
    %v2201 = vpack.c.b16 %v1977, %v1969
    %v2202 = vpack.c.b16 %v1978, %v1970
    %v2203 = vpack.c.b16 %v1979, %v1971
    %v2204 = vpack.c.b16 %v1988, %v1980
    %v2205 = vpack.c.b16 %v1989, %v1981
    %v2206 = vpack.c.b16 %v1990, %v1982
    %v2207 = vpack.c.b16 %v1991, %v1983
    %v2208 = vpack.c.b16 %v1992, %v1984
    %v2209 = vpack.c.b16 %v1993, %v1985
    %v2210 = vpack.c.b16 %v1994, %v1986
    %v2211 = vpack.c.b16 %v1995, %v1987
    %v2212 = vpack.c.b16 %v2004, %v1996
    %v2213 = vpack.c.b16 %v2005, %v1997
    %v2214 = vpack.c.b16 %v2006, %v1998
    %v2215 = vpack.c.b16 %v2007, %v1999
    %v2216 = vpack.c.b16 %v2008, %v2000
    %v2217 = vpack.c.b16 %v2009, %v2001
    %v2218 = vpack.c.b16 %v2010, %v2002
    %v2219 = vpack.c.b16 %v2011, %v2003
    %v2220 = vpack.c.b16 %v2020, %v2012
    %v2221 = vpack.c.b16 %v2021, %v2013
    %v2222 = vpack.c.b16 %v2022, %v2014
    %v2223 = vpack.c.b16 %v2023, %v2015
    %v2224 = vpack.c.b16 %v2024, %v2016
    %v2225 = vpack.c.b16 %v2025, %v2017
    %v2226 = vpack.c.b16 %v2026, %v2018
    %v2227 = vpack.c.b16 %v2027, %v2019
    %v2228 = vpack.c.b16 %v2036, %v2028
    %v2229 = vpack.c.b16 %v2037, %v2029
    %v2230 = vpack.c.b16 %v2038, %v2030
    %v2231 = vpack.c.b16 %v2039, %v2031
    %v2232 = vpack.c.b16 %v2040, %v2032
    %v2233 = vpack.c.b16 %v2041, %v2033
    %v2234 = vpack.c.b16 %v2042, %v2034
    %v2235 = vpack.c.b16 %v2043, %v2035
    %v2236 = vpack.c.b16 %v2052, %v2044
    %v2237 = vpack.c.b16 %v2053, %v2045
    %v2238 = vpack.c.b16 %v2054, %v2046
    %v2239 = vpack.c.b16 %v2055, %v2047
    %v2240 = vpack.c.b16 %v2056, %v2048
    %v2241 = vpack.c.b16 %v2057, %v2049
    %v2242 = vpack.c.b16 %v2058, %v2050
    %v2243 = vpack.c.b16 %v2059, %v2051
    %v2244 = vpack.c.b16 %v2068, %v2060
    %v2245 = vpack.c.b16 %v2069, %v2061
    %v2246 = vpack.c.b16 %v2070, %v2062
    %v2247 = vpack.c.b16 %v2071, %v2063
    %v2248 = vpack.c.b16 %v2072, %v2064
    %v2249 = vpack.c.b16 %v2073, %v2065
    %v2250 = vpack.c.b16 %v2074, %v2066
    %v2251 = vpack.c.b16 %v2075, %v2067
    %v2252 = vpack.c.b16 %v2084, %v2076
    %v2253 = vpack.c.b16 %v2085, %v2077
    %v2254 = vpack.c.b16 %v2086, %v2078
    %v2255 = vpack.c.b16 %v2087, %v2079
    %v2256 = vpack.c.b16 %v2088, %v2080
    %v2257 = vpack.c.b16 %v2089, %v2081
    %v2258 = vpack.c.b16 %v2090, %v2082
    %v2259 = vpack.c.b16 %v2091, %v2083
    %v2260 = vpack.c.b16 %v2100, %v2092
    %v2261 = vpack.c.b16 %v2101, %v2093
    %v2262 = vpack.c.b16 %v2102, %v2094
    %v2263 = vpack.c.b16 %v2103, %v2095
    %v2264 = vpack.c.b16 %v2104, %v2096
    %v2265 = vpack.c.b16 %v2105, %v2097
    %v2266 = vpack.c.b16 %v2106, %v2098
    %v2267 = vpack.c.b16 %v2107, %v2099
    %v2268 = vpack.c.b16 %v2116, %v2108
    %v2269 = vpack.c.b16 %v2117, %v2109
    %v2270 = vpack.c.b16 %v2118, %v2110
    %v2271 = vpack.c.b16 %v2119, %v2111
    %v2272 = vpack.c.b16 %v2120, %v2112
    %v2273 = vpack.c.b16 %v2121, %v2113
    %v2274 = vpack.c.b16 %v2122, %v2114
    %v2275 = vpack.c.b16 %v2123, %v2115
    %v2421 = vsel %vm1203, %v1660, 0
    %v2424 = vsel %vm1203, %v1663, 0
    %v2427 = vsel %vm1210, %v2268, 0
    %v2430 = vsel %vm1210, %v2269, 0
    %v2433 = vsel %vm1210, %v2270, 0
    %v2436 = vsel %vm1210, %v2271, 0
    %v2439 = vsel %vm1210, %v2272, 0
    %v2442 = vsel %vm1210, %v2273, 0
    %v2445 = vsel %vm1210, %v2274, 0
    %v2448 = vsel %vm1210, %v2275, 0
    %2450 = vmatprep.subr.bf16.mxu0 %v2125
    %2451 = vmatpush1.bf16.msra.mxu0 %v2124
    %2452 = vmatprep.subr.bf16.mxu0 %v2133
    %2453 = vmatpush1.bf16.msra.mxu0 %v2132
    %2454 = vmatprep.subr.bf16.mxu0 %v2141
    %2455 = vmatpush1.bf16.msra.mxu0 %v2140
    %2456 = vmatprep.subr.bf16.mxu0 %v2149
    %2457 = vmatpush1.bf16.msra.mxu0 %v2148
    %2458 = vmatprep.subr.bf16.mxu0 %v2157
    %2459 = vmatpush1.bf16.msra.mxu0 %v2156
    %2460 = vmatprep.subr.bf16.mxu0 %v2165
    %2461 = vmatpush1.bf16.msra.mxu0 %v2164
    %2462 = vmatprep.subr.bf16.mxu0 %v2173
    %2463 = vmatpush1.bf16.msra.mxu0 %v2172
    %2464 = vmatprep.subr.bf16.mxu0 %v2181
    %2465 = vmatpush1.bf16.msra.mxu0 %v2180
    %2466 = vmatprep.subr.bf16.mxu0 %v2189
    %2467 = vmatpush1.bf16.msra.mxu0 %v2188
    %2468 = vmatprep.subr.bf16.mxu0 %v2197
    %2469 = vmatpush1.bf16.msra.mxu0 %v2196
    %2470 = vmatprep.subr.bf16.mxu0 %v2205
    %2471 = vmatpush1.bf16.msra.mxu0 %v2204
    %2472 = vmatprep.subr.bf16.mxu0 %v2213
    %2473 = vmatpush1.bf16.msra.mxu0 %v2212
    %2474 = vmatprep.subr.bf16.mxu0 %v2221
    %2475 = vmatpush1.bf16.msra.mxu0 %v2220
    %2476 = vmatprep.subr.bf16.mxu0 %v2229
    %2477 = vmatpush1.bf16.msra.mxu0 %v2228
    %2478 = vmatprep.subr.bf16.mxu0 %v2237
    %2479 = vmatpush1.bf16.msra.mxu0 %v2236
    %2480 = vmatprep.subr.bf16.mxu0 %v2245
    %2481 = vmatpush1.bf16.msra.mxu0 %v2244
    %2482 = vmatprep.mubr.bf16.mxu0 %v1659
    %2483 = vmatmul.mubr.bf16.gmra.mrb[0].mxu0 %v1658
    %v2484 = vpop.f32.mrb[0].mxu0
    %v2485 = vadd.f32 %v1321, %v2484
    %v2486 = vpop.f32.mrb[0].mxu0
    %v2487 = vadd.f32 %v1323, %v2486
    %v2488 = vpop.f32.mrb[0].mxu0
    %v2489 = vadd.f32 %v1325, %v2488
    %v2490 = vpop.f32.mrb[0].mxu0
    %v2491 = vadd.f32 %v1327, %v2490
    %2492 = vmatprep.mubr.bf16.mxu0 %v1662
    %2493 = vmatmul.mubr.bf16.gmra.mrb[0].mxu0 %v1661
    %v2494 = vpop.f32.mrb[0].mxu0
    %v2495 = vadd.f32 %v1331, %v2494
    %v2496 = vpop.f32.mrb[0].mxu0
    %v2497 = vadd.f32 %v1333, %v2496
    %v2498 = vpop.f32.mrb[0].mxu0
    %v2499 = vpop.f32.mrb[0].mxu0
    %2500 = vdwg.mxu0
    %2501 = vmatprep.subr.bf16.mxu0 %v2253
    %2502 = vmatpush1.bf16.msra.mxu0 %v2252
    %2503 = vmatprep.subr.bf16.mxu0 %v2261
    %2504 = vmatpush1.bf16.msra.mxu0 %v2260
    %2505 = vmatprep.subr.bf16.mxu0 %v2430
    %2506 = vmatpush1.bf16.msra.mxu0 %v2427
    %2507 = vmatprep.subr.bf16.mxu0 0
    %2508 = vmatpush1.bf16.msra.mxu0 0
    %2509 = vmatprep.subr.bf16.mxu0 0
    %2510 = vmatpush1.bf16.msra.mxu0 0
    %2511 = vmatprep.subr.bf16.mxu0 0
    %2512 = vmatpush1.bf16.msra.mxu0 0
    %2513 = vmatprep.subr.bf16.mxu0 0
    %2514 = vmatpush1.bf16.msra.mxu0 0
    %2515 = vmatprep.subr.bf16.mxu0 0
    %2516 = vmatpush1.bf16.msra.mxu0 0
    %2517 = vmatprep.subr.bf16.mxu0 0
    %2518 = vmatpush1.bf16.msra.mxu0 0
    %2519 = vmatprep.subr.bf16.mxu0 0
    %2520 = vmatpush1.bf16.msra.mxu0 0
    %2521 = vmatprep.subr.bf16.mxu0 0
    %2522 = vmatpush1.bf16.msra.mxu0 0
    %2523 = vmatprep.subr.bf16.mxu0 0
    %2524 = vmatpush1.bf16.msra.mxu0 0
    %2525 = vmatprep.subr.bf16.mxu0 0
    %2526 = vmatpush1.bf16.msra.mxu0 0
    %2527 = vmatprep.subr.bf16.mxu0 0
    %2528 = vmatpush1.bf16.msra.mxu0 0
    %2529 = vmatprep.subr.bf16.mxu0 0
    %2530 = vmatpush1.bf16.msra.mxu0 0
    %2531 = vmatprep.subr.bf16.mxu0 0
    %2532 = vmatpush1.bf16.msra.mxu0 0
    %2533 = vmatprep.mubr.bf16.mxu0 0
    %2534 = vmatmul.mubr.bf16.gmra.mrb[0].mxu0 %v2421
    %v2535 = vpop.f32.mrb[0].mxu0
    %v2536 = vadd.f32 %v2485, %v2535
    %v2537 = vpop.f32.mrb[0].mxu0
    %v2538 = vadd.f32 %v2487, %v2537
    %v2539 = vpop.f32.mrb[0].mxu0
    %v2540 = vadd.f32 %v2489, %v2539
    %v2541 = vpop.f32.mrb[0].mxu0
    %v2542 = vadd.f32 %v2491, %v2541
    %2543 = vmatprep.mubr.bf16.mxu0 0
    %2544 = vmatmul.mubr.bf16.gmra.mrb[0].mxu0 %v2424
    %v2545 = vpop.f32.mrb[0].mxu0
    %v2546 = vadd.f32 %v2495, %v2545
    %v2547 = vpop.f32.mrb[0].mxu0
    %v2548 = vadd.f32 %v2497, %v2547
    %v2549 = vpop.f32.mrb[0].mxu0
    %v2550 = vpop.f32.mrb[0].mxu0
    %2551 = vdwg.mxu0
    %2552 = vmatprep.subr.bf16.mxu0 %v2127
    %2553 = vmatpush1.bf16.msra.mxu0 %v2126
    %2554 = vmatprep.subr.bf16.mxu0 %v2135
    %2555 = vmatpush1.bf16.msra.mxu0 %v2134
    %2556 = vmatprep.subr.bf16.mxu0 %v2143
    %2557 = vmatpush1.bf16.msra.mxu0 %v2142
    %2558 = vmatprep.subr.bf16.mxu0 %v2151
    %2559 = vmatpush1.bf16.msra.mxu0 %v2150
    %2560 = vmatprep.subr.bf16.mxu0 %v2159
    %2561 = vmatpush1.bf16.msra.mxu0 %v2158
    %2562 = vmatprep.subr.bf16.mxu0 %v2167
    %2563 = vmatpush1.bf16.msra.mxu0 %v2166
    %2564 = vmatprep.subr.bf16.mxu0 %v2175
    %2565 = vmatpush1.bf16.msra.mxu0 %v2174
    %2566 = vmatprep.subr.bf16.mxu0 %v2183
    %2567 = vmatpush1.bf16.msra.mxu0 %v2182
    %2568 = vmatprep.subr.bf16.mxu0 %v2191
    %2569 = vmatpush1.bf16.msra.mxu0 %v2190
    %2570 = vmatprep.subr.bf16.mxu0 %v2199
    %2571 = vmatpush1.bf16.msra.mxu0 %v2198
    %2572 = vmatprep.subr.bf16.mxu0 %v2207
    %2573 = vmatpush1.bf16.msra.mxu0 %v2206
    %2574 = vmatprep.subr.bf16.mxu0 %v2215
    %2575 = vmatpush1.bf16.msra.mxu0 %v2214
    %2576 = vmatprep.subr.bf16.mxu0 %v2223
    %2577 = vmatpush1.bf16.msra.mxu0 %v2222
    %2578 = vmatprep.subr.bf16.mxu0 %v2231
    %2579 = vmatpush1.bf16.msra.mxu0 %v2230
    %2580 = vmatprep.subr.bf16.mxu0 %v2239
    %2581 = vmatpush1.bf16.msra.mxu0 %v2238
    %2582 = vmatprep.subr.bf16.mxu0 %v2247
    %2583 = vmatpush1.bf16.msra.mxu0 %v2246
    %2584 = vmatprep.mubr.bf16.mxu0 %v1659
    %2585 = vmatmul.mubr.bf16.gmra.mrb[0].mxu0 %v1658
    %v2586 = vpop.f32.mrb[0].mxu0
    %v2587 = vadd.f32 %v1423, %v2586
    %v2588 = vpop.f32.mrb[0].mxu0
    %v2589 = vadd.f32 %v1425, %v2588
    %v2590 = vpop.f32.mrb[0].mxu0
    %v2591 = vadd.f32 %v1427, %v2590
    %v2592 = vpop.f32.mrb[0].mxu0
    %v2593 = vadd.f32 %v1429, %v2592
    %2594 = vmatprep.mubr.bf16.mxu0 %v1662
    %2595 = vmatmul.mubr.bf16.gmra.mrb[0].mxu0 %v1661
    %v2596 = vpop.f32.mrb[0].mxu0
    %v2597 = vadd.f32 %v1433, %v2596
    %v2598 = vpop.f32.mrb[0].mxu0
    %v2599 = vadd.f32 %v1435, %v2598
    %v2600 = vpop.f32.mrb[0].mxu0
    %v2601 = vpop.f32.mrb[0].mxu0
    %2602 = vdwg.mxu0
    %2603 = vmatprep.subr.bf16.mxu0 %v2255
    %2604 = vmatpush1.bf16.msra.mxu0 %v2254
    %2605 = vmatprep.subr.bf16.mxu0 %v2263
    %2606 = vmatpush1.bf16.msra.mxu0 %v2262
    %2607 = vmatprep.subr.bf16.mxu0 %v2436
    %2608 = vmatpush1.bf16.msra.mxu0 %v2433
    %2609 = vmatprep.subr.bf16.mxu0 0
    %2610 = vmatpush1.bf16.msra.mxu0 0
    %2611 = vmatprep.subr.bf16.mxu0 0
    %2612 = vmatpush1.bf16.msra.mxu0 0
    %2613 = vmatprep.subr.bf16.mxu0 0
    %2614 = vmatpush1.bf16.msra.mxu0 0
    %2615 = vmatprep.subr.bf16.mxu0 0
    %2616 = vmatpush1.bf16.msra.mxu0 0
    %2617 = vmatprep.subr.bf16.mxu0 0
    %2618 = vmatpush1.bf16.msra.mxu0 0
    %2619 = vmatprep.subr.bf16.mxu0 0
    %2620 = vmatpush1.bf16.msra.mxu0 0
    %2621 = vmatprep.subr.bf16.mxu0 0
    %2622 = vmatpush1.bf16.msra.mxu0 0
    %2623 = vmatprep.subr.bf16.mxu0 0
    %2624 = vmatpush1.bf16.msra.mxu0 0
    %2625 = vmatprep.subr.bf16.mxu0 0
    %2626 = vmatpush1.bf16.msra.mxu0 0
    %2627 = vmatprep.subr.bf16.mxu0 0
    %2628 = vmatpush1.bf16.msra.mxu0 0
    %2629 = vmatprep.subr.bf16.mxu0 0
    %2630 = vmatpush1.bf16.msra.mxu0 0
    %2631 = vmatprep.subr.bf16.mxu0 0
    %2632 = vmatpush1.bf16.msra.mxu0 0
    %2633 = vmatprep.subr.bf16.mxu0 0
    %2634 = vmatpush1.bf16.msra.mxu0 0
    %2635 = vmatprep.mubr.bf16.mxu0 0
    %2636 = vmatmul.mubr.bf16.gmra.mrb[0].mxu0 %v2421
    %v2637 = vpop.f32.mrb[0].mxu0
    %v2638 = vadd.f32 %v2587, %v2637
    %v2639 = vpop.f32.mrb[0].mxu0
    %v2640 = vadd.f32 %v2589, %v2639
    %v2641 = vpop.f32.mrb[0].mxu0
    %v2642 = vadd.f32 %v2591, %v2641
    %v2643 = vpop.f32.mrb[0].mxu0
    %v2644 = vadd.f32 %v2593, %v2643
    %2645 = vmatprep.mubr.bf16.mxu0 0
    %2646 = vmatmul.mubr.bf16.gmra.mrb[0].mxu0 %v2424
    %v2647 = vpop.f32.mrb[0].mxu0
    %v2648 = vadd.f32 %v2597, %v2647
    %v2649 = vpop.f32.mrb[0].mxu0
    %v2650 = vadd.f32 %v2599, %v2649
    %v2651 = vpop.f32.mrb[0].mxu0
    %v2652 = vpop.f32.mrb[0].mxu0
    %2653 = vdwg.mxu0
    %2654 = vmatprep.subr.bf16.mxu0 %v2129
    %2655 = vmatpush1.bf16.msra.mxu0 %v2128
    %2656 = vmatprep.subr.bf16.mxu0 %v2137
    %2657 = vmatpush1.bf16.msra.mxu0 %v2136
    %2658 = vmatprep.subr.bf16.mxu0 %v2145
    %2659 = vmatpush1.bf16.msra.mxu0 %v2144
    %2660 = vmatprep.subr.bf16.mxu0 %v2153
    %2661 = vmatpush1.bf16.msra.mxu0 %v2152
    %2662 = vmatprep.subr.bf16.mxu0 %v2161
    %2663 = vmatpush1.bf16.msra.mxu0 %v2160
    %2664 = vmatprep.subr.bf16.mxu0 %v2169
    %2665 = vmatpush1.bf16.msra.mxu0 %v2168
    %2666 = vmatprep.subr.bf16.mxu0 %v2177
    %2667 = vmatpush1.bf16.msra.mxu0 %v2176
    %2668 = vmatprep.subr.bf16.mxu0 %v2185
    %2669 = vmatpush1.bf16.msra.mxu0 %v2184
    %2670 = vmatprep.subr.bf16.mxu0 %v2193
    %2671 = vmatpush1.bf16.msra.mxu0 %v2192
    %2672 = vmatprep.subr.bf16.mxu0 %v2201
    %2673 = vmatpush1.bf16.msra.mxu0 %v2200
    %2674 = vmatprep.subr.bf16.mxu0 %v2209
    %2675 = vmatpush1.bf16.msra.mxu0 %v2208
    %2676 = vmatprep.subr.bf16.mxu0 %v2217
    %2677 = vmatpush1.bf16.msra.mxu0 %v2216
    %2678 = vmatprep.subr.bf16.mxu0 %v2225
    %2679 = vmatpush1.bf16.msra.mxu0 %v2224
    %2680 = vmatprep.subr.bf16.mxu0 %v2233
    %2681 = vmatpush1.bf16.msra.mxu0 %v2232
    %2682 = vmatprep.subr.bf16.mxu0 %v2241
    %2683 = vmatpush1.bf16.msra.mxu0 %v2240
    %2684 = vmatprep.subr.bf16.mxu0 %v2249
    %2685 = vmatpush1.bf16.msra.mxu0 %v2248
    %2686 = vmatprep.mubr.bf16.mxu0 %v1659
    %2687 = vmatmul.mubr.bf16.gmra.mrb[0].mxu0 %v1658
    %v2688 = vpop.f32.mrb[0].mxu0
    %v2689 = vadd.f32 %v1525, %v2688
    %v2690 = vpop.f32.mrb[0].mxu0
    %v2691 = vadd.f32 %v1527, %v2690
    %v2692 = vpop.f32.mrb[0].mxu0
    %v2693 = vadd.f32 %v1529, %v2692
    %v2694 = vpop.f32.mrb[0].mxu0
    %v2695 = vadd.f32 %v1531, %v2694
    %2696 = vmatprep.mubr.bf16.mxu0 %v1662
    %2697 = vmatmul.mubr.bf16.gmra.mrb[0].mxu0 %v1661
    %v2698 = vpop.f32.mrb[0].mxu0
    %v2699 = vadd.f32 %v1535, %v2698
    %v2700 = vpop.f32.mrb[0].mxu0
    %v2701 = vadd.f32 %v1537, %v2700
    %v2702 = vpop.f32.mrb[0].mxu0
    %v2703 = vpop.f32.mrb[0].mxu0
    %2704 = vdwg.mxu0
    %2705 = vmatprep.subr.bf16.mxu0 %v2257
    %2706 = vmatpush1.bf16.msra.mxu0 %v2256
    %2707 = vmatprep.subr.bf16.mxu0 %v2265
    %2708 = vmatpush1.bf16.msra.mxu0 %v2264
    %2709 = vmatprep.subr.bf16.mxu0 %v2442
    %2710 = vmatpush1.bf16.msra.mxu0 %v2439
    %2711 = vmatprep.subr.bf16.mxu0 0
    %2712 = vmatpush1.bf16.msra.mxu0 0
    %2713 = vmatprep.subr.bf16.mxu0 0
    %2714 = vmatpush1.bf16.msra.mxu0 0
    %2715 = vmatprep.subr.bf16.mxu0 0
    %2716 = vmatpush1.bf16.msra.mxu0 0
    %2717 = vmatprep.subr.bf16.mxu0 0
    %2718 = vmatpush1.bf16.msra.mxu0 0
    %2719 = vmatprep.subr.bf16.mxu0 0
    %2720 = vmatpush1.bf16.msra.mxu0 0
    %2721 = vmatprep.subr.bf16.mxu0 0
    %2722 = vmatpush1.bf16.msra.mxu0 0
    %2723 = vmatprep.subr.bf16.mxu0 0
    %2724 = vmatpush1.bf16.msra.mxu0 0
    %2725 = vmatprep.subr.bf16.mxu0 0
    %2726 = vmatpush1.bf16.msra.mxu0 0
    %2727 = vmatprep.subr.bf16.mxu0 0
    %2728 = vmatpush1.bf16.msra.mxu0 0
    %2729 = vmatprep.subr.bf16.mxu0 0
    %2730 = vmatpush1.bf16.msra.mxu0 0
    %2731 = vmatprep.subr.bf16.mxu0 0
    %2732 = vmatpush1.bf16.msra.mxu0 0
    %2733 = vmatprep.subr.bf16.mxu0 0
    %2734 = vmatpush1.bf16.msra.mxu0 0
    %2735 = vmatprep.subr.bf16.mxu0 0
    %2736 = vmatpush1.bf16.msra.mxu0 0
    %2737 = vmatprep.mubr.bf16.mxu0 0
    %2738 = vmatmul.mubr.bf16.gmra.mrb[0].mxu0 %v2421
    %v2739 = vpop.f32.mrb[0].mxu0
    %v2740 = vadd.f32 %v2689, %v2739
    %v2741 = vpop.f32.mrb[0].mxu0
    %v2742 = vadd.f32 %v2691, %v2741
    %v2743 = vpop.f32.mrb[0].mxu0
    %v2744 = vadd.f32 %v2693, %v2743
    %v2745 = vpop.f32.mrb[0].mxu0
    %v2746 = vadd.f32 %v2695, %v2745
    %2747 = vmatprep.mubr.bf16.mxu0 0
    %2748 = vmatmul.mubr.bf16.gmra.mrb[0].mxu0 %v2424
    %v2749 = vpop.f32.mrb[0].mxu0
    %v2750 = vadd.f32 %v2699, %v2749
    %v2751 = vpop.f32.mrb[0].mxu0
    %v2752 = vadd.f32 %v2701, %v2751
    %v2753 = vpop.f32.mrb[0].mxu0
    %v2754 = vpop.f32.mrb[0].mxu0
    %2755 = vdwg.mxu0
    %2756 = vmatprep.subr.bf16.mxu0 %v2131
    %2757 = vmatpush1.bf16.msra.mxu0 %v2130
    %2758 = vmatprep.subr.bf16.mxu0 %v2139
    %2759 = vmatpush1.bf16.msra.mxu0 %v2138
    %2760 = vmatprep.subr.bf16.mxu0 %v2147
    %2761 = vmatpush1.bf16.msra.mxu0 %v2146
    %2762 = vmatprep.subr.bf16.mxu0 %v2155
    %2763 = vmatpush1.bf16.msra.mxu0 %v2154
    %2764 = vmatprep.subr.bf16.mxu0 %v2163
    %2765 = vmatpush1.bf16.msra.mxu0 %v2162
    %2766 = vmatprep.subr.bf16.mxu0 %v2171
    %2767 = vmatpush1.bf16.msra.mxu0 %v2170
    %2768 = vmatprep.subr.bf16.mxu0 %v2179
    %2769 = vmatpush1.bf16.msra.mxu0 %v2178
    %2770 = vmatprep.subr.bf16.mxu0 %v2187
    %2771 = vmatpush1.bf16.msra.mxu0 %v2186
    %2772 = vmatprep.subr.bf16.mxu0 %v2195
    %2773 = vmatpush1.bf16.msra.mxu0 %v2194
    %2774 = vmatprep.subr.bf16.mxu0 %v2203
    %2775 = vmatpush1.bf16.msra.mxu0 %v2202
    %2776 = vmatprep.subr.bf16.mxu0 %v2211
    %2777 = vmatpush1.bf16.msra.mxu0 %v2210
    %2778 = vmatprep.subr.bf16.mxu0 %v2219
    %2779 = vmatpush1.bf16.msra.mxu0 %v2218
    %2780 = vmatprep.subr.bf16.mxu0 %v2227
    %2781 = vmatpush1.bf16.msra.mxu0 %v2226
    %2782 = vmatprep.subr.bf16.mxu0 %v2235
    %2783 = vmatpush1.bf16.msra.mxu0 %v2234
    %2784 = vmatprep.subr.bf16.mxu0 %v2243
    %2785 = vmatpush1.bf16.msra.mxu0 %v2242
    %2786 = vmatprep.subr.bf16.mxu0 %v2251
    %2787 = vmatpush1.bf16.msra.mxu0 %v2250
    %2788 = vmatprep.mubr.bf16.mxu0 %v1659
    %2789 = vmatmul.mubr.bf16.gmra.mrb[0].mxu0 %v1658
    %v2790 = vpop.f32.mrb[0].mxu0
    %v2791 = vadd.f32 %v1627, %v2790
    %v2792 = vpop.f32.mrb[0].mxu0
    %v2793 = vadd.f32 %v1629, %v2792
    %v2794 = vpop.f32.mrb[0].mxu0
    %v2795 = vadd.f32 %v1631, %v2794
    %v2796 = vpop.f32.mrb[0].mxu0
    %v2797 = vadd.f32 %v1633, %v2796
    %2798 = vmatprep.mubr.bf16.mxu0 %v1662
    %2799 = vmatmul.mubr.bf16.gmra.mrb[0].mxu0 %v1661
    %v2800 = vpop.f32.mrb[0].mxu0
    %v2801 = vadd.f32 %v1637, %v2800
    %v2802 = vpop.f32.mrb[0].mxu0
    %v2803 = vadd.f32 %v1639, %v2802
    %v2804 = vpop.f32.mrb[0].mxu0
    %v2805 = vpop.f32.mrb[0].mxu0
    %2806 = vdwg.mxu0
    %2807 = vmatprep.subr.bf16.mxu0 %v2259
    %2808 = vmatpush1.bf16.msra.mxu0 %v2258
    %2809 = vmatprep.subr.bf16.mxu0 %v2267
    %2810 = vmatpush1.bf16.msra.mxu0 %v2266
    %2811 = vmatprep.subr.bf16.mxu0 %v2448
    %2812 = vmatpush1.bf16.msra.mxu0 %v2445
    %2813 = vmatprep.subr.bf16.mxu0 0
    %2814 = vmatpush1.bf16.msra.mxu0 0
    %2815 = vmatprep.subr.bf16.mxu0 0
    %2816 = vmatpush1.bf16.msra.mxu0 0
    %2817 = vmatprep.subr.bf16.mxu0 0
    %2818 = vmatpush1.bf16.msra.mxu0 0
    %2819 = vmatprep.subr.bf16.mxu0 0
    %2820 = vmatpush1.bf16.msra.mxu0 0
    %2821 = vmatprep.subr.bf16.mxu0 0
    %2822 = vmatpush1.bf16.msra.mxu0 0
    %2823 = vmatprep.subr.bf16.mxu0 0
    %2824 = vmatpush1.bf16.msra.mxu0 0
    %2825 = vmatprep.subr.bf16.mxu0 0
    %2826 = vmatpush1.bf16.msra.mxu0 0
    %2827 = vmatprep.subr.bf16.mxu0 0
    %2828 = vmatpush1.bf16.msra.mxu0 0
    %2829 = vmatprep.subr.bf16.mxu0 0
    %2830 = vmatpush1.bf16.msra.mxu0 0
    %2831 = vmatprep.subr.bf16.mxu0 0
    %2832 = vmatpush1.bf16.msra.mxu0 0
    %2833 = vmatprep.subr.bf16.mxu0 0
    %2834 = vmatpush1.bf16.msra.mxu0 0
    %2835 = vmatprep.subr.bf16.mxu0 0
    %2836 = vmatpush1.bf16.msra.mxu0 0
    %2837 = vmatprep.subr.bf16.mxu0 0
    %2838 = vmatpush1.bf16.msra.mxu0 0
    %2839 = vmatprep.mubr.bf16.mxu0 0
    %2840 = vmatmul.mubr.bf16.gmra.mrb[0].mxu0 %v2421
    %v2841 = vpop.f32.mrb[0].mxu0
    %v2842 = vadd.f32 %v2791, %v2841
    %v2843 = vpop.f32.mrb[0].mxu0
    %v2844 = vadd.f32 %v2793, %v2843
    %v2845 = vpop.f32.mrb[0].mxu0
    %v2846 = vadd.f32 %v2795, %v2845
    %v2847 = vpop.f32.mrb[0].mxu0
    %v2848 = vadd.f32 %v2797, %v2847
    %2849 = vmatprep.mubr.bf16.mxu0 0
    %2850 = vmatmul.mubr.bf16.gmra.mrb[0].mxu0 %v2424
    %v2851 = vpop.f32.mrb[0].mxu0
    %v2852 = vadd.f32 %v2801, %v2851
    %v2853 = vpop.f32.mrb[0].mxu0
    %v2854 = vadd.f32 %v2803, %v2853
    %v2855 = vpop.f32.mrb[0].mxu0
    %v2856 = vpop.f32.mrb[0].mxu0
    %2857 = vdwg.mxu0
    %v2858 = vld [vmem:[#allocation7] sm:$0xff]
    %v2859 = vld [vmem:[#allocation7 + $0x8] sm:$0xf]
    %v2860 = vld [vmem:[#allocation7 + $0xc] sm:$0xff]
    %v2861 = vld [vmem:[#allocation7 + $0x14] sm:$0xf]
    %v2862 = vld [vmem:[#allocation7 + $0x18] sm:$0xff]
    %v2863 = vld [vmem:[#allocation7 + $0x20] sm:$0xf]
    %v2864 = vld [vmem:[#allocation11] sm:$0xff]
    %v2865 = vld [vmem:[#allocation11 + $0x8] sm:$0xff]
    %v2866 = vld [vmem:[#allocation11 + $0x10] sm:$0xff]
    %v2867 = vld [vmem:[#allocation11 + $0x18] sm:$0xff]
    %v2868 = vld [vmem:[#allocation11 + $0x20] sm:$0xff]
    %v2869 = vld [vmem:[#allocation11 + $0x28] sm:$0xff]
    %v2870 = vld [vmem:[#allocation11 + $0x30] sm:$0xff]
    %v2871 = vld [vmem:[#allocation11 + $0x38] sm:$0xff]
    %v2872 = vld [vmem:[#allocation11 + $0x40] sm:$0xff]
    %v2873 = vld [vmem:[#allocation11 + $0x48] sm:$0xff]
    %v2874 = vld [vmem:[#allocation11 + $0x50] sm:$0xff]
    %v2875 = vld [vmem:[#allocation11 + $0x58] sm:$0xff]
    %v2876 = vld [vmem:[#allocation11 + $0x60] sm:$0xff]
    %v2877 = vld [vmem:[#allocation11 + $0x68] sm:$0xff]
    %v2878 = vld [vmem:[#allocation11 + $0x70] sm:$0xff]
    %v2879 = vld [vmem:[#allocation11 + $0x78] sm:$0xff]
    %v2880 = vld [vmem:[#allocation11 + $0x80] sm:$0xff]
    %v2881 = vld [vmem:[#allocation11 + $0x88] sm:$0xff]
    %v2882 = vld [vmem:[#allocation11 + $0x90] sm:$0xff]
    %v2883 = vld [vmem:[#allocation11 + $0x98] sm:$0xff]
    %v2884 = vld [vmem:[#allocation11 + $0xa0] sm:$0xff]
    %v2885 = vld [vmem:[#allocation11 + $0xa8] sm:$0xff]
    %v2886 = vld [vmem:[#allocation11 + $0xb0] sm:$0xff]
    %v2887 = vld [vmem:[#allocation11 + $0xb8] sm:$0xff]
    %v2888 = vld [vmem:[#allocation11 + $0xc0] sm:$0xff]
    %v2889 = vld [vmem:[#allocation11 + $0xc8] sm:$0xff]
    %v2890 = vld [vmem:[#allocation11 + $0xd0] sm:$0xff]
    %v2891 = vld [vmem:[#allocation11 + $0xd8] sm:$0xff]
    %v2892 = vld [vmem:[#allocation11 + $0xe0] sm:$0xff]
    %v2893 = vld [vmem:[#allocation11 + $0xe8] sm:$0xff]
    %v2894 = vld [vmem:[#allocation11 + $0xf0] sm:$0xff]
    %v2895 = vld [vmem:[#allocation11 + $0xf8] sm:$0xff]
    %v2896 = vld [vmem:[#allocation11 + $0x100] sm:$0xff]
    %v2897 = vld [vmem:[#allocation11 + $0x108] sm:$0xff]
    %v2898 = vld [vmem:[#allocation11 + $0x110] sm:$0xff]
    %v2899 = vld [vmem:[#allocation11 + $0x118] sm:$0xff]
    %v2900 = vld [vmem:[#allocation11 + $0x120] sm:$0xff]
    %v2901 = vld [vmem:[#allocation11 + $0x128] sm:$0xff]
    %v2902 = vld [vmem:[#allocation11 + $0x130] sm:$0xff]
    %v2903 = vld [vmem:[#allocation11 + $0x138] sm:$0xff]
    %v2904 = vld [vmem:[#allocation11 + $0x140] sm:$0xff]
    %v2905 = vld [vmem:[#allocation11 + $0x148] sm:$0xff]
    %v2906 = vld [vmem:[#allocation11 + $0x150] sm:$0xff]
    %v2907 = vld [vmem:[#allocation11 + $0x158] sm:$0xff]
    %v2908 = vld [vmem:[#allocation11 + $0x160] sm:$0xff]
    %v2909 = vld [vmem:[#allocation11 + $0x168] sm:$0xff]
    %v2910 = vld [vmem:[#allocation11 + $0x170] sm:$0xff]
    %v2911 = vld [vmem:[#allocation11 + $0x178] sm:$0xff]
    %v2912 = vld [vmem:[#allocation11 + $0x180] sm:$0xff]
    %v2913 = vld [vmem:[#allocation11 + $0x188] sm:$0xff]
    %v2914 = vld [vmem:[#allocation11 + $0x190] sm:$0xff]
    %v2915 = vld [vmem:[#allocation11 + $0x198] sm:$0xff]
    %v2916 = vld [vmem:[#allocation11 + $0x1a0] sm:$0xff]
    %v2917 = vld [vmem:[#allocation11 + $0x1a8] sm:$0xff]
    %v2918 = vld [vmem:[#allocation11 + $0x1b0] sm:$0xff]
    %v2919 = vld [vmem:[#allocation11 + $0x1b8] sm:$0xff]
    %v2920 = vld [vmem:[#allocation11 + $0x1c0] sm:$0xff]
    %v2921 = vld [vmem:[#allocation11 + $0x1c8] sm:$0xff]
    %v2922 = vld [vmem:[#allocation11 + $0x1d0] sm:$0xff]
    %v2923 = vld [vmem:[#allocation11 + $0x1d8] sm:$0xff]
    %v2924 = vld [vmem:[#allocation11 + $0x1e0] sm:$0xff]
    %v2925 = vld [vmem:[#allocation11 + $0x1e8] sm:$0xff]
    %v2926 = vld [vmem:[#allocation11 + $0x1f0] sm:$0xff]
    %v2927 = vld [vmem:[#allocation11 + $0x1f8] sm:$0xff]
    %v2928 = vld [vmem:[#allocation11 + $0x200] sm:$0xff]
    %v2929 = vld [vmem:[#allocation11 + $0x208] sm:$0xff]
    %v2930 = vld [vmem:[#allocation11 + $0x210] sm:$0xff]
    %v2931 = vld [vmem:[#allocation11 + $0x218] sm:$0xff]
    %v2932 = vld [vmem:[#allocation11 + $0x220] sm:$0xff]
    %v2933 = vld [vmem:[#allocation11 + $0x228] sm:$0xff]
    %v2934 = vld [vmem:[#allocation11 + $0x230] sm:$0xff]
    %v2935 = vld [vmem:[#allocation11 + $0x238] sm:$0xff]
    %v2936 = vld [vmem:[#allocation11 + $0x240] sm:$0xff]
    %v2937 = vld [vmem:[#allocation11 + $0x248] sm:$0xff]
    %v2938 = vld [vmem:[#allocation11 + $0x250] sm:$0xff]
    %v2939 = vld [vmem:[#allocation11 + $0x258] sm:$0xff]
    %v2940 = vld [vmem:[#allocation11 + $0x260] sm:$0xff]
    %v2941 = vld [vmem:[#allocation11 + $0x268] sm:$0xff]
    %v2942 = vld [vmem:[#allocation11 + $0x270] sm:$0xff]
    %v2943 = vld [vmem:[#allocation11 + $0x278] sm:$0xff]
    %v2944 = vld [vmem:[#allocation11 + $0x280] sm:$0xff]
    %v2945 = vld [vmem:[#allocation11 + $0x288] sm:$0xff]
    %v2946 = vld [vmem:[#allocation11 + $0x290] sm:$0xff]
    %v2947 = vld [vmem:[#allocation11 + $0x298] sm:$0xff]
    %v2948 = vld [vmem:[#allocation11 + $0x2a0] sm:$0xff]
    %v2949 = vld [vmem:[#allocation11 + $0x2a8] sm:$0xff]
    %v2950 = vld [vmem:[#allocation11 + $0x2b0] sm:$0xff]
    %v2951 = vld [vmem:[#allocation11 + $0x2b8] sm:$0xff]
    %v2952 = vld [vmem:[#allocation11 + $0x2c0] sm:$0xff]
    %v2953 = vld [vmem:[#allocation11 + $0x2c8] sm:$0xff]
    %v2954 = vld [vmem:[#allocation11 + $0x2d0] sm:$0xff]
    %v2955 = vld [vmem:[#allocation11 + $0x2d8] sm:$0xff]
    %v2956 = vld [vmem:[#allocation11 + $0x2e0] sm:$0xff]
    %v2957 = vld [vmem:[#allocation11 + $0x2e8] sm:$0xff]
    %v2958 = vld [vmem:[#allocation11 + $0x2f0] sm:$0xff]
    %v2959 = vld [vmem:[#allocation11 + $0x2f8] sm:$0xff]
    %v2960 = vld [vmem:[#allocation11 + $0x300] sm:$0xff]
    %v2961 = vld [vmem:[#allocation11 + $0x308] sm:$0xff]
    %v2962 = vld [vmem:[#allocation11 + $0x310] sm:$0xff]
    %v2963 = vld [vmem:[#allocation11 + $0x318] sm:$0xff]
    %v2964 = vld [vmem:[#allocation11 + $0x320] sm:$0xff]
    %v2965 = vld [vmem:[#allocation11 + $0x328] sm:$0xff]
    %v2966 = vld [vmem:[#allocation11 + $0x330] sm:$0xff]
    %v2967 = vld [vmem:[#allocation11 + $0x338] sm:$0xff]
    %v2968 = vld [vmem:[#allocation11 + $0x340] sm:$0xff]
    %v2969 = vld [vmem:[#allocation11 + $0x348] sm:$0xff]
    %v2970 = vld [vmem:[#allocation11 + $0x350] sm:$0xff]
    %v2971 = vld [vmem:[#allocation11 + $0x358] sm:$0xff]
    %v2972 = vld [vmem:[#allocation11 + $0x360] sm:$0xff]
    %v2973 = vld [vmem:[#allocation11 + $0x368] sm:$0xff]
    %v2974 = vld [vmem:[#allocation11 + $0x370] sm:$0xff]
    %v2975 = vld [vmem:[#allocation11 + $0x378] sm:$0xff]
    %v2976 = vld [vmem:[#allocation11 + $0x380] sm:$0xff]
    %v2977 = vld [vmem:[#allocation11 + $0x388] sm:$0xff]
    %v2978 = vld [vmem:[#allocation11 + $0x390] sm:$0xff]
    %v2979 = vld [vmem:[#allocation11 + $0x398] sm:$0xff]
    %v2980 = vld [vmem:[#allocation11 + $0x3a0] sm:$0xff]
    %v2981 = vld [vmem:[#allocation11 + $0x3a8] sm:$0xff]
    %v2982 = vld [vmem:[#allocation11 + $0x3b0] sm:$0xff]
    %v2983 = vld [vmem:[#allocation11 + $0x3b8] sm:$0xff]
    %v2984 = vld [vmem:[#allocation11 + $0x3c0] sm:$0xff]
    %v2985 = vld [vmem:[#allocation11 + $0x3c8] sm:$0xff]
    %v2986 = vld [vmem:[#allocation11 + $0x3d0] sm:$0xff]
    %v2987 = vld [vmem:[#allocation11 + $0x3d8] sm:$0xff]
    %v2988 = vld [vmem:[#allocation11 + $0x3e0] sm:$0xff]
    %v2989 = vld [vmem:[#allocation11 + $0x3e8] sm:$0xff]
    %v2990 = vld [vmem:[#allocation11 + $0x3f0] sm:$0xff]
    %v2991 = vld [vmem:[#allocation11 + $0x3f8] sm:$0xff]
    %v2992 = vld [vmem:[#allocation11 + $0x400] sm:$0xff]
    %v2993 = vld [vmem:[#allocation11 + $0x408] sm:$0xff]
    %v2994 = vld [vmem:[#allocation11 + $0x410] sm:$0xff]
    %v2995 = vld [vmem:[#allocation11 + $0x418] sm:$0xff]
    %v2996 = vld [vmem:[#allocation11 + $0x420] sm:$0xff]
    %v2997 = vld [vmem:[#allocation11 + $0x428] sm:$0xff]
    %v2998 = vld [vmem:[#allocation11 + $0x430] sm:$0xff]
    %v2999 = vld [vmem:[#allocation11 + $0x438] sm:$0xff]
    %v3000 = vld [vmem:[#allocation11 + $0x440] sm:$0xff]
    %v3001 = vld [vmem:[#allocation11 + $0x448] sm:$0xff]
    %v3002 = vld [vmem:[#allocation11 + $0x450] sm:$0xff]
    %v3003 = vld [vmem:[#allocation11 + $0x458] sm:$0xff]
    %v3004 = vld [vmem:[#allocation11 + $0x460] sm:$0xff]
    %v3005 = vld [vmem:[#allocation11 + $0x468] sm:$0xff]
    %v3006 = vld [vmem:[#allocation11 + $0x470] sm:$0xff]
    %v3007 = vld [vmem:[#allocation11 + $0x478] sm:$0xff]
    %v3008 = vld [vmem:[#allocation11 + $0x480] sm:$0xff]
    %v3009 = vld [vmem:[#allocation11 + $0x488] sm:$0xff]
    %v3010 = vld [vmem:[#allocation11 + $0x490] sm:$0xff]
    %v3011 = vld [vmem:[#allocation11 + $0x498] sm:$0xff]
    %v3012 = vld [vmem:[#allocation11 + $0x4a0] sm:$0x33]
    %v3013 = vld [vmem:[#allocation11 + $0x4a8] sm:$0x33]
    %v3014 = vld [vmem:[#allocation11 + $0x4b0] sm:$0x33]
    %v3015 = vld [vmem:[#allocation11 + $0x4b8] sm:$0x33]
    %v3022 = vunpack.c.l.b16 %v2858
    %v3023 = vunpack.c.h.b16 %v2858
    %v3024 = vunpack.c.l.b16 %v2859
    %v3025 = vunpack.c.l.b16 %v2860
    %v3026 = vunpack.c.h.b16 %v2860
    %v3027 = vunpack.c.l.b16 %v2861
    %v3028 = vunpack.c.l.b16 %v2862
    %v3029 = vunpack.c.h.b16 %v2862
    %v3030 = vunpack.c.l.b16 %v2863
    %v3031 = vpack.c.b16 %v3025, %v3022
    %v3032 = vpack.c.b16 %v3026, %v3023
    %v3033 = vpack.c.b16 %v3027, %v3024
    %v3034 = vpack.c.b16 %v3028, %v3028
    %v3035 = vpack.c.b16 %v3029, %v3029
    %v3036 = vpack.c.b16 %v3030, %v3030
    %v3193 = vunpack.c.l.b16 %v2864
    %v3194 = vunpack.c.h.b16 %v2864
    %v3195 = vunpack.c.l.b16 %v2865
    %v3196 = vunpack.c.h.b16 %v2865
    %v3197 = vunpack.c.l.b16 %v2866
    %v3198 = vunpack.c.h.b16 %v2866
    %v3199 = vunpack.c.l.b16 %v2867
    %v3200 = vunpack.c.h.b16 %v2867
    %v3201 = vunpack.c.l.b16 %v2868
    %v3202 = vunpack.c.h.b16 %v2868
    %v3203 = vunpack.c.l.b16 %v2869
    %v3204 = vunpack.c.h.b16 %v2869
    %v3205 = vunpack.c.l.b16 %v2870
    %v3206 = vunpack.c.h.b16 %v2870
    %v3207 = vunpack.c.l.b16 %v2871
    %v3208 = vunpack.c.h.b16 %v2871
    %v3209 = vunpack.c.l.b16 %v2872
    %v3210 = vunpack.c.h.b16 %v2872
    %v3211 = vunpack.c.l.b16 %v2873
    %v3212 = vunpack.c.h.b16 %v2873
    %v3213 = vunpack.c.l.b16 %v2874
    %v3214 = vunpack.c.h.b16 %v2874
    %v3215 = vunpack.c.l.b16 %v2875
    %v3216 = vunpack.c.h.b16 %v2875
    %v3217 = vunpack.c.l.b16 %v2876
    %v3218 = vunpack.c.h.b16 %v2876
    %v3219 = vunpack.c.l.b16 %v2877
    %v3220 = vunpack.c.h.b16 %v2877
    %v3221 = vunpack.c.l.b16 %v2878
    %v3222 = vunpack.c.h.b16 %v2878
    %v3223 = vunpack.c.l.b16 %v2879
    %v3224 = vunpack.c.h.b16 %v2879
    %v3225 = vunpack.c.l.b16 %v2880
    %v3226 = vunpack.c.h.b16 %v2880
    %v3227 = vunpack.c.l.b16 %v2881
    %v3228 = vunpack.c.h.b16 %v2881
    %v3229 = vunpack.c.l.b16 %v2882
    %v3230 = vunpack.c.h.b16 %v2882
    %v3231 = vunpack.c.l.b16 %v2883
    %v3232 = vunpack.c.h.b16 %v2883
    %v3233 = vunpack.c.l.b16 %v2884
    %v3234 = vunpack.c.h.b16 %v2884
    %v3235 = vunpack.c.l.b16 %v2885
    %v3236 = vunpack.c.h.b16 %v2885
    %v3237 = vunpack.c.l.b16 %v2886
    %v3238 = vunpack.c.h.b16 %v2886
    %v3239 = vunpack.c.l.b16 %v2887
    %v3240 = vunpack.c.h.b16 %v2887
    %v3241 = vunpack.c.l.b16 %v2888
    %v3242 = vunpack.c.h.b16 %v2888
    %v3243 = vunpack.c.l.b16 %v2889
    %v3244 = vunpack.c.h.b16 %v2889
    %v3245 = vunpack.c.l.b16 %v2890
    %v3246 = vunpack.c.h.b16 %v2890
    %v3247 = vunpack.c.l.b16 %v2891
    %v3248 = vunpack.c.h.b16 %v2891
    %v3249 = vunpack.c.l.b16 %v2892
    %v3250 = vunpack.c.h.b16 %v2892
    %v3251 = vunpack.c.l.b16 %v2893
    %v3252 = vunpack.c.h.b16 %v2893
    %v3253 = vunpack.c.l.b16 %v2894
    %v3254 = vunpack.c.h.b16 %v2894
    %v3255 = vunpack.c.l.b16 %v2895
    %v3256 = vunpack.c.h.b16 %v2895
    %v3257 = vunpack.c.l.b16 %v2896
    %v3258 = vunpack.c.h.b16 %v2896
    %v3259 = vunpack.c.l.b16 %v2897
    %v3260 = vunpack.c.h.b16 %v2897
    %v3261 = vunpack.c.l.b16 %v2898
    %v3262 = vunpack.c.h.b16 %v2898
    %v3263 = vunpack.c.l.b16 %v2899
    %v3264 = vunpack.c.h.b16 %v2899
    %v3265 = vunpack.c.l.b16 %v2900
    %v3266 = vunpack.c.h.b16 %v2900
    %v3267 = vunpack.c.l.b16 %v2901
    %v3268 = vunpack.c.h.b16 %v2901
    %v3269 = vunpack.c.l.b16 %v2902
    %v3270 = vunpack.c.h.b16 %v2902
    %v3271 = vunpack.c.l.b16 %v2903
    %v3272 = vunpack.c.h.b16 %v2903
    %v3273 = vunpack.c.l.b16 %v2904
    %v3274 = vunpack.c.h.b16 %v2904
    %v3275 = vunpack.c.l.b16 %v2905
    %v3276 = vunpack.c.h.b16 %v2905
    %v3277 = vunpack.c.l.b16 %v2906
    %v3278 = vunpack.c.h.b16 %v2906
    %v3279 = vunpack.c.l.b16 %v2907
    %v3280 = vunpack.c.h.b16 %v2907
    %v3281 = vunpack.c.l.b16 %v2908
    %v3282 = vunpack.c.h.b16 %v2908
    %v3283 = vunpack.c.l.b16 %v2909
    %v3284 = vunpack.c.h.b16 %v2909
    %v3285 = vunpack.c.l.b16 %v2910
    %v3286 = vunpack.c.h.b16 %v2910
    %v3287 = vunpack.c.l.b16 %v2911
    %v3288 = vunpack.c.h.b16 %v2911
    %v3289 = vunpack.c.l.b16 %v2912
    %v3290 = vunpack.c.h.b16 %v2912
    %v3291 = vunpack.c.l.b16 %v2913
    %v3292 = vunpack.c.h.b16 %v2913
    %v3293 = vunpack.c.l.b16 %v2914
    %v3294 = vunpack.c.h.b16 %v2914
    %v3295 = vunpack.c.l.b16 %v2915
    %v3296 = vunpack.c.h.b16 %v2915
    %v3297 = vunpack.c.l.b16 %v2916
    %v3298 = vunpack.c.h.b16 %v2916
    %v3299 = vunpack.c.l.b16 %v2917
    %v3300 = vunpack.c.h.b16 %v2917
    %v3301 = vunpack.c.l.b16 %v2918
    %v3302 = vunpack.c.h.b16 %v2918
    %v3303 = vunpack.c.l.b16 %v2919
    %v3304 = vunpack.c.h.b16 %v2919
    %v3305 = vunpack.c.l.b16 %v2920
    %v3306 = vunpack.c.h.b16 %v2920
    %v3307 = vunpack.c.l.b16 %v2921
    %v3308 = vunpack.c.h.b16 %v2921
    %v3309 = vunpack.c.l.b16 %v2922
    %v3310 = vunpack.c.h.b16 %v2922
    %v3311 = vunpack.c.l.b16 %v2923
    %v3312 = vunpack.c.h.b16 %v2923
    %v3313 = vunpack.c.l.b16 %v2924
    %v3314 = vunpack.c.h.b16 %v2924
    %v3315 = vunpack.c.l.b16 %v2925
    %v3316 = vunpack.c.h.b16 %v2925
    %v3317 = vunpack.c.l.b16 %v2926
    %v3318 = vunpack.c.h.b16 %v2926
    %v3319 = vunpack.c.l.b16 %v2927
    %v3320 = vunpack.c.h.b16 %v2927
    %v3321 = vunpack.c.l.b16 %v2928
    %v3322 = vunpack.c.h.b16 %v2928
    %v3323 = vunpack.c.l.b16 %v2929
    %v3324 = vunpack.c.h.b16 %v2929
    %v3325 = vunpack.c.l.b16 %v2930
    %v3326 = vunpack.c.h.b16 %v2930
    %v3327 = vunpack.c.l.b16 %v2931
    %v3328 = vunpack.c.h.b16 %v2931
    %v3329 = vunpack.c.l.b16 %v2932
    %v3330 = vunpack.c.h.b16 %v2932
    %v3331 = vunpack.c.l.b16 %v2933
    %v3332 = vunpack.c.h.b16 %v2933
    %v3333 = vunpack.c.l.b16 %v2934
    %v3334 = vunpack.c.h.b16 %v2934
    %v3335 = vunpack.c.l.b16 %v2935
    %v3336 = vunpack.c.h.b16 %v2935
    %v3337 = vunpack.c.l.b16 %v2936
    %v3338 = vunpack.c.h.b16 %v2936
    %v3339 = vunpack.c.l.b16 %v2937
    %v3340 = vunpack.c.h.b16 %v2937
    %v3341 = vunpack.c.l.b16 %v2938
    %v3342 = vunpack.c.h.b16 %v2938
    %v3343 = vunpack.c.l.b16 %v2939
    %v3344 = vunpack.c.h.b16 %v2939
    %v3345 = vunpack.c.l.b16 %v2940
    %v3346 = vunpack.c.h.b16 %v2940
    %v3347 = vunpack.c.l.b16 %v2941
    %v3348 = vunpack.c.h.b16 %v2941
    %v3349 = vunpack.c.l.b16 %v2942
    %v3350 = vunpack.c.h.b16 %v2942
    %v3351 = vunpack.c.l.b16 %v2943
    %v3352 = vunpack.c.h.b16 %v2943
    %v3353 = vunpack.c.l.b16 %v2944
    %v3354 = vunpack.c.h.b16 %v2944
    %v3355 = vunpack.c.l.b16 %v2945
    %v3356 = vunpack.c.h.b16 %v2945
    %v3357 = vunpack.c.l.b16 %v2946
    %v3358 = vunpack.c.h.b16 %v2946
    %v3359 = vunpack.c.l.b16 %v2947
    %v3360 = vunpack.c.h.b16 %v2947
    %v3361 = vunpack.c.l.b16 %v2948
    %v3362 = vunpack.c.h.b16 %v2948
    %v3363 = vunpack.c.l.b16 %v2949
    %v3364 = vunpack.c.h.b16 %v2949
    %v3365 = vunpack.c.l.b16 %v2950
    %v3366 = vunpack.c.h.b16 %v2950
    %v3367 = vunpack.c.l.b16 %v2951
    %v3368 = vunpack.c.h.b16 %v2951
    %v3369 = vunpack.c.l.b16 %v2952
    %v3370 = vunpack.c.h.b16 %v2952
    %v3371 = vunpack.c.l.b16 %v2953
    %v3372 = vunpack.c.h.b16 %v2953
    %v3373 = vunpack.c.l.b16 %v2954
    %v3374 = vunpack.c.h.b16 %v2954
    %v3375 = vunpack.c.l.b16 %v2955
    %v3376 = vunpack.c.h.b16 %v2955
    %v3377 = vunpack.c.l.b16 %v2956
    %v3378 = vunpack.c.h.b16 %v2956
    %v3379 = vunpack.c.l.b16 %v2957
    %v3380 = vunpack.c.h.b16 %v2957
    %v3381 = vunpack.c.l.b16 %v2958
    %v3382 = vunpack.c.h.b16 %v2958
    %v3383 = vunpack.c.l.b16 %v2959
    %v3384 = vunpack.c.h.b16 %v2959
    %v3385 = vunpack.c.l.b16 %v2960
    %v3386 = vunpack.c.h.b16 %v2960
    %v3387 = vunpack.c.l.b16 %v2961
    %v3388 = vunpack.c.h.b16 %v2961
    %v3389 = vunpack.c.l.b16 %v2962
    %v3390 = vunpack.c.h.b16 %v2962
    %v3391 = vunpack.c.l.b16 %v2963
    %v3392 = vunpack.c.h.b16 %v2963
    %v3393 = vunpack.c.l.b16 %v2964
    %v3394 = vunpack.c.h.b16 %v2964
    %v3395 = vunpack.c.l.b16 %v2965
    %v3396 = vunpack.c.h.b16 %v2965
    %v3397 = vunpack.c.l.b16 %v2966
    %v3398 = vunpack.c.h.b16 %v2966
    %v3399 = vunpack.c.l.b16 %v2967
    %v3400 = vunpack.c.h.b16 %v2967
    %v3401 = vunpack.c.l.b16 %v2968
    %v3402 = vunpack.c.h.b16 %v2968
    %v3403 = vunpack.c.l.b16 %v2969
    %v3404 = vunpack.c.h.b16 %v2969
    %v3405 = vunpack.c.l.b16 %v2970
    %v3406 = vunpack.c.h.b16 %v2970
    %v3407 = vunpack.c.l.b16 %v2971
    %v3408 = vunpack.c.h.b16 %v2971
    %v3409 = vunpack.c.l.b16 %v2972
    %v3410 = vunpack.c.h.b16 %v2972
    %v3411 = vunpack.c.l.b16 %v2973
    %v3412 = vunpack.c.h.b16 %v2973
    %v3413 = vunpack.c.l.b16 %v2974
    %v3414 = vunpack.c.h.b16 %v2974
    %v3415 = vunpack.c.l.b16 %v2975
    %v3416 = vunpack.c.h.b16 %v2975
    %v3417 = vunpack.c.l.b16 %v2976
    %v3418 = vunpack.c.h.b16 %v2976
    %v3419 = vunpack.c.l.b16 %v2977
    %v3420 = vunpack.c.h.b16 %v2977
    %v3421 = vunpack.c.l.b16 %v2978
    %v3422 = vunpack.c.h.b16 %v2978
    %v3423 = vunpack.c.l.b16 %v2979
    %v3424 = vunpack.c.h.b16 %v2979
    %v3425 = vunpack.c.l.b16 %v2980
    %v3426 = vunpack.c.h.b16 %v2980
    %v3427 = vunpack.c.l.b16 %v2981
    %v3428 = vunpack.c.h.b16 %v2981
    %v3429 = vunpack.c.l.b16 %v2982
    %v3430 = vunpack.c.h.b16 %v2982
    %v3431 = vunpack.c.l.b16 %v2983
    %v3432 = vunpack.c.h.b16 %v2983
    %v3433 = vunpack.c.l.b16 %v2984
    %v3434 = vunpack.c.h.b16 %v2984
    %v3435 = vunpack.c.l.b16 %v2985
    %v3436 = vunpack.c.h.b16 %v2985
    %v3437 = vunpack.c.l.b16 %v2986
    %v3438 = vunpack.c.h.b16 %v2986
    %v3439 = vunpack.c.l.b16 %v2987
    %v3440 = vunpack.c.h.b16 %v2987
    %v3441 = vunpack.c.l.b16 %v2988
    %v3442 = vunpack.c.h.b16 %v2988
    %v3443 = vunpack.c.l.b16 %v2989
    %v3444 = vunpack.c.h.b16 %v2989
    %v3445 = vunpack.c.l.b16 %v2990
    %v3446 = vunpack.c.h.b16 %v2990
    %v3447 = vunpack.c.l.b16 %v2991
    %v3448 = vunpack.c.h.b16 %v2991
    %v3449 = vunpack.c.l.b16 %v2992
    %v3450 = vunpack.c.h.b16 %v2992
    %v3451 = vunpack.c.l.b16 %v2993
    %v3452 = vunpack.c.h.b16 %v2993
    %v3453 = vunpack.c.l.b16 %v2994
    %v3454 = vunpack.c.h.b16 %v2994
    %v3455 = vunpack.c.l.b16 %v2995
    %v3456 = vunpack.c.h.b16 %v2995
    %v3457 = vunpack.c.l.b16 %v2996
    %v3458 = vunpack.c.h.b16 %v2996
    %v3459 = vunpack.c.l.b16 %v2997
    %v3460 = vunpack.c.h.b16 %v2997
    %v3461 = vunpack.c.l.b16 %v2998
    %v3462 = vunpack.c.h.b16 %v2998
    %v3463 = vunpack.c.l.b16 %v2999
    %v3464 = vunpack.c.h.b16 %v2999
    %v3465 = vunpack.c.l.b16 %v3000
    %v3466 = vunpack.c.h.b16 %v3000
    %v3467 = vunpack.c.l.b16 %v3001
    %v3468 = vunpack.c.h.b16 %v3001
    %v3469 = vunpack.c.l.b16 %v3002
    %v3470 = vunpack.c.h.b16 %v3002
    %v3471 = vunpack.c.l.b16 %v3003
    %v3472 = vunpack.c.h.b16 %v3003
    %v3473 = vunpack.c.l.b16 %v3004
    %v3474 = vunpack.c.h.b16 %v3004
    %v3475 = vunpack.c.l.b16 %v3005
    %v3476 = vunpack.c.h.b16 %v3005
    %v3477 = vunpack.c.l.b16 %v3006
    %v3478 = vunpack.c.h.b16 %v3006
    %v3479 = vunpack.c.l.b16 %v3007
    %v3480 = vunpack.c.h.b16 %v3007
    %v3481 = vunpack.c.l.b16 %v3008
    %v3482 = vunpack.c.h.b16 %v3008
    %v3483 = vunpack.c.l.b16 %v3009
    %v3484 = vunpack.c.h.b16 %v3009
    %v3485 = vunpack.c.l.b16 %v3010
    %v3486 = vunpack.c.h.b16 %v3010
    %v3487 = vunpack.c.l.b16 %v3011
    %v3488 = vunpack.c.h.b16 %v3011
    %v3489 = vunpack.c.l.b16 %v3012
    %v3490 = vunpack.c.h.b16 %v3012
    %v3491 = vunpack.c.l.b16 %v3013
    %v3492 = vunpack.c.h.b16 %v3013
    %v3493 = vunpack.c.l.b16 %v3014
    %v3494 = vunpack.c.h.b16 %v3014
    %v3495 = vunpack.c.l.b16 %v3015
    %v3496 = vunpack.c.h.b16 %v3015
    %v3497 = vpack.c.b16 %v3201, %v3193
    %v3498 = vpack.c.b16 %v3202, %v3194
    %v3499 = vpack.c.b16 %v3203, %v3195
    %v3500 = vpack.c.b16 %v3204, %v3196
    %v3501 = vpack.c.b16 %v3205, %v3197
    %v3502 = vpack.c.b16 %v3206, %v3198
    %v3503 = vpack.c.b16 %v3207, %v3199
    %v3504 = vpack.c.b16 %v3208, %v3200
    %v3505 = vpack.c.b16 %v3217, %v3209
    %v3506 = vpack.c.b16 %v3218, %v3210
    %v3507 = vpack.c.b16 %v3219, %v3211
    %v3508 = vpack.c.b16 %v3220, %v3212
    %v3509 = vpack.c.b16 %v3221, %v3213
    %v3510 = vpack.c.b16 %v3222, %v3214
    %v3511 = vpack.c.b16 %v3223, %v3215
    %v3512 = vpack.c.b16 %v3224, %v3216
    %v3513 = vpack.c.b16 %v3233, %v3225
    %v3514 = vpack.c.b16 %v3234, %v3226
    %v3515 = vpack.c.b16 %v3235, %v3227
    %v3516 = vpack.c.b16 %v3236, %v3228
    %v3517 = vpack.c.b16 %v3237, %v3229
    %v3518 = vpack.c.b16 %v3238, %v3230
    %v3519 = vpack.c.b16 %v3239, %v3231
    %v3520 = vpack.c.b16 %v3240, %v3232
    %v3521 = vpack.c.b16 %v3249, %v3241
    %v3522 = vpack.c.b16 %v3250, %v3242
    %v3523 = vpack.c.b16 %v3251, %v3243
    %v3524 = vpack.c.b16 %v3252, %v3244
    %v3525 = vpack.c.b16 %v3253, %v3245
    %v3526 = vpack.c.b16 %v3254, %v3246
    %v3527 = vpack.c.b16 %v3255, %v3247
    %v3528 = vpack.c.b16 %v3256, %v3248
    %v3529 = vpack.c.b16 %v3265, %v3257
    %v3530 = vpack.c.b16 %v3266, %v3258
    %v3531 = vpack.c.b16 %v3267, %v3259
    %v3532 = vpack.c.b16 %v3268, %v3260
    %v3533 = vpack.c.b16 %v3269, %v3261
    %v3534 = vpack.c.b16 %v3270, %v3262
    %v3535 = vpack.c.b16 %v3271, %v3263
    %v3536 = vpack.c.b16 %v3272, %v3264
    %v3537 = vpack.c.b16 %v3281, %v3273
    %v3538 = vpack.c.b16 %v3282, %v3274
    %v3539 = vpack.c.b16 %v3283, %v3275
    %v3540 = vpack.c.b16 %v3284, %v3276
    %v3541 = vpack.c.b16 %v3285, %v3277
    %v3542 = vpack.c.b16 %v3286, %v3278
    %v3543 = vpack.c.b16 %v3287, %v3279
    %v3544 = vpack.c.b16 %v3288, %v3280
    %v3545 = vpack.c.b16 %v3297, %v3289
    %v3546 = vpack.c.b16 %v3298, %v3290
    %v3547 = vpack.c.b16 %v3299, %v3291
    %v3548 = vpack.c.b16 %v3300, %v3292
    %v3549 = vpack.c.b16 %v3301, %v3293
    %v3550 = vpack.c.b16 %v3302, %v3294
    %v3551 = vpack.c.b16 %v3303, %v3295
    %v3552 = vpack.c.b16 %v3304, %v3296
    %v3553 = vpack.c.b16 %v3313, %v3305
    %v3554 = vpack.c.b16 %v3314, %v3306
    %v3555 = vpack.c.b16 %v3315, %v3307
    %v3556 = vpack.c.b16 %v3316, %v3308
    %v3557 = vpack.c.b16 %v3317, %v3309
    %v3558 = vpack.c.b16 %v3318, %v3310
    %v3559 = vpack.c.b16 %v3319, %v3311
    %v3560 = vpack.c.b16 %v3320, %v3312
    %v3561 = vpack.c.b16 %v3329, %v3321
    %v3562 = vpack.c.b16 %v3330, %v3322
    %v3563 = vpack.c.b16 %v3331, %v3323
    %v3564 = vpack.c.b16 %v3332, %v3324
    %v3565 = vpack.c.b16 %v3333, %v3325
    %v3566 = vpack.c.b16 %v3334, %v3326
    %v3567 = vpack.c.b16 %v3335, %v3327
    %v3568 = vpack.c.b16 %v3336, %v3328
    %v3569 = vpack.c.b16 %v3345, %v3337
    %v3570 = vpack.c.b16 %v3346, %v3338
    %v3571 = vpack.c.b16 %v3347, %v3339
    %v3572 = vpack.c.b16 %v3348, %v3340
    %v3573 = vpack.c.b16 %v3349, %v3341
    %v3574 = vpack.c.b16 %v3350, %v3342
    %v3575 = vpack.c.b16 %v3351, %v3343
    %v3576 = vpack.c.b16 %v3352, %v3344
    %v3577 = vpack.c.b16 %v3361, %v3353
    %v3578 = vpack.c.b16 %v3362, %v3354
    %v3579 = vpack.c.b16 %v3363, %v3355
    %v3580 = vpack.c.b16 %v3364, %v3356
    %v3581 = vpack.c.b16 %v3365, %v3357
    %v3582 = vpack.c.b16 %v3366, %v3358
    %v3583 = vpack.c.b16 %v3367, %v3359
    %v3584 = vpack.c.b16 %v3368, %v3360
    %v3585 = vpack.c.b16 %v3377, %v3369
    %v3586 = vpack.c.b16 %v3378, %v3370
    %v3587 = vpack.c.b16 %v3379, %v3371
    %v3588 = vpack.c.b16 %v3380, %v3372
    %v3589 = vpack.c.b16 %v3381, %v3373
    %v3590 = vpack.c.b16 %v3382, %v3374
    %v3591 = vpack.c.b16 %v3383, %v3375
    %v3592 = vpack.c.b16 %v3384, %v3376
    %v3593 = vpack.c.b16 %v3393, %v3385
    %v3594 = vpack.c.b16 %v3394, %v3386
    %v3595 = vpack.c.b16 %v3395, %v3387
    %v3596 = vpack.c.b16 %v3396, %v3388
    %v3597 = vpack.c.b16 %v3397, %v3389
    %v3598 = vpack.c.b16 %v3398, %v3390
    %v3599 = vpack.c.b16 %v3399, %v3391
    %v3600 = vpack.c.b16 %v3400, %v3392
    %v3601 = vpack.c.b16 %v3409, %v3401
    %v3602 = vpack.c.b16 %v3410, %v3402
    %v3603 = vpack.c.b16 %v3411, %v3403
    %v3604 = vpack.c.b16 %v3412, %v3404
    %v3605 = vpack.c.b16 %v3413, %v3405
    %v3606 = vpack.c.b16 %v3414, %v3406
    %v3607 = vpack.c.b16 %v3415, %v3407
    %v3608 = vpack.c.b16 %v3416, %v3408
    %v3609 = vpack.c.b16 %v3425, %v3417
    %v3610 = vpack.c.b16 %v3426, %v3418
    %v3611 = vpack.c.b16 %v3427, %v3419
    %v3612 = vpack.c.b16 %v3428, %v3420
    %v3613 = vpack.c.b16 %v3429, %v3421
    %v3614 = vpack.c.b16 %v3430, %v3422
    %v3615 = vpack.c.b16 %v3431, %v3423
    %v3616 = vpack.c.b16 %v3432, %v3424
    %v3617 = vpack.c.b16 %v3441, %v3433
    %v3618 = vpack.c.b16 %v3442, %v3434
    %v3619 = vpack.c.b16 %v3443, %v3435
    %v3620 = vpack.c.b16 %v3444, %v3436
    %v3621 = vpack.c.b16 %v3445, %v3437
    %v3622 = vpack.c.b16 %v3446, %v3438
    %v3623 = vpack.c.b16 %v3447, %v3439
    %v3624 = vpack.c.b16 %v3448, %v3440
    %v3625 = vpack.c.b16 %v3457, %v3449
    %v3626 = vpack.c.b16 %v3458, %v3450
    %v3627 = vpack.c.b16 %v3459, %v3451
    %v3628 = vpack.c.b16 %v3460, %v3452
    %v3629 = vpack.c.b16 %v3461, %v3453
    %v3630 = vpack.c.b16 %v3462, %v3454
    %v3631 = vpack.c.b16 %v3463, %v3455
    %v3632 = vpack.c.b16 %v3464, %v3456
    %v3633 = vpack.c.b16 %v3473, %v3465
    %v3634 = vpack.c.b16 %v3474, %v3466
    %v3635 = vpack.c.b16 %v3475, %v3467
    %v3636 = vpack.c.b16 %v3476, %v3468
    %v3637 = vpack.c.b16 %v3477, %v3469
    %v3638 = vpack.c.b16 %v3478, %v3470
    %v3639 = vpack.c.b16 %v3479, %v3471
    %v3640 = vpack.c.b16 %v3480, %v3472
    %v3641 = vpack.c.b16 %v3489, %v3481
    %v3642 = vpack.c.b16 %v3490, %v3482
    %v3643 = vpack.c.b16 %v3491, %v3483
    %v3644 = vpack.c.b16 %v3492, %v3484
    %v3645 = vpack.c.b16 %v3493, %v3485
    %v3646 = vpack.c.b16 %v3494, %v3486
    %v3647 = vpack.c.b16 %v3495, %v3487
    %v3648 = vpack.c.b16 %v3496, %v3488
    %v3794 = vsel %vm1203, %v3033, 0
    %v3797 = vsel %vm1203, %v3036, 0
    %v3800 = vsel %vm1210, %v3641, 0
    %v3803 = vsel %vm1210, %v3642, 0
    %v3806 = vsel %vm1210, %v3643, 0
    %v3809 = vsel %vm1210, %v3644, 0
    %v3812 = vsel %vm1210, %v3645, 0
    %v3815 = vsel %vm1210, %v3646, 0
    %v3818 = vsel %vm1210, %v3647, 0
    %v3821 = vsel %vm1210, %v3648, 0
    %3823 = vmatprep.subr.bf16.mxu0 %v3498
    %3824 = vmatpush1.bf16.msra.mxu0 %v3497
    %3825 = vmatprep.subr.bf16.mxu0 %v3506
    %3826 = vmatpush1.bf16.msra.mxu0 %v3505
    %3827 = vmatprep.subr.bf16.mxu0 %v3514
    %3828 = vmatpush1.bf16.msra.mxu0 %v3513
    %3829 = vmatprep.subr.bf16.mxu0 %v3522
    %3830 = vmatpush1.bf16.msra.mxu0 %v3521
    %3831 = vmatprep.subr.bf16.mxu0 %v3530
    %3832 = vmatpush1.bf16.msra.mxu0 %v3529
    %3833 = vmatprep.subr.bf16.mxu0 %v3538
    %3834 = vmatpush1.bf16.msra.mxu0 %v3537
    %3835 = vmatprep.subr.bf16.mxu0 %v3546
    %3836 = vmatpush1.bf16.msra.mxu0 %v3545
    %3837 = vmatprep.subr.bf16.mxu0 %v3554
    %3838 = vmatpush1.bf16.msra.mxu0 %v3553
    %3839 = vmatprep.subr.bf16.mxu0 %v3562
    %3840 = vmatpush1.bf16.msra.mxu0 %v3561
    %3841 = vmatprep.subr.bf16.mxu0 %v3570
    %3842 = vmatpush1.bf16.msra.mxu0 %v3569
    %3843 = vmatprep.subr.bf16.mxu0 %v3578
    %3844 = vmatpush1.bf16.msra.mxu0 %v3577
    %3845 = vmatprep.subr.bf16.mxu0 %v3586
    %3846 = vmatpush1.bf16.msra.mxu0 %v3585
    %3847 = vmatprep.subr.bf16.mxu0 %v3594
    %3848 = vmatpush1.bf16.msra.mxu0 %v3593
    %3849 = vmatprep.subr.bf16.mxu0 %v3602
    %3850 = vmatpush1.bf16.msra.mxu0 %v3601
    %3851 = vmatprep.subr.bf16.mxu0 %v3610
    %3852 = vmatpush1.bf16.msra.mxu0 %v3609
    %3853 = vmatprep.subr.bf16.mxu0 %v3618
    %3854 = vmatpush1.bf16.msra.mxu0 %v3617
    %3855 = vmatprep.mubr.bf16.mxu0 %v3032
    %3856 = vmatmul.mubr.bf16.gmra.mrb[0].mxu0 %v3031
    %v3857 = vpop.f32.mrb[0].mxu0
    %v3858 = vadd.f32 0.0, %v3857
    %v3859 = vpop.f32.mrb[0].mxu0
    %v3860 = vadd.f32 0.0, %v3859
    %v3861 = vpop.f32.mrb[0].mxu0
    %v3862 = vadd.f32 0.0, %v3861
    %v3863 = vpop.f32.mrb[0].mxu0
    %v3864 = vadd.f32 0.0, %v3863
    %3865 = vmatprep.mubr.bf16.mxu0 %v3035
    %3866 = vmatmul.mubr.bf16.gmra.mrb[0].mxu0 %v3034
    %v3867 = vpop.f32.mrb[0].mxu0
    %v3868 = vadd.f32 0.0, %v3867
    %v3869 = vpop.f32.mrb[0].mxu0
    %v3870 = vadd.f32 0.0, %v3869
    %v3871 = vpop.f32.mrb[0].mxu0
    %v3872 = vpop.f32.mrb[0].mxu0
    %3873 = vdwg.mxu0
    %3874 = vmatprep.subr.bf16.mxu0 %v3626
    %3875 = vmatpush1.bf16.msra.mxu0 %v3625
    %3876 = vmatprep.subr.bf16.mxu0 %v3634
    %3877 = vmatpush1.bf16.msra.mxu0 %v3633
    %3878 = vmatprep.subr.bf16.mxu0 %v3803
    %3879 = vmatpush1.bf16.msra.mxu0 %v3800
    %3880 = vmatprep.subr.bf16.mxu0 0
    %3881 = vmatpush1.bf16.msra.mxu0 0
    %3882 = vmatprep.subr.bf16.mxu0 0
    %3883 = vmatpush1.bf16.msra.mxu0 0
    %3884 = vmatprep.subr.bf16.mxu0 0
    %3885 = vmatpush1.bf16.msra.mxu0 0
    %3886 = vmatprep.subr.bf16.mxu0 0
    %3887 = vmatpush1.bf16.msra.mxu0 0
    %3888 = vmatprep.subr.bf16.mxu0 0
    %3889 = vmatpush1.bf16.msra.mxu0 0
    %3890 = vmatprep.subr.bf16.mxu0 0
    %3891 = vmatpush1.bf16.msra.mxu0 0
    %3892 = vmatprep.subr.bf16.mxu0 0
    %3893 = vmatpush1.bf16.msra.mxu0 0
    %3894 = vmatprep.subr.bf16.mxu0 0
    %3895 = vmatpush1.bf16.msra.mxu0 0
    %3896 = vmatprep.subr.bf16.mxu0 0
    %3897 = vmatpush1.bf16.msra.mxu0 0
    %3898 = vmatprep.subr.bf16.mxu0 0
    %3899 = vmatpush1.bf16.msra.mxu0 0
    %3900 = vmatprep.subr.bf16.mxu0 0
    %3901 = vmatpush1.bf16.msra.mxu0 0
    %3902 = vmatprep.subr.bf16.mxu0 0
    %3903 = vmatpush1.bf16.msra.mxu0 0
    %3904 = vmatprep.subr.bf16.mxu0 0
    %3905 = vmatpush1.bf16.msra.mxu0 0
    %3906 = vmatprep.mubr.bf16.mxu0 0
    %3907 = vmatmul.mubr.bf16.gmra.mrb[0].mxu0 %v3794
    %v3908 = vpop.f32.mrb[0].mxu0
    %v3909 = vadd.f32 %v3858, %v3908
    %v3910 = vpop.f32.mrb[0].mxu0
    %v3911 = vadd.f32 %v3860, %v3910
    %v3912 = vpop.f32.mrb[0].mxu0
    %v3913 = vadd.f32 %v3862, %v3912
    %v3914 = vpop.f32.mrb[0].mxu0
    %v3915 = vadd.f32 %v3864, %v3914
    %3916 = vmatprep.mubr.bf16.mxu0 0
    %3917 = vmatmul.mubr.bf16.gmra.mrb[0].mxu0 %v3797
    %v3918 = vpop.f32.mrb[0].mxu0
    %v3919 = vadd.f32 %v3868, %v3918
    %v3920 = vpop.f32.mrb[0].mxu0
    %v3921 = vadd.f32 %v3870, %v3920
    %v3922 = vpop.f32.mrb[0].mxu0
    %v3923 = vpop.f32.mrb[0].mxu0
    %3924 = vdwg.mxu0
    %3925 = vmatprep.subr.bf16.mxu0 %v3500
    %3926 = vmatpush1.bf16.msra.mxu0 %v3499
    %3927 = vmatprep.subr.bf16.mxu0 %v3508
    %3928 = vmatpush1.bf16.msra.mxu0 %v3507
    %3929 = vmatprep.subr.bf16.mxu0 %v3516
    %3930 = vmatpush1.bf16.msra.mxu0 %v3515
    %3931 = vmatprep.subr.bf16.mxu0 %v3524
    %3932 = vmatpush1.bf16.msra.mxu0 %v3523
    %3933 = vmatprep.subr.bf16.mxu0 %v3532
    %3934 = vmatpush1.bf16.msra.mxu0 %v3531
    %3935 = vmatprep.subr.bf16.mxu0 %v3540
    %3936 = vmatpush1.bf16.msra.mxu0 %v3539
    %3937 = vmatprep.subr.bf16.mxu0 %v3548
    %3938 = vmatpush1.bf16.msra.mxu0 %v3547
    %3939 = vmatprep.subr.bf16.mxu0 %v3556
    %3940 = vmatpush1.bf16.msra.mxu0 %v3555
    %3941 = vmatprep.subr.bf16.mxu0 %v3564
    %3942 = vmatpush1.bf16.msra.mxu0 %v3563
    %3943 = vmatprep.subr.bf16.mxu0 %v3572
    %3944 = vmatpush1.bf16.msra.mxu0 %v3571
    %3945 = vmatprep.subr.bf16.mxu0 %v3580
    %3946 = vmatpush1.bf16.msra.mxu0 %v3579
    %3947 = vmatprep.subr.bf16.mxu0 %v3588
    %3948 = vmatpush1.bf16.msra.mxu0 %v3587
    %3949 = vmatprep.subr.bf16.mxu0 %v3596
    %3950 = vmatpush1.bf16.msra.mxu0 %v3595
    %3951 = vmatprep.subr.bf16.mxu0 %v3604
    %3952 = vmatpush1.bf16.msra.mxu0 %v3603
    %3953 = vmatprep.subr.bf16.mxu0 %v3612
    %3954 = vmatpush1.bf16.msra.mxu0 %v3611
    %3955 = vmatprep.subr.bf16.mxu0 %v3620
    %3956 = vmatpush1.bf16.msra.mxu0 %v3619
    %3957 = vmatprep.mubr.bf16.mxu0 %v3032
    %3958 = vmatmul.mubr.bf16.gmra.mrb[0].mxu0 %v3031
    %v3959 = vpop.f32.mrb[0].mxu0
    %v3960 = vadd.f32 0.0, %v3959
    %v3961 = vpop.f32.mrb[0].mxu0
    %v3962 = vadd.f32 0.0, %v3961
    %v3963 = vpop.f32.mrb[0].mxu0
    %v3964 = vadd.f32 0.0, %v3963
    %v3965 = vpop.f32.mrb[0].mxu0
    %v3966 = vadd.f32 0.0, %v3965
    %3967 = vmatprep.mubr.bf16.mxu0 %v3035
    %3968 = vmatmul.mubr.bf16.gmra.mrb[0].mxu0 %v3034
    %v3969 = vpop.f32.mrb[0].mxu0
    %v3970 = vadd.f32 0.0, %v3969
    %v3971 = vpop.f32.mrb[0].mxu0
    %v3972 = vadd.f32 0.0, %v3971
    %v3973 = vpop.f32.mrb[0].mxu0
    %v3974 = vpop.f32.mrb[0].mxu0
    %3975 = vdwg.mxu0
    %3976 = vmatprep.subr.bf16.mxu0 %v3628
    %3977 = vmatpush1.bf16.msra.mxu0 %v3627
    %3978 = vmatprep.subr.bf16.mxu0 %v3636
    %3979 = vmatpush1.bf16.msra.mxu0 %v3635
    %3980 = vmatprep.subr.bf16.mxu0 %v3809
    %3981 = vmatpush1.bf16.msra.mxu0 %v3806
    %3982 = vmatprep.subr.bf16.mxu0 0
    %3983 = vmatpush1.bf16.msra.mxu0 0
    %3984 = vmatprep.subr.bf16.mxu0 0
    %3985 = vmatpush1.bf16.msra.mxu0 0
    %3986 = vmatprep.subr.bf16.mxu0 0
    %3987 = vmatpush1.bf16.msra.mxu0 0
    %3988 = vmatprep.subr.bf16.mxu0 0
    %3989 = vmatpush1.bf16.msra.mxu0 0
    %3990 = vmatprep.subr.bf16.mxu0 0
    %3991 = vmatpush1.bf16.msra.mxu0 0
    %3992 = vmatprep.subr.bf16.mxu0 0
    %3993 = vmatpush1.bf16.msra.mxu0 0
    %3994 = vmatprep.subr.bf16.mxu0 0
    %3995 = vmatpush1.bf16.msra.mxu0 0
    %3996 = vmatprep.subr.bf16.mxu0 0
    %3997 = vmatpush1.bf16.msra.mxu0 0
    %3998 = vmatprep.subr.bf16.mxu0 0
    %3999 = vmatpush1.bf16.msra.mxu0 0
    %4000 = vmatprep.subr.bf16.mxu0 0
    %4001 = vmatpush1.bf16.msra.mxu0 0
    %4002 = vmatprep.subr.bf16.mxu0 0
    %4003 = vmatpush1.bf16.msra.mxu0 0
    %4004 = vmatprep.subr.bf16.mxu0 0
    %4005 = vmatpush1.bf16.msra.mxu0 0
    %4006 = vmatprep.subr.bf16.mxu0 0
    %4007 = vmatpush1.bf16.msra.mxu0 0
    %4008 = vmatprep.mubr.bf16.mxu0 0
    %4009 = vmatmul.mubr.bf16.gmra.mrb[0].mxu0 %v3794
    %v4010 = vpop.f32.mrb[0].mxu0
    %v4011 = vadd.f32 %v3960, %v4010
    %v4012 = vpop.f32.mrb[0].mxu0
    %v4013 = vadd.f32 %v3962, %v4012
    %v4014 = vpop.f32.mrb[0].mxu0
    %v4015 = vadd.f32 %v3964, %v4014
    %v4016 = vpop.f32.mrb[0].mxu0
    %v4017 = vadd.f32 %v3966, %v4016
    %4018 = vmatprep.mubr.bf16.mxu0 0
    %4019 = vmatmul.mubr.bf16.gmra.mrb[0].mxu0 %v3797
    %v4020 = vpop.f32.mrb[0].mxu0
    %v4021 = vadd.f32 %v3970, %v4020
    %v4022 = vpop.f32.mrb[0].mxu0
    %v4023 = vadd.f32 %v3972, %v4022
    %v4024 = vpop.f32.mrb[0].mxu0
    %v4025 = vpop.f32.mrb[0].mxu0
    %4026 = vdwg.mxu0
    %4027 = vmatprep.subr.bf16.mxu0 %v3502
    %4028 = vmatpush1.bf16.msra.mxu0 %v3501
    %4029 = vmatprep.subr.bf16.mxu0 %v3510
    %4030 = vmatpush1.bf16.msra.mxu0 %v3509
    %4031 = vmatprep.subr.bf16.mxu0 %v3518
    %4032 = vmatpush1.bf16.msra.mxu0 %v3517
    %4033 = vmatprep.subr.bf16.mxu0 %v3526
    %4034 = vmatpush1.bf16.msra.mxu0 %v3525
    %4035 = vmatprep.subr.bf16.mxu0 %v3534
    %4036 = vmatpush1.bf16.msra.mxu0 %v3533
    %4037 = vmatprep.subr.bf16.mxu0 %v3542
    %4038 = vmatpush1.bf16.msra.mxu0 %v3541
    %4039 = vmatprep.subr.bf16.mxu0 %v3550
    %4040 = vmatpush1.bf16.msra.mxu0 %v3549
    %4041 = vmatprep.subr.bf16.mxu0 %v3558
    %4042 = vmatpush1.bf16.msra.mxu0 %v3557
    %4043 = vmatprep.subr.bf16.mxu0 %v3566
    %4044 = vmatpush1.bf16.msra.mxu0 %v3565
    %4045 = vmatprep.subr.bf16.mxu0 %v3574
    %4046 = vmatpush1.bf16.msra.mxu0 %v3573
    %4047 = vmatprep.subr.bf16.mxu0 %v3582
    %4048 = vmatpush1.bf16.msra.mxu0 %v3581
    %4049 = vmatprep.subr.bf16.mxu0 %v3590
    %4050 = vmatpush1.bf16.msra.mxu0 %v3589
    %4051 = vmatprep.subr.bf16.mxu0 %v3598
    %4052 = vmatpush1.bf16.msra.mxu0 %v3597
    %4053 = vmatprep.subr.bf16.mxu0 %v3606
    %4054 = vmatpush1.bf16.msra.mxu0 %v3605
    %4055 = vmatprep.subr.bf16.mxu0 %v3614
    %4056 = vmatpush1.bf16.msra.mxu0 %v3613
    %4057 = vmatprep.subr.bf16.mxu0 %v3622
    %4058 = vmatpush1.bf16.msra.mxu0 %v3621
    %4059 = vmatprep.mubr.bf16.mxu0 %v3032
    %4060 = vmatmul.mubr.bf16.gmra.mrb[0].mxu0 %v3031
    %v4061 = vpop.f32.mrb[0].mxu0
    %v4062 = vadd.f32 0.0, %v4061
    %v4063 = vpop.f32.mrb[0].mxu0
    %v4064 = vadd.f32 0.0, %v4063
    %v4065 = vpop.f32.mrb[0].mxu0
    %v4066 = vadd.f32 0.0, %v4065
    %v4067 = vpop.f32.mrb[0].mxu0
    %v4068 = vadd.f32 0.0, %v4067
    %4069 = vmatprep.mubr.bf16.mxu0 %v3035
    %4070 = vmatmul.mubr.bf16.gmra.mrb[0].mxu0 %v3034
    %v4071 = vpop.f32.mrb[0].mxu0
    %v4072 = vadd.f32 0.0, %v4071
    %v4073 = vpop.f32.mrb[0].mxu0
    %v4074 = vadd.f32 0.0, %v4073
    %v4075 = vpop.f32.mrb[0].mxu0
    %v4076 = vpop.f32.mrb[0].mxu0
    %4077 = vdwg.mxu0
    %4078 = vmatprep.subr.bf16.mxu0 %v3630
    %4079 = vmatpush1.bf16.msra.mxu0 %v3629
    %4080 = vmatprep.subr.bf16.mxu0 %v3638
    %4081 = vmatpush1.bf16.msra.mxu0 %v3637
    %4082 = vmatprep.subr.bf16.mxu0 %v3815
    %4083 = vmatpush1.bf16.msra.mxu0 %v3812
    %4084 = vmatprep.subr.bf16.mxu0 0
    %4085 = vmatpush1.bf16.msra.mxu0 0
    %4086 = vmatprep.subr.bf16.mxu0 0
    %4087 = vmatpush1.bf16.msra.mxu0 0
    %4088 = vmatprep.subr.bf16.mxu0 0
    %4089 = vmatpush1.bf16.msra.mxu0 0
    %4090 = vmatprep.subr.bf16.mxu0 0
    %4091 = vmatpush1.bf16.msra.mxu0 0
    %4092 = vmatprep.subr.bf16.mxu0 0
    %4093 = vmatpush1.bf16.msra.mxu0 0
    %4094 = vmatprep.subr.bf16.mxu0 0
    %4095 = vmatpush1.bf16.msra.mxu0 0
    %4096 = vmatprep.subr.bf16.mxu0 0
    %4097 = vmatpush1.bf16.msra.mxu0 0
    %4098 = vmatprep.subr.bf16.mxu0 0
    %4099 = vmatpush1.bf16.msra.mxu0 0
    %4100 = vmatprep.subr.bf16.mxu0 0
    %4101 = vmatpush1.bf16.msra.mxu0 0
    %4102 = vmatprep.subr.bf16.mxu0 0
    %4103 = vmatpush1.bf16.msra.mxu0 0
    %4104 = vmatprep.subr.bf16.mxu0 0
    %4105 = vmatpush1.bf16.msra.mxu0 0
    %4106 = vmatprep.subr.bf16.mxu0 0
    %4107 = vmatpush1.bf16.msra.mxu0 0
    %4108 = vmatprep.subr.bf16.mxu0 0
    %4109 = vmatpush1.bf16.msra.mxu0 0
    %4110 = vmatprep.mubr.bf16.mxu0 0
    %4111 = vmatmul.mubr.bf16.gmra.mrb[0].mxu0 %v3794
    %v4112 = vpop.f32.mrb[0].mxu0
    %v4113 = vadd.f32 %v4062, %v4112
    %v4114 = vpop.f32.mrb[0].mxu0
    %v4115 = vadd.f32 %v4064, %v4114
    %v4116 = vpop.f32.mrb[0].mxu0
    %v4117 = vadd.f32 %v4066, %v4116
    %v4118 = vpop.f32.mrb[0].mxu0
    %v4119 = vadd.f32 %v4068, %v4118
    %4120 = vmatprep.mubr.bf16.mxu0 0
    %4121 = vmatmul.mubr.bf16.gmra.mrb[0].mxu0 %v3797
    %v4122 = vpop.f32.mrb[0].mxu0
    %v4123 = vadd.f32 %v4072, %v4122
    %v4124 = vpop.f32.mrb[0].mxu0
    %v4125 = vadd.f32 %v4074, %v4124
    %v4126 = vpop.f32.mrb[0].mxu0
    %v4127 = vpop.f32.mrb[0].mxu0
    %4128 = vdwg.mxu0
    %4129 = vmatprep.subr.bf16.mxu0 %v3504
    %4130 = vmatpush1.bf16.msra.mxu0 %v3503
    %4131 = vmatprep.subr.bf16.mxu0 %v3512
    %4132 = vmatpush1.bf16.msra.mxu0 %v3511
    %4133 = vmatprep.subr.bf16.mxu0 %v3520
    %4134 = vmatpush1.bf16.msra.mxu0 %v3519
    %4135 = vmatprep.subr.bf16.mxu0 %v3528
    %4136 = vmatpush1.bf16.msra.mxu0 %v3527
    %4137 = vmatprep.subr.bf16.mxu0 %v3536
    %4138 = vmatpush1.bf16.msra.mxu0 %v3535
    %4139 = vmatprep.subr.bf16.mxu0 %v3544
    %4140 = vmatpush1.bf16.msra.mxu0 %v3543
    %4141 = vmatprep.subr.bf16.mxu0 %v3552
    %4142 = vmatpush1.bf16.msra.mxu0 %v3551
    %4143 = vmatprep.subr.bf16.mxu0 %v3560
    %4144 = vmatpush1.bf16.msra.mxu0 %v3559
    %4145 = vmatprep.subr.bf16.mxu0 %v3568
    %4146 = vmatpush1.bf16.msra.mxu0 %v3567
    %4147 = vmatprep.subr.bf16.mxu0 %v3576
    %4148 = vmatpush1.bf16.msra.mxu0 %v3575
    %4149 = vmatprep.subr.bf16.mxu0 %v3584
    %4150 = vmatpush1.bf16.msra.mxu0 %v3583
    %4151 = vmatprep.subr.bf16.mxu0 %v3592
    %4152 = vmatpush1.bf16.msra.mxu0 %v3591
    %4153 = vmatprep.subr.bf16.mxu0 %v3600
    %4154 = vmatpush1.bf16.msra.mxu0 %v3599
    %4155 = vmatprep.subr.bf16.mxu0 %v3608
    %4156 = vmatpush1.bf16.msra.mxu0 %v3607
    %4157 = vmatprep.subr.bf16.mxu0 %v3616
    %4158 = vmatpush1.bf16.msra.mxu0 %v3615
    %4159 = vmatprep.subr.bf16.mxu0 %v3624
    %4160 = vmatpush1.bf16.msra.mxu0 %v3623
    %4161 = vmatprep.mubr.bf16.mxu0 %v3032
    %4162 = vmatmul.mubr.bf16.gmra.mrb[0].mxu0 %v3031
    %v4163 = vpop.f32.mrb[0].mxu0
    %v4164 = vadd.f32 0.0, %v4163
    %v4165 = vpop.f32.mrb[0].mxu0
    %v4166 = vadd.f32 0.0, %v4165
    %v4167 = vpop.f32.mrb[0].mxu0
    %v4168 = vadd.f32 0.0, %v4167
    %v4169 = vpop.f32.mrb[0].mxu0
    %v4170 = vadd.f32 0.0, %v4169
    %4171 = vmatprep.mubr.bf16.mxu0 %v3035
    %4172 = vmatmul.mubr.bf16.gmra.mrb[0].mxu0 %v3034
    %v4173 = vpop.f32.mrb[0].mxu0
    %v4174 = vadd.f32 0.0, %v4173
    %v4175 = vpop.f32.mrb[0].mxu0
    %v4176 = vadd.f32 0.0, %v4175
    %v4177 = vpop.f32.mrb[0].mxu0
    %v4178 = vpop.f32.mrb[0].mxu0
    %4179 = vdwg.mxu0
    %4180 = vmatprep.subr.bf16.mxu0 %v3632
    %4181 = vmatpush1.bf16.msra.mxu0 %v3631
    %4182 = vmatprep.subr.bf16.mxu0 %v3640
    %4183 = vmatpush1.bf16.msra.mxu0 %v3639
    %4184 = vmatprep.subr.bf16.mxu0 %v3821
    %4185 = vmatpush1.bf16.msra.mxu0 %v3818
    %4186 = vmatprep.subr.bf16.mxu0 0
    %4187 = vmatpush1.bf16.msra.mxu0 0
    %4188 = vmatprep.subr.bf16.mxu0 0
    %4189 = vmatpush1.bf16.msra.mxu0 0
    %4190 = vmatprep.subr.bf16.mxu0 0
    %4191 = vmatpush1.bf16.msra.mxu0 0
    %4192 = vmatprep.subr.bf16.mxu0 0
    %4193 = vmatpush1.bf16.msra.mxu0 0
    %4194 = vmatprep.subr.bf16.mxu0 0
    %4195 = vmatpush1.bf16.msra.mxu0 0
    %4196 = vmatprep.subr.bf16.mxu0 0
    %4197 = vmatpush1.bf16.msra.mxu0 0
    %4198 = vmatprep.subr.bf16.mxu0 0
    %4199 = vmatpush1.bf16.msra.mxu0 0
    %4200 = vmatprep.subr.bf16.mxu0 0
    %4201 = vmatpush1.bf16.msra.mxu0 0
    %4202 = vmatprep.subr.bf16.mxu0 0
    %4203 = vmatpush1.bf16.msra.mxu0 0
    %4204 = vmatprep.subr.bf16.mxu0 0
    %4205 = vmatpush1.bf16.msra.mxu0 0
    %4206 = vmatprep.subr.bf16.mxu0 0
    %4207 = vmatpush1.bf16.msra.mxu0 0
    %4208 = vmatprep.subr.bf16.mxu0 0
    %4209 = vmatpush1.bf16.msra.mxu0 0
    %4210 = vmatprep.subr.bf16.mxu0 0
    %4211 = vmatpush1.bf16.msra.mxu0 0
    %4212 = vmatprep.mubr.bf16.mxu0 0
    %4213 = vmatmul.mubr.bf16.gmra.mrb[0].mxu0 %v3794
    %v4214 = vpop.f32.mrb[0].mxu0
    %v4215 = vadd.f32 %v4164, %v4214
    %v4216 = vpop.f32.mrb[0].mxu0
    %v4217 = vadd.f32 %v4166, %v4216
    %v4218 = vpop.f32.mrb[0].mxu0
    %v4219 = vadd.f32 %v4168, %v4218
    %v4220 = vpop.f32.mrb[0].mxu0
    %v4221 = vadd.f32 %v4170, %v4220
    %4222 = vmatprep.mubr.bf16.mxu0 0
    %4223 = vmatmul.mubr.bf16.gmra.mrb[0].mxu0 %v3797
    %v4224 = vpop.f32.mrb[0].mxu0
    %v4225 = vadd.f32 %v4174, %v4224
    %v4226 = vpop.f32.mrb[0].mxu0
    %v4227 = vadd.f32 %v4176, %v4226
    %v4228 = vpop.f32.mrb[0].mxu0
    %v4229 = vpop.f32.mrb[0].mxu0
    %4230 = vdwg.mxu0
    %v4231 = vadd.f32 %v2536, %v3909
    %v4232 = vadd.f32 %v2538, %v3911
    %v4233 = vadd.f32 %v2638, %v4011
    %v4234 = vadd.f32 %v2640, %v4013
    %v4235 = vadd.f32 %v2740, %v4113
    %v4236 = vadd.f32 %v2742, %v4115
    %v4237 = vadd.f32 %v2842, %v4215
    %v4238 = vadd.f32 %v2844, %v4217
    %v4239 = vadd.f32 %v2540, %v3913
    %v4240 = vadd.f32 %v2542, %v3915
    %v4241 = vadd.f32 %v2642, %v4015
    %v4242 = vadd.f32 %v2644, %v4017
    %v4243 = vadd.f32 %v2744, %v4117
    %v4244 = vadd.f32 %v2746, %v4119
    %v4245 = vadd.f32 %v2846, %v4219
    %v4246 = vadd.f32 %v2848, %v4221
    %v4247 = vadd.f32 %v2546, %v3919
    %v4248 = vadd.f32 %v2548, %v3921
    %v4249 = vadd.f32 %v2648, %v4021
    %v4250 = vadd.f32 %v2650, %v4023
    %v4251 = vadd.f32 %v2750, %v4123
    %v4252 = vadd.f32 %v2752, %v4125
    %v4253 = vadd.f32 %v2852, %v4225
    %v4254 = vadd.f32 %v2854, %v4227
    %v4255 = vld [vmem:[%s6] sm:$0xff]
    %v4257 = vlaneseq
    %v4258 = vshrl.u32 %v4257, 7
    %v4259 = vsub.s32 0, %v4258
    %v4260 = vrot.slane %v4255, %v4259
    %v4261 = vlaneseq
    %v4262 = vshrl.u32 %v4261, 7
    %v4263 = vsub.s32 1, %v4262
    %v4264 = vrot.slane %v4255, %v4263
    %v4265 = vlaneseq
    %v4266 = vshrl.u32 %v4265, 7
    %v4267 = vsub.s32 2, %v4266
    %v4268 = vrot.slane %v4255, %v4267
    %v4269 = vlaneseq
    %v4270 = vshrl.u32 %v4269, 7
    %v4271 = vsub.s32 3, %v4270
    %v4272 = vrot.slane %v4255, %v4271
    %v4273 = vlaneseq
    %v4274 = vshrl.u32 %v4273, 7
    %v4275 = vsub.s32 4, %v4274
    %v4276 = vrot.slane %v4255, %v4275
    %v4277 = vlaneseq
    %v4278 = vshrl.u32 %v4277, 7
    %v4279 = vsub.s32 5, %v4278
    %v4280 = vrot.slane %v4255, %v4279
    %v4281 = vlaneseq
    %v4282 = vshrl.u32 %v4281, 7
    %v4283 = vsub.s32 6, %v4282
    %v4284 = vrot.slane %v4255, %v4283
    %v4285 = vlaneseq
    %v4286 = vshrl.u32 %v4285, 7
    %v4287 = vsub.s32 7, %v4286
    %v4288 = vrot.slane %v4255, %v4287
    %v4297 = vadd.f32 %v4231, %v4260
    %v4298 = vadd.f32 %v4232, %v4264
    %v4299 = vadd.f32 %v4233, %v4268
    %v4300 = vadd.f32 %v4234, %v4272
    %v4301 = vadd.f32 %v4235, %v4276
    %v4302 = vadd.f32 %v4236, %v4280
    %v4303 = vadd.f32 %v4237, %v4284
    %v4304 = vadd.f32 %v4238, %v4288
    %v4305 = vadd.f32 %v4239, %v4260
    %v4306 = vadd.f32 %v4240, %v4264
    %v4307 = vadd.f32 %v4241, %v4268
    %v4308 = vadd.f32 %v4242, %v4272
    %v4309 = vadd.f32 %v4243, %v4276
    %v4310 = vadd.f32 %v4244, %v4280
    %v4311 = vadd.f32 %v4245, %v4284
    %v4312 = vadd.f32 %v4246, %v4288
    %v4313 = vadd.f32 %v4247, %v4260
    %v4314 = vadd.f32 %v4248, %v4264
    %v4315 = vadd.f32 %v4249, %v4268
    %v4316 = vadd.f32 %v4250, %v4272
    %v4317 = vadd.f32 %v4251, %v4276
    %v4318 = vadd.f32 %v4252, %v4280
    %v4319 = vadd.f32 %v4253, %v4284
    %v4320 = vadd.f32 %v4254, %v4288
    %4321 = vst [vmem:[#allocation13] sm:$0xff] %v4297
    %4322 = vst [vmem:[#allocation13 + $0x8] sm:$0xff] %v4298
    %4323 = vst [vmem:[#allocation13 + $0x10] sm:$0xff] %v4299
    %4324 = vst [vmem:[#allocation13 + $0x18] sm:$0xff] %v4300
    %4325 = vst [vmem:[#allocation13 + $0x20] sm:$0xff] %v4301
    %4326 = vst [vmem:[#allocation13 + $0x28] sm:$0xff] %v4302
    %4327 = vst [vmem:[#allocation13 + $0x30] sm:$0xff] %v4303
    %vm4328 = vcmask 31744
    %4329 = vst.msk [vmem:[#allocation13 + $0x38] sm:$0xff] %vm4328, %v4304
    %4330 = vst [vmem:[#allocation13 + $0x40] sm:$0xff] %v4305
    %4331 = vst [vmem:[#allocation13 + $0x48] sm:$0xff] %v4306
    %4332 = vst [vmem:[#allocation13 + $0x50] sm:$0xff] %v4307
    %4333 = vst [vmem:[#allocation13 + $0x58] sm:$0xff] %v4308
    %4334 = vst [vmem:[#allocation13 + $0x60] sm:$0xff] %v4309
    %4335 = vst [vmem:[#allocation13 + $0x68] sm:$0xff] %v4310
    %4336 = vst [vmem:[#allocation13 + $0x70] sm:$0xff] %v4311
    %4337 = vst.msk [vmem:[#allocation13 + $0x78] sm:$0xff] %vm4328, %v4312
    %4338 = vst [vmem:[#allocation13 + $0x80] sm:$0xff] %v4313
    %4339 = vst [vmem:[#allocation13 + $0x88] sm:$0xff] %v4314
    %4340 = vst [vmem:[#allocation13 + $0x90] sm:$0xff] %v4315
    %4341 = vst [vmem:[#allocation13 + $0x98] sm:$0xff] %v4316
    %4342 = vst [vmem:[#allocation13 + $0xa0] sm:$0xff] %v4317
    %4343 = vst [vmem:[#allocation13 + $0xa8] sm:$0xff] %v4318
    %4344 = vst [vmem:[#allocation13 + $0xb0] sm:$0xff] %v4319
    %4345 = vst.msk [vmem:[#allocation13 + $0xb8] sm:$0xff] %vm4328, %v4320
    // Predicated region
    $region54: #{tpu_custom_call.1} parent=1 // pred_check
      _
    $region55: #{tpu_custom_call.1} parent=1 // pred_check_branch
      %4347 = sbr.rel (0) target = $region57
    $region56: #{tpu_custom_call.1} parent=1 // pred_region
      %s4349 = ssub.s32 3072, 3072
      %4350 = vsyncadd [#allocation4], %s4349
      %s4351 = sshll.u32 [#allocation13], 4
      %s4352 = int_to_ptr.vmem [resolvable:$true] %s4351
      %4357 = dma.vmem_to_hbm [thread:$0]  %s4352, 3072, %s7, [#allocation4], 1024, 1024, 64
    $region57: #{tpu_custom_call.1} parent=1 // pred_fallthru
      _
    // Predicated region
    $region58: #{tpu_custom_call.1} parent=1 // pred_check
      _
    $region59: #{tpu_custom_call.1} parent=1 // pred_check_branch
      %4359 = sbr.rel (0) target = $region61
    $region60: #{tpu_custom_call.1} parent=1 // pred_region
      %4360 = dma.done [#allocation4], 3072
    $region61: #{tpu_custom_call.1} parent=1 // pred_fallthru
      _
    %4361 = vsyncpa [#allocation3], 1
    %4362 = vsyncpa [#allocation6], 1
    %4363 = vsyncpa [#allocation9], 1
    %4364 = vsyncpa [#allocation12], 1
    %4365 = vsyncpa [#allocation4], 1

</llo_original>
